<compile_context>
chip_gen: v7x
topology: tpu7x:2x2x1
jax: 0.10.0
libtpu: 0.0.40
codegen_flags: <defaults>
</compile_context>

<pallas_src>
import numpy as np
import jax
import jax.numpy as jnp
from jax.experimental import pallas as pl
from jax.experimental.pallas import tpu as pltpu

GRAPH_EMB = 8      # graph_embedding_size
E_CHUNK = 128      # edge-chunk size for the running scatter-max (lane width)


# ----------------------------- Pallas kernel ----------------------------- #
def mpnn_kernel(xT_ref, eaT_ref, srcT_ref, dstT_ref, p_ref, out_ref):
    f32 = jnp.float32

    def dot(a, b):
        return jnp.dot(a, b, preferred_element_type=f32)

    xT = xT_ref[...]                  # [9, N] node features, feature-major (N on lanes)
    x0T = xT[0:1, :]                  # [1, N] first (raw) column, invariant across layers
    xrT = xT[1:9, :]                  # [8, N] graph-embedding part (updated each layer)
    eaT = eaT_ref[...]                # [1, E] edge attributes (E on lanes)
    src = srcT_ref[...]               # [1, E] int32 source node per edge
    dst = dstT_ref[...]               # [1, E] int32 destination node per edge (-1 for padding)

    N = xT.shape[1]
    E = eaT.shape[1]
    n_chunks = E // E_CHUNK           # E is padded wrapper-side to a multiple of E_CHUNK

    # ---- packed parameter slab: each block is [out, in] with the bias in the next column ----
    A1x0 = p_ref[0:32, 0:1]; A1xr = p_ref[0:32, 1:9]; A1e = p_ref[0:32, 9:10]
    b1a = p_ref[0:32, 10:11]
    A2 = p_ref[32:64, 0:32]; b1b = p_ref[32:64, 32:33]
    B1x0 = p_ref[64:80, 0:1]
    B1cat = p_ref[64:80, 1:41]        # fused [xr | aggr] weights -> single K=40 update dot
    b2a = p_ref[64:80, 41:42]
    B2 = p_ref[80:88, 0:16]; b2b = p_ref[80:88, 16:17]
    C1 = p_ref[88:104, 0:8]; b3a = p_ref[88:104, 8:9]
    C2 = p_ref[104:105, 0:16]; b3b = p_ref[104:105, 16:17]

    # ---- build gather one-hot / dst mask in-kernel from the int32 index rows (no dense DMA) --
    niota = jax.lax.broadcasted_iota(jnp.int32, (N, E), 0)     # node index on sublanes
    S = (niota == src).astype(f32)        # [N, E]  one-hot(src): x_j^T = x^T @ S
    Dmask = (niota == dst).astype(f32)    # [N, E]  0/1 dst membership, hoisted out of the loop

    # ---- layer-invariant terms hoisted out of the 3-layer loop (former K=1 dots -> VPU) ----
    xj0T = dot(x0T, S)                                   # [1, E] gather of the constant column
    m_const = A1x0 * xj0T + A1e * eaT + b1a              # [32, E]
    u_const = B1x0 * x0T + b2a                           # [16, N]

    def chunk_update(agg, msg_c, msk_c):
        # edges on lanes (E_CHUNK=128), nodes on sublanes; exact because msg >= 0 and the
        # PyG 'max' aggregation fill value is 0 (mask is exact 0/1 -> multiply, no select).
        cand = msg_c[:, None, :] * msk_c[None, :, :]              # [32, N, E_CHUNK]
        return jnp.maximum(agg, jnp.max(cand, axis=-1))           # lane reduce -> [32, N]

    def scatter_max(msgT):
        init = jnp.zeros((32, N), f32)
        if n_chunks <= 4:                                         # static unroll, static slices
            agg = init
            for c in range(n_chunks):
                c0 = c * E_CHUNK
                agg = chunk_update(agg, msgT[:, c0:c0 + E_CHUNK], Dmask[:, c0:c0 + E_CHUNK])
            return agg

        def body(c, agg):                                         # bounded live ranges for big E
            c0 = c * E_CHUNK
            msg_c = jax.lax.dynamic_slice(msgT, (0, c0), (32, E_CHUNK))
            msk_c = jax.lax.dynamic_slice(Dmask, (0, c0), (N, E_CHUNK))
            return chunk_update(agg, msg_c, msk_c)

        return jax.lax.fori_loop(0, n_chunks, body, init)

    # ---- three weight-shared GConv layers (statically unrolled) ----
    for _ in range(3):
        # message: mlp1(cat[x_j, edge_attr]) in feature-major layout
        xjrT = dot(xrT, S)                                   # [8, E]  gather of the changing part
        h = jnp.maximum(dot(A1xr, xjrT) + m_const, 0.0)      # [32, E]
        msgT = jnp.maximum(dot(A2, h) + b1b, 0.0)            # [32, E], >= 0

        # aggregate: running scatter-max over 128-edge chunks (edges on lanes)
        aggT = scatter_max(msgT)                             # [32, N]

        # update: mlp2(cat[x, aggr]) with the xr/aggr contributions fused into one K=40 dot
        cat = jnp.concatenate([xrT, aggT], axis=0)           # [40, N]
        u = jnp.maximum(dot(B1cat, cat) + u_const, 0.0)      # [16, N]
        xrT = jnp.maximum(dot(B2, u) + b2b, 0.0)             # [8, N]

    # ---- h2o head on out[:, 1:] (== xr) ----
    h3 = jnp.maximum(dot(C1, xrT) + b3a, 0.0)                # [16, N]
    logit = dot(C2, h3) + b3b                                # [1, N]
    out_ref[...] = pl.reciprocal(1.0 + jnp.exp(-logit), approx=False)


# ------------------------------- wrapper --------------------------------- #
def _pack_params(params):
    """Pack all weights/biases into one [105, 48] f32 slab ([out, in] blocks, bias in next col)."""
    (w1a, b1a, w1b, b1b, w2a, b2a, w2b, b2b, w3a, b3a, w3b, b3b) = params
    P = jnp.zeros((105, 48), jnp.float32)

    def put(P, r0, w, b):
        wt = w.T                                   # [out, in]
        o, i = wt.shape
        P = P.at[r0:r0 + o, 0:i].set(wt)
        P = P.at[r0:r0 + o, i:i + 1].set(b[:, None])
        return P

    P = put(P, 0, w1a, b1a)        # mlp1 layer 1: [32, 10] + bias col 10
    P = put(P, 32, w1b, b1b)       # mlp1 layer 2: [32, 32] + bias col 32
    P = put(P, 64, w2a, b2a)       # mlp2 layer 1: [16, 41] + bias col 41 (cols 1:41 = fused xr|aggr)
    P = put(P, 80, w2b, b2b)       # mlp2 layer 2: [8, 16]  + bias col 16
    P = put(P, 88, w3a, b3a)       # h2o layer 1:  [16, 8]  + bias col 8
    P = put(P, 104, w3b, b3b)      # h2o layer 2:  [1, 16]  + bias col 16
    return P


def _round_up(v, m):
    return ((v + m - 1) // m) * m


@jax.jit
def mpnn_forward(x, edge_attr, edge_index, params):
    """x: [N,9] f32, edge_attr: [E,1] f32, edge_index: [2,E] int. Returns [N,1] f32."""
    N = x.shape[0]
    E = edge_attr.shape[0]
    N_pad = _round_up(max(N, 8), 8)          # clean sublane shapes for the scatter intermediate
    E_pad = _round_up(max(E, E_CHUNK), E_CHUNK)  # whole 128-edge (lane-dense) chunks

    # pad nodes with zero features (never sources/dests of real edges -> sliced off at the end)
    xT = jnp.zeros((1 + GRAPH_EMB, N_pad), jnp.float32).at[:, :N].set(x.T)
    eaT = jnp.zeros((1, E_pad), jnp.float32).at[:, :E].set(edge_attr.T)
    # padded edges: src=0 (message computed but unused), dst=-1 (matches no node -> no scatter)
    srcT = jnp.zeros((1, E_pad), jnp.int32).at[0, :E].set(edge_index[0].astype(jnp.int32))
    dstT = jnp.full((1, E_pad), -1, jnp.int32).at[0, :E].set(edge_index[1].astype(jnp.int32))

    P = _pack_params(params)

    vmem = pl.BlockSpec(memory_space=pltpu.MemorySpace.VMEM)
    out = pl.pallas_call(
        mpnn_kernel,
        out_shape=jax.ShapeDtypeStruct((1, N_pad), jnp.float32),
        in_specs=[vmem] * 5,
        out_specs=vmem,
        # Explicit cap: load-bearing on v5e (16 MiB scoped default), safely below v7x's
        # 64 MiB physical VMEM; actual footprint is only a few MiB now that the dense
        # one-hot/mask inputs are gone.
        compiler_params=pltpu.CompilerParams(vmem_limit_bytes=32 * 1024 * 1024),
    )(xT, eaT, srcT, dstT, P)
    return out[0, :N].reshape(N, 1)


# --------------------------- pure-JAX reference --------------------------- #
def mpnn_reference(x, edge_attr, edge_index, params):
    (w1a, b1a, w1b, b1b, w2a, b2a, w2b, b2b, w3a, b3a, w3b, b3b) = params
    src, dst = edge_index[0], edge_index[1]
    N = x.shape[0]

    def mlp1(t):
        return jax.nn.relu(jax.nn.relu(t @ w1a + b1a) @ w1b + b1b)

    def mlp2(t):
        return jax.nn.relu(jax.nn.relu(t @ w2a + b2a) @ w2b + b2b)

    def conv(xc):
        x_j = xc[src]                                            # [E, 9]
        msg = mlp1(jnp.concatenate([x_j, edge_attr], axis=1))    # [E, 32]
        aggr = jnp.zeros((N, msg.shape[1]), jnp.float32).at[dst].max(msg)  # fill 0
        comb = mlp2(jnp.concatenate([xc, aggr], axis=1))         # [N, 8]
        return jnp.concatenate([xc[:, :1], comb], axis=1)        # [N, 9]

    out = conv(conv(conv(x)))
    h = jax.nn.relu(out[:, 1:] @ w3a + b3a)
    return jax.nn.sigmoid(h @ w3b + b3b)


# ------------------------------ param init -------------------------------- #
def init_params(key):
    def linear(k, fan_in, fan_out):
        kw, kb = jax.random.split(k)
        bound = 1.0 / np.sqrt(fan_in)
        w = jax.random.uniform(kw, (fan_in, fan_out), jnp.float32, -bound, bound)
        b = jax.random.uniform(kb, (fan_out,), jnp.float32, -bound, bound)
        return w, b

    keys = jax.random.split(key, 6)
    w1a, b1a = linear(keys[0], 2 + GRAPH_EMB, 32)        # mlp1 layer 1  (10 -> 32)
    w1b, b1b = linear(keys[1], 32, 32)                   # mlp1 layer 2  (32 -> 32)
    w2a, b2a = linear(keys[2], 33 + GRAPH_EMB, 16)       # mlp2 layer 1  (41 -> 16)
    w2b, b2b = linear(keys[3], 16, GRAPH_EMB)            # mlp2 layer 2  (16 -> 8)
    w3a, b3a = linear(keys[4], GRAPH_EMB, 16)            # h2o layer 1   (8 -> 16)
    w3b, b3b = linear(keys[5], 16, 1)                    # h2o layer 2   (16 -> 1)
    return (w1a, b1a, w1b, b1b, w2a, b2a, w2b, b2b, w3a, b3a, w3b, b3b)


# --------------------------------- main ----------------------------------- #
if __name__ == "__main__":
    key = jax.random.PRNGKey(0)
    k_x, k_e, k_src, k_dst, k_p = jax.random.split(key, 5)

    N, E = 8, 16
    x0 = jax.random.normal(k_x, (N, 1 + GRAPH_EMB), jnp.float32)   # [8, 9]
    edge_attr = jax.random.normal(k_e, (E, 1), jnp.float32)        # [16, 1]
    src = jax.random.randint(k_src, (E,), 0, N, jnp.int32)
    dst = jax.random.randint(k_dst, (E,), 0, N, jnp.int32)
    edge_index = jnp.stack([src, dst], axis=0)                     # [2, 16]

    params = init_params(k_p)

    out = jax.block_until_ready(mpnn_forward(x0, edge_attr, edge_index, params))
    ref = jax.block_until_ready(mpnn_reference(x0, edge_attr, edge_index, params))
    assert out.shape == (N, 1)
    np.testing.assert_allclose(np.asarray(out), np.asarray(ref), rtol=1e-4, atol=1e-5)

    print("KERNEL_OK")
</pallas_src>

<mosaic_0001>
module attributes {stable_mosaic.version = 11 : i64} {
  func.func @mpnn_kernel(%arg0: memref<9x8xf32, #tpu.memory_space<vmem>>, %arg1: memref<1x128xf32, #tpu.memory_space<vmem>>, %arg2: memref<1x128xi32, #tpu.memory_space<vmem>>, %arg3: memref<1x128xi32, #tpu.memory_space<vmem>>, %arg4: memref<105x48xf32, #tpu.memory_space<vmem>>, %arg5: memref<1x8xf32, #tpu.memory_space<vmem>>) attributes {dimension_semantics = [], scalar_prefetch = 0 : i64, scratch_operands = 0 : i64, tpu.core_type = #tpu.core_type<tc>} {
    %c0 = arith.constant 0 : index
    %c0_0 = arith.constant 0 : index
    %0 = vector.load %arg0[%c0, %c0_0] : memref<9x8xf32, #tpu.memory_space<vmem>>, vector<9x8xf32>
    %1 = vector.extract_strided_slice %0 {offsets = [0, 0], sizes = [1, 8], strides = [1, 1]} : vector<9x8xf32> to vector<1x8xf32>
    %2 = vector.extract_strided_slice %0 {offsets = [1, 0], sizes = [8, 8], strides = [1, 1]} : vector<9x8xf32> to vector<8x8xf32>
    %c0_1 = arith.constant 0 : index
    %c0_2 = arith.constant 0 : index
    %3 = vector.load %arg1[%c0_1, %c0_2] : memref<1x128xf32, #tpu.memory_space<vmem>>, vector<1x128xf32>
    %c0_3 = arith.constant 0 : index
    %c0_4 = arith.constant 0 : index
    %4 = vector.load %arg2[%c0_3, %c0_4] : memref<1x128xi32, #tpu.memory_space<vmem>>, vector<1x128xi32>
    %c0_5 = arith.constant 0 : index
    %c0_6 = arith.constant 0 : index
    %5 = vector.load %arg3[%c0_5, %c0_6] : memref<1x128xi32, #tpu.memory_space<vmem>>, vector<1x128xi32>
    %c0_7 = arith.constant 0 : index
    %c0_8 = arith.constant 0 : index
    %6 = vector.load %arg4[%c0_7, %c0_8] : memref<105x48xf32, #tpu.memory_space<vmem>>, vector<32x1xf32>
    %c0_9 = arith.constant 0 : index
    %c1 = arith.constant 1 : index
    %7 = vector.load %arg4[%c0_9, %c1] : memref<105x48xf32, #tpu.memory_space<vmem>>, vector<32x8xf32>
    %c0_10 = arith.constant 0 : index
    %c9 = arith.constant 9 : index
    %8 = vector.load %arg4[%c0_10, %c9] : memref<105x48xf32, #tpu.memory_space<vmem>>, vector<32x1xf32>
    %c0_11 = arith.constant 0 : index
    %c10 = arith.constant 10 : index
    %9 = vector.load %arg4[%c0_11, %c10] : memref<105x48xf32, #tpu.memory_space<vmem>>, vector<32x1xf32>
    %c32 = arith.constant 32 : index
    %c0_12 = arith.constant 0 : index
    %10 = vector.load %arg4[%c32, %c0_12] : memref<105x48xf32, #tpu.memory_space<vmem>>, vector<32x32xf32>
    %c32_13 = arith.constant 32 : index
    %c32_14 = arith.constant 32 : index
    %11 = vector.load %arg4[%c32_13, %c32_14] : memref<105x48xf32, #tpu.memory_space<vmem>>, vector<32x1xf32>
    %c64 = arith.constant 64 : index
    %c0_15 = arith.constant 0 : index
    %12 = vector.load %arg4[%c64, %c0_15] : memref<105x48xf32, #tpu.memory_space<vmem>>, vector<16x1xf32>
    %c64_16 = arith.constant 64 : index
    %c1_17 = arith.constant 1 : index
    %13 = vector.load %arg4[%c64_16, %c1_17] : memref<105x48xf32, #tpu.memory_space<vmem>>, vector<16x40xf32>
    %c64_18 = arith.constant 64 : index
    %c41 = arith.constant 41 : index
    %14 = vector.load %arg4[%c64_18, %c41] : memref<105x48xf32, #tpu.memory_space<vmem>>, vector<16x1xf32>
    %c80 = arith.constant 80 : index
    %c0_19 = arith.constant 0 : index
    %15 = vector.load %arg4[%c80, %c0_19] : memref<105x48xf32, #tpu.memory_space<vmem>>, vector<8x16xf32>
    %c80_20 = arith.constant 80 : index
    %c16 = arith.constant 16 : index
    %16 = vector.load %arg4[%c80_20, %c16] : memref<105x48xf32, #tpu.memory_space<vmem>>, vector<8x1xf32>
    %c88 = arith.constant 88 : index
    %c0_21 = arith.constant 0 : index
    %17 = vector.load %arg4[%c88, %c0_21] : memref<105x48xf32, #tpu.memory_space<vmem>>, vector<16x8xf32>
    %c88_22 = arith.constant 88 : index
    %c8 = arith.constant 8 : index
    %18 = vector.load %arg4[%c88_22, %c8] : memref<105x48xf32, #tpu.memory_space<vmem>>, vector<16x1xf32>
    %c104 = arith.constant 104 : index
    %c0_23 = arith.constant 0 : index
    %19 = vector.load %arg4[%c104, %c0_23] : memref<105x48xf32, #tpu.memory_space<vmem>>, vector<1x16xf32>
    %c104_24 = arith.constant 104 : index
    %c16_25 = arith.constant 16 : index
    %20 = vector.load %arg4[%c104_24, %c16_25] : memref<105x48xf32, #tpu.memory_space<vmem>>, vector<1x1xf32>
    %21 = tpu.iota {dimensions = array<i32: 0>} : vector<8x128xi32>
    %22 = vector.broadcast %4 : vector<1x128xi32> to vector<8x128xi32>
    %23 = arith.cmpi eq, %21, %22 : vector<8x128xi32>
    %24 = arith.extui %23 : vector<8x128xi1> to vector<8x128xi32>
    %25 = arith.sitofp %24 : vector<8x128xi32> to vector<8x128xf32>
    %26 = vector.broadcast %5 : vector<1x128xi32> to vector<8x128xi32>
    %27 = arith.cmpi eq, %21, %26 : vector<8x128xi32>
    %28 = arith.extui %27 : vector<8x128xi1> to vector<8x128xi32>
    %29 = arith.sitofp %28 : vector<8x128xi32> to vector<8x128xf32>
    %cst = arith.constant dense<0.000000e+00> : vector<1x128xf32>
    %30 = tpu.matmul %1, %25, %cst {dimension_numbers = #tpu.dot_dimension_numbers<[1], [0], [0], [1], [0, 0, 1, 1], [], []>} : vector<1x8xf32>, vector<8x128xf32>, vector<1x128xf32> -> vector<1x128xf32>
    %31 = vector.broadcast %6 : vector<32x1xf32> to vector<32x128xf32>
    %32 = vector.broadcast %30 : vector<1x128xf32> to vector<32x128xf32>
    %33 = arith.mulf %31, %32 : vector<32x128xf32>
    %34 = vector.broadcast %8 : vector<32x1xf32> to vector<32x128xf32>
    %35 = vector.broadcast %3 : vector<1x128xf32> to vector<32x128xf32>
    %36 = arith.mulf %34, %35 : vector<32x128xf32>
    %37 = arith.addf %33, %36 : vector<32x128xf32>
    %38 = vector.broadcast %9 : vector<32x1xf32> to vector<32x128xf32>
    %39 = arith.addf %37, %38 : vector<32x128xf32>
    %40 = vector.broadcast %12 : vector<16x1xf32> to vector<16x8xf32>
    %41 = vector.broadcast %1 : vector<1x8xf32> to vector<16x8xf32>
    %42 = arith.mulf %40, %41 : vector<16x8xf32>
    %43 = vector.broadcast %14 : vector<16x1xf32> to vector<16x8xf32>
    %44 = arith.addf %42, %43 : vector<16x8xf32>
    %cst_26 = arith.constant dense<0.000000e+00> : vector<8x128xf32>
    %45 = tpu.matmul %2, %25, %cst_26 {dimension_numbers = #tpu.dot_dimension_numbers<[1], [0], [0], [1], [0, 0, 1, 1], [], []>} : vector<8x8xf32>, vector<8x128xf32>, vector<8x128xf32> -> vector<8x128xf32>
    %cst_27 = arith.constant dense<0.000000e+00> : vector<32x128xf32>
    %46 = tpu.matmul %7, %45, %cst_27 {dimension_numbers = #tpu.dot_dimension_numbers<[1], [0], [0], [1], [0, 0, 1, 1], [], []>} : vector<32x8xf32>, vector<8x128xf32>, vector<32x128xf32> -> vector<32x128xf32>
    %47 = arith.addf %46, %39 : vector<32x128xf32>
    %cst_28 = arith.constant 0.000000e+00 : f32
    %48 = vector.broadcast %cst_28 : f32 to vector<32x128xf32>
    %49 = arith.maximumf %47, %48 : vector<32x128xf32>
    %cst_29 = arith.constant dense<0.000000e+00> : vector<32x128xf32>
    %50 = tpu.matmul %10, %49, %cst_29 {dimension_numbers = #tpu.dot_dimension_numbers<[1], [0], [0], [1], [0, 0, 1, 1], [], []>} : vector<32x32xf32>, vector<32x128xf32>, vector<32x128xf32> -> vector<32x128xf32>
    %51 = vector.broadcast %11 : vector<32x1xf32> to vector<32x128xf32>
    %52 = arith.addf %50, %51 : vector<32x128xf32>
    %cst_30 = arith.constant 0.000000e+00 : f32
    %53 = vector.broadcast %cst_30 : f32 to vector<32x128xf32>
    %54 = arith.maximumf %52, %53 : vector<32x128xf32>
    %cst_31 = arith.constant 0.000000e+00 : f32
    %55 = vector.broadcast %cst_31 : f32 to vector<32x8xf32>
    %56 = vector.shape_cast %54 : vector<32x128xf32> to vector<32x1x128xf32>
    %57 = vector.shape_cast %29 : vector<8x128xf32> to vector<1x8x128xf32>
    %58 = vector.broadcast %56 : vector<32x1x128xf32> to vector<32x8x128xf32>
    %59 = vector.broadcast %57 : vector<1x8x128xf32> to vector<32x8x128xf32>
    %60 = arith.mulf %58, %59 : vector<32x8x128xf32>
    %cst_32 = arith.constant dense<0xFF800000> : vector<32x8xf32>
    %61 = vector.multi_reduction <maximumf>, %60, %cst_32 [2] : vector<32x8x128xf32> to vector<32x8xf32>
    %62 = arith.maximumf %55, %61 : vector<32x8xf32>
    %63 = tpu.concatenate %2, %62 in 0 : vector<8x8xf32>, vector<32x8xf32> -> vector<40x8xf32>
    %cst_33 = arith.constant dense<0.000000e+00> : vector<16x8xf32>
    %64 = tpu.matmul %13, %63, %cst_33 {dimension_numbers = #tpu.dot_dimension_numbers<[1], [0], [0], [1], [0, 0, 1, 1], [], []>} : vector<16x40xf32>, vector<40x8xf32>, vector<16x8xf32> -> vector<16x8xf32>
    %65 = arith.addf %64, %44 : vector<16x8xf32>
    %cst_34 = arith.constant 0.000000e+00 : f32
    %66 = vector.broadcast %cst_34 : f32 to vector<16x8xf32>
    %67 = arith.maximumf %65, %66 : vector<16x8xf32>
    %cst_35 = arith.constant dense<0.000000e+00> : vector<8x8xf32>
    %68 = tpu.matmul %15, %67, %cst_35 {dimension_numbers = #tpu.dot_dimension_numbers<[1], [0], [0], [1], [0, 0, 1, 1], [], []>} : vector<8x16xf32>, vector<16x8xf32>, vector<8x8xf32> -> vector<8x8xf32>
    %69 = vector.broadcast %16 : vector<8x1xf32> to vector<8x8xf32>
    %70 = arith.addf %68, %69 : vector<8x8xf32>
    %cst_36 = arith.constant 0.000000e+00 : f32
    %71 = vector.broadcast %cst_36 : f32 to vector<8x8xf32>
    %72 = arith.maximumf %70, %71 : vector<8x8xf32>
    %cst_37 = arith.constant dense<0.000000e+00> : vector<8x128xf32>
    %73 = tpu.matmul %72, %25, %cst_37 {dimension_numbers = #tpu.dot_dimension_numbers<[1], [0], [0], [1], [0, 0, 1, 1], [], []>} : vector<8x8xf32>, vector<8x128xf32>, vector<8x128xf32> -> vector<8x128xf32>
    %cst_38 = arith.constant dense<0.000000e+00> : vector<32x128xf32>
    %74 = tpu.matmul %7, %73, %cst_38 {dimension_numbers = #tpu.dot_dimension_numbers<[1], [0], [0], [1], [0, 0, 1, 1], [], []>} : vector<32x8xf32>, vector<8x128xf32>, vector<32x128xf32> -> vector<32x128xf32>
    %75 = arith.addf %74, %39 : vector<32x128xf32>
    %cst_39 = arith.constant 0.000000e+00 : f32
    %76 = vector.broadcast %cst_39 : f32 to vector<32x128xf32>
    %77 = arith.maximumf %75, %76 : vector<32x128xf32>
    %cst_40 = arith.constant dense<0.000000e+00> : vector<32x128xf32>
    %78 = tpu.matmul %10, %77, %cst_40 {dimension_numbers = #tpu.dot_dimension_numbers<[1], [0], [0], [1], [0, 0, 1, 1], [], []>} : vector<32x32xf32>, vector<32x128xf32>, vector<32x128xf32> -> vector<32x128xf32>
    %79 = vector.broadcast %11 : vector<32x1xf32> to vector<32x128xf32>
    %80 = arith.addf %78, %79 : vector<32x128xf32>
    %cst_41 = arith.constant 0.000000e+00 : f32
    %81 = vector.broadcast %cst_41 : f32 to vector<32x128xf32>
    %82 = arith.maximumf %80, %81 : vector<32x128xf32>
    %cst_42 = arith.constant 0.000000e+00 : f32
    %83 = vector.broadcast %cst_42 : f32 to vector<32x8xf32>
    %84 = vector.shape_cast %82 : vector<32x128xf32> to vector<32x1x128xf32>
    %85 = vector.shape_cast %29 : vector<8x128xf32> to vector<1x8x128xf32>
    %86 = vector.broadcast %84 : vector<32x1x128xf32> to vector<32x8x128xf32>
    %87 = vector.broadcast %85 : vector<1x8x128xf32> to vector<32x8x128xf32>
    %88 = arith.mulf %86, %87 : vector<32x8x128xf32>
    %cst_43 = arith.constant dense<0xFF800000> : vector<32x8xf32>
    %89 = vector.multi_reduction <maximumf>, %88, %cst_43 [2] : vector<32x8x128xf32> to vector<32x8xf32>
    %90 = arith.maximumf %83, %89 : vector<32x8xf32>
    %91 = tpu.concatenate %72, %90 in 0 : vector<8x8xf32>, vector<32x8xf32> -> vector<40x8xf32>
    %cst_44 = arith.constant dense<0.000000e+00> : vector<16x8xf32>
    %92 = tpu.matmul %13, %91, %cst_44 {dimension_numbers = #tpu.dot_dimension_numbers<[1], [0], [0], [1], [0, 0, 1, 1], [], []>} : vector<16x40xf32>, vector<40x8xf32>, vector<16x8xf32> -> vector<16x8xf32>
    %93 = arith.addf %92, %44 : vector<16x8xf32>
    %cst_45 = arith.constant 0.000000e+00 : f32
    %94 = vector.broadcast %cst_45 : f32 to vector<16x8xf32>
    %95 = arith.maximumf %93, %94 : vector<16x8xf32>
    %cst_46 = arith.constant dense<0.000000e+00> : vector<8x8xf32>
    %96 = tpu.matmul %15, %95, %cst_46 {dimension_numbers = #tpu.dot_dimension_numbers<[1], [0], [0], [1], [0, 0, 1, 1], [], []>} : vector<8x16xf32>, vector<16x8xf32>, vector<8x8xf32> -> vector<8x8xf32>
    %97 = vector.broadcast %16 : vector<8x1xf32> to vector<8x8xf32>
    %98 = arith.addf %96, %97 : vector<8x8xf32>
    %cst_47 = arith.constant 0.000000e+00 : f32
    %99 = vector.broadcast %cst_47 : f32 to vector<8x8xf32>
    %100 = arith.maximumf %98, %99 : vector<8x8xf32>
    %cst_48 = arith.constant dense<0.000000e+00> : vector<8x128xf32>
    %101 = tpu.matmul %100, %25, %cst_48 {dimension_numbers = #tpu.dot_dimension_numbers<[1], [0], [0], [1], [0, 0, 1, 1], [], []>} : vector<8x8xf32>, vector<8x128xf32>, vector<8x128xf32> -> vector<8x128xf32>
    %cst_49 = arith.constant dense<0.000000e+00> : vector<32x128xf32>
    %102 = tpu.matmul %7, %101, %cst_49 {dimension_numbers = #tpu.dot_dimension_numbers<[1], [0], [0], [1], [0, 0, 1, 1], [], []>} : vector<32x8xf32>, vector<8x128xf32>, vector<32x128xf32> -> vector<32x128xf32>
    %103 = arith.addf %102, %39 : vector<32x128xf32>
    %cst_50 = arith.constant 0.000000e+00 : f32
    %104 = vector.broadcast %cst_50 : f32 to vector<32x128xf32>
    %105 = arith.maximumf %103, %104 : vector<32x128xf32>
    %cst_51 = arith.constant dense<0.000000e+00> : vector<32x128xf32>
    %106 = tpu.matmul %10, %105, %cst_51 {dimension_numbers = #tpu.dot_dimension_numbers<[1], [0], [0], [1], [0, 0, 1, 1], [], []>} : vector<32x32xf32>, vector<32x128xf32>, vector<32x128xf32> -> vector<32x128xf32>
    %107 = vector.broadcast %11 : vector<32x1xf32> to vector<32x128xf32>
    %108 = arith.addf %106, %107 : vector<32x128xf32>
    %cst_52 = arith.constant 0.000000e+00 : f32
    %109 = vector.broadcast %cst_52 : f32 to vector<32x128xf32>
    %110 = arith.maximumf %108, %109 : vector<32x128xf32>
    %cst_53 = arith.constant 0.000000e+00 : f32
    %111 = vector.broadcast %cst_53 : f32 to vector<32x8xf32>
    %112 = vector.shape_cast %110 : vector<32x128xf32> to vector<32x1x128xf32>
    %113 = vector.shape_cast %29 : vector<8x128xf32> to vector<1x8x128xf32>
    %114 = vector.broadcast %112 : vector<32x1x128xf32> to vector<32x8x128xf32>
    %115 = vector.broadcast %113 : vector<1x8x128xf32> to vector<32x8x128xf32>
    %116 = arith.mulf %114, %115 : vector<32x8x128xf32>
    %cst_54 = arith.constant dense<0xFF800000> : vector<32x8xf32>
    %117 = vector.multi_reduction <maximumf>, %116, %cst_54 [2] : vector<32x8x128xf32> to vector<32x8xf32>
    %118 = arith.maximumf %111, %117 : vector<32x8xf32>
    %119 = tpu.concatenate %100, %118 in 0 : vector<8x8xf32>, vector<32x8xf32> -> vector<40x8xf32>
    %cst_55 = arith.constant dense<0.000000e+00> : vector<16x8xf32>
    %120 = tpu.matmul %13, %119, %cst_55 {dimension_numbers = #tpu.dot_dimension_numbers<[1], [0], [0], [1], [0, 0, 1, 1], [], []>} : vector<16x40xf32>, vector<40x8xf32>, vector<16x8xf32> -> vector<16x8xf32>
    %121 = arith.addf %120, %44 : vector<16x8xf32>
    %cst_56 = arith.constant 0.000000e+00 : f32
    %122 = vector.broadcast %cst_56 : f32 to vector<16x8xf32>
    %123 = arith.maximumf %121, %122 : vector<16x8xf32>
    %cst_57 = arith.constant dense<0.000000e+00> : vector<8x8xf32>
    %124 = tpu.matmul %15, %123, %cst_57 {dimension_numbers = #tpu.dot_dimension_numbers<[1], [0], [0], [1], [0, 0, 1, 1], [], []>} : vector<8x16xf32>, vector<16x8xf32>, vector<8x8xf32> -> vector<8x8xf32>
    %125 = vector.broadcast %16 : vector<8x1xf32> to vector<8x8xf32>
    %126 = arith.addf %124, %125 : vector<8x8xf32>
    %cst_58 = arith.constant 0.000000e+00 : f32
    %127 = vector.broadcast %cst_58 : f32 to vector<8x8xf32>
    %128 = arith.maximumf %126, %127 : vector<8x8xf32>
    %cst_59 = arith.constant dense<0.000000e+00> : vector<16x8xf32>
    %129 = tpu.matmul %17, %128, %cst_59 {dimension_numbers = #tpu.dot_dimension_numbers<[1], [0], [0], [1], [0, 0, 1, 1], [], []>} : vector<16x8xf32>, vector<8x8xf32>, vector<16x8xf32> -> vector<16x8xf32>
    %130 = vector.broadcast %18 : vector<16x1xf32> to vector<16x8xf32>
    %131 = arith.addf %129, %130 : vector<16x8xf32>
    %cst_60 = arith.constant 0.000000e+00 : f32
    %132 = vector.broadcast %cst_60 : f32 to vector<16x8xf32>
    %133 = arith.maximumf %131, %132 : vector<16x8xf32>
    %cst_61 = arith.constant dense<0.000000e+00> : vector<1x8xf32>
    %134 = tpu.matmul %19, %133, %cst_61 {dimension_numbers = #tpu.dot_dimension_numbers<[1], [0], [0], [1], [0, 0, 1, 1], [], []>} : vector<1x16xf32>, vector<16x8xf32>, vector<1x8xf32> -> vector<1x8xf32>
    %135 = vector.broadcast %20 : vector<1x1xf32> to vector<1x8xf32>
    %136 = arith.addf %134, %135 : vector<1x8xf32>
    %cst_62 = arith.constant 0.000000e+00 : f32
    %137 = vector.broadcast %cst_62 : f32 to vector<1x8xf32>
    %138 = arith.subf %137, %136 : vector<1x8xf32>
    %139 = math.exp %138 : vector<1x8xf32>
    %cst_63 = arith.constant 1.000000e+00 : f32
    %140 = vector.broadcast %cst_63 : f32 to vector<1x8xf32>
    %141 = arith.addf %140, %139 : vector<1x8xf32>
    %142 = tpu.reciprocal %141 : vector<1x8xf32> -> vector<1x8xf32>
    %c0_64 = arith.constant 0 : index
    %c0_65 = arith.constant 0 : index
    %143 = vector.load %arg5[%c0_64, %c0_65] : memref<1x8xf32, #tpu.memory_space<vmem>>, vector<1x8xf32>
    tpu.vector_store %arg5[%c0_64, %c0_65], %142 {strides = array<i32>} : memref<1x8xf32, #tpu.memory_space<vmem>>, vector<1x8xf32>,
    return
  }
}

</mosaic_0001>

<llo_original>
// kernel: mpnn_forward.1
$region0: #{mpnn_forward.1}
  #allocation0 [shape = 'u32[]', space=smem, size = 0x4, offset = 0x4, fixed_abs, tag = 'smem constant byte address 0x4 - core index']
  #allocation1 [shape = 'u32[144,128]{1,0:T(1,128)}', space=vmem, size = 0x12000, scoped, tag = 'internal scratch']
  %s0 = inlined_call_operand.vmem [shape: f32[9,8], index: 0, kind: input, shape index: {}]
  %s1 = inlined_call_operand.vmem [shape: f32[1,128], index: 1, kind: input, shape index: {}]
  %s2 = inlined_call_operand.vmem [shape: s32[1,128], index: 2, kind: input, shape index: {}]
  %s3 = inlined_call_operand.vmem [shape: s32[1,128], index: 3, kind: input, shape index: {}]
  %s4 = inlined_call_operand.vmem [shape: f32[105,48], index: 4, kind: input, shape index: {}]
  %s5 = inlined_call_operand.hbm [shape: f32[1,8], index: 5, kind: output, shape index: {}]
  %s6 = sld [smem:[#allocation0]]
  $region30: #{mpnn_forward.1} parent=0
    _
  %s8 = ssub.s32 1, %s6
  %s9 = scalar_select 0, %s8, %s6
  $region1: #{mpnn_forward.1} parent=0
    #allocation2 [shape = 'u8[512]{0}', space=vmem, size = 0x400, scoped, tag = 'output window, operand 0, single buffered']
    #allocation3 [shape = 's32[1]{0}', space=sflag, size = 0x4, scoped, tag = 'scoped memory for mpnn_forward.1']
    %10 = vsyncpa [#allocation3], 0
    // Predicated region
    $region2: #{mpnn_forward.1} parent=1 // pred_check
      _
    $region3: #{mpnn_forward.1} parent=1 // pred_check_branch
      %12 = sbr.rel (0) target = $region5
    $region4: #{mpnn_forward.1} parent=1 // pred_region
      _
    $region5: #{mpnn_forward.1} parent=1 // pred_fallthru
      _
    // Predicated region
    $region6: #{mpnn_forward.1} parent=1 // pred_check
      _
    $region7: #{mpnn_forward.1} parent=1 // pred_check_branch
      %14 = sbr.rel (0) target = $region9
    $region8: #{mpnn_forward.1} parent=1 // pred_region
      _
    $region9: #{mpnn_forward.1} parent=1 // pred_fallthru
      _
    // Predicated region
    $region10: #{mpnn_forward.1} parent=1 // pred_check
      _
    $region11: #{mpnn_forward.1} parent=1 // pred_check_branch
      %16 = sbr.rel (0) target = $region13
    $region12: #{mpnn_forward.1} parent=1 // pred_region
      _
    $region13: #{mpnn_forward.1} parent=1 // pred_fallthru
      _
    // Predicated region
    $region14: #{mpnn_forward.1} parent=1 // pred_check
      _
    $region15: #{mpnn_forward.1} parent=1 // pred_check_branch
      %18 = sbr.rel (0) target = $region17
    $region16: #{mpnn_forward.1} parent=1 // pred_region
      _
    $region17: #{mpnn_forward.1} parent=1 // pred_fallthru
      _
    // Predicated region
    $region18: #{mpnn_forward.1} parent=1 // pred_check
      _
    $region19: #{mpnn_forward.1} parent=1 // pred_check_branch
      %20 = sbr.rel (0) target = $region21
    $region20: #{mpnn_forward.1} parent=1 // pred_region
      _
    $region21: #{mpnn_forward.1} parent=1 // pred_fallthru
      _
    %v21 = vld [vmem:[%s0] sm:$0xff]
    %v22 = vld [vmem:[%s0 + $0x8] sm:$0x1]
    %v23 = vld [vmem:[%s1] sm:$0x1]
    %v24 = vld [vmem:[%s2] sm:$0x1]
    %v25 = vld [vmem:[%s3] sm:$0x1]
    %v26 = vld [vmem:[%s4] sm:$0xff]
    %v27 = vld [vmem:[%s4 + $0x8] sm:$0xff]
    %v28 = vld [vmem:[%s4 + $0x10] sm:$0xff]
    %v29 = vld [vmem:[%s4 + $0x18] sm:$0xff]
    %v30 = vld [vmem:[%s4 + $0x20] sm:$0xff]
    %v31 = vld [vmem:[%s4 + $0x28] sm:$0xff]
    %v32 = vld [vmem:[%s4 + $0x30] sm:$0xff]
    %v33 = vld [vmem:[%s4 + $0x38] sm:$0xff]
    %v34 = vld [vmem:[%s4 + $0x40] sm:$0xff]
    %v35 = vld [vmem:[%s4 + $0x48] sm:$0xff]
    %v36 = vld [vmem:[%s4 + $0x50] sm:$0xff]
    %v37 = vld [vmem:[%s4 + $0x58] sm:$0xff]
    %v38 = vld [vmem:[%s4 + $0x60] sm:$0xff]
    %v39 = vld [vmem:[%s4 + $0x68] sm:$0x1]
    %v40 = vlaneseq
    %v41 = vshrl.u32 %v40, 7
    %v42 = vlaneseq
    %v43 = vshrl.u32 %v42, 7
    %v44 = vsub.s32 0, %v43
    %v45 = vrot.slane %v24, %v44
    %vm46 = vcmp.eq.s32.totalorder %v41, %v45
    %v47 = vsel %vm46, 1, 0
    %v48 = vcvt.s32.f32 %v47
    %v49 = vlaneseq
    %v50 = vshrl.u32 %v49, 7
    %v51 = vsub.s32 0, %v50
    %v52 = vrot.slane %v25, %v51
    %vm53 = vcmp.eq.s32.totalorder %v41, %v52
    %v54 = vsel %vm53, 1, 0
    %v55 = vcvt.s32.f32 %v54
    %vm56 = vcmask 64512
    %v58 = vsel %vm56, %v21, 0
    %60 = vmatprep.subr.mxu0 0.0
    %61 = vmatpush1.msra.mxu0 %v48
    %62 = vmatprep.subr.mxu0 0.0
    %63 = vmatpush1.msra.mxu0 0.0
    %64 = vmatprep.subr.mxu0 0.0
    %65 = vmatpush1.msra.mxu0 0.0
    %66 = vmatprep.subr.mxu0 0.0
    %67 = vmatpush1.msra.mxu0 0.0
    %68 = vmatprep.subr.mxu0 0.0
    %69 = vmatpush1.msra.mxu0 0.0
    %70 = vmatprep.subr.mxu0 0.0
    %71 = vmatpush1.msra.mxu0 0.0
    %72 = vmatprep.subr.mxu0 0.0
    %73 = vmatpush1.msra.mxu0 0.0
    %74 = vmatprep.subr.mxu0 0.0
    %75 = vmatpush1.msra.mxu0 0.0
    %76 = vmatprep.subr.mxu0 0.0
    %77 = vmatpush1.msra.mxu0 0.0
    %78 = vmatprep.subr.mxu0 0.0
    %79 = vmatpush1.msra.mxu0 0.0
    %80 = vmatprep.subr.mxu0 0.0
    %81 = vmatpush1.msra.mxu0 0.0
    %82 = vmatprep.subr.mxu0 0.0
    %83 = vmatpush1.msra.mxu0 0.0
    %84 = vmatprep.subr.mxu0 0.0
    %85 = vmatpush1.msra.mxu0 0.0
    %86 = vmatprep.subr.mxu0 0.0
    %87 = vmatpush1.msra.mxu0 0.0
    %88 = vmatprep.subr.mxu0 0.0
    %89 = vmatpush1.msra.mxu0 0.0
    %90 = vmatprep.subr.mxu0 0.0
    %91 = vmatpush1.msra.mxu0 0.0
    %92 = vmatprep.subr.mxu0 0.0
    %93 = vmatpush1.msra.mxu0 0.0
    %94 = vmatprep.subr.mxu0 0.0
    %95 = vmatpush1.msra.mxu0 0.0
    %96 = vmatprep.subr.mxu0 0.0
    %97 = vmatpush1.msra.mxu0 0.0
    %98 = vmatprep.subr.mxu0 0.0
    %99 = vmatpush1.msra.mxu0 0.0
    %100 = vmatprep.subr.mxu0 0.0
    %101 = vmatpush1.msra.mxu0 0.0
    %102 = vmatprep.subr.mxu0 0.0
    %103 = vmatpush1.msra.mxu0 0.0
    %104 = vmatprep.subr.mxu0 0.0
    %105 = vmatpush1.msra.mxu0 0.0
    %106 = vmatprep.subr.mxu0 0.0
    %107 = vmatpush1.msra.mxu0 0.0
    %108 = vmatprep.subr.mxu0 0.0
    %109 = vmatpush1.msra.mxu0 0.0
    %110 = vmatprep.subr.mxu0 0.0
    %111 = vmatpush1.msra.mxu0 0.0
    %112 = vmatprep.subr.mxu0 0.0
    %113 = vmatpush1.msra.mxu0 0.0
    %114 = vmatprep.subr.mxu0 0.0
    %115 = vmatpush1.msra.mxu0 0.0
    %116 = vmatprep.subr.mxu0 0.0
    %117 = vmatpush1.msra.mxu0 0.0
    %118 = vmatprep.subr.mxu0 0.0
    %119 = vmatpush1.msra.mxu0 0.0
    %120 = vmatprep.subr.mxu0 0.0
    %121 = vmatpush1.msra.mxu0 0.0
    %122 = vmatprep.subr.mxu0 0.0
    %123 = vmatpush1.msra.mxu0 0.0
    %124 = vmatprep.mubr.f32.mxu0 0.0
    %125 = vmatmul.mubr.f32.gmra.mrb[0].mxu0 %v58
    %v126 = vpop.f32.mrb[0].mxu0
    %v127 = vadd.f32 0.0, %v126
    %v128 = vpop.f32.mrb[0].mxu0
    %129 = vdwg.mxu0
    %131 = vset.pattern.permute.xlu0 0
    %132 = vperm.xlu0 %131, %v26
    %v133 = vpop.permute.xlu0 %132
    %136 = vset.pattern.permute.xlu0 0
    %137 = vperm.xlu0 %136, %v27
    %v138 = vpop.permute.xlu0 %137
    %141 = vset.pattern.permute.xlu0 0
    %142 = vperm.xlu0 %141, %v28
    %v143 = vpop.permute.xlu0 %142
    %146 = vset.pattern.permute.xlu0 0
    %147 = vperm.xlu0 %146, %v29
    %v148 = vpop.permute.xlu0 %147
    %v150 = vlaneseq
    %v151 = vshrl.u32 %v150, 7
    %v152 = vsub.s32 0, %v151
    %v153 = vrot.slane %v127, %v152
    %v154 = vmul.f32 %v133, %v153
    %v155 = vmul.f32 %v138, %v153
    %v156 = vmul.f32 %v143, %v153
    %v157 = vmul.f32 %v148, %v153
    %158 = vset.pattern.permute.xlu0 9
    %159 = vperm.xlu0 %158, %v26
    %v160 = vpop.permute.xlu0 %159
    %162 = vset.pattern.permute.xlu0 9
    %163 = vperm.xlu0 %162, %v27
    %v164 = vpop.permute.xlu0 %163
    %166 = vset.pattern.permute.xlu0 9
    %167 = vperm.xlu0 %166, %v28
    %v168 = vpop.permute.xlu0 %167
    %170 = vset.pattern.permute.xlu0 9
    %171 = vperm.xlu0 %170, %v29
    %v172 = vpop.permute.xlu0 %171
    %v175 = vlaneseq
    %v176 = vshrl.u32 %v175, 7
    %v177 = vsub.s32 0, %v176
    %v178 = vrot.slane %v23, %v177
    %v180 = vmul.f32 %v160, %v178
    %v181 = vmul.f32 %v164, %v178
    %v182 = vmul.f32 %v168, %v178
    %v183 = vmul.f32 %v172, %v178
    %v184 = vadd.f32 %v154, %v180
    %v185 = vadd.f32 %v155, %v181
    %v186 = vadd.f32 %v156, %v182
    %v187 = vadd.f32 %v157, %v183
    %188 = vset.pattern.permute.xlu0 10
    %189 = vperm.xlu0 %188, %v26
    %v190 = vpop.permute.xlu0 %189
    %192 = vset.pattern.permute.xlu0 10
    %193 = vperm.xlu0 %192, %v27
    %v194 = vpop.permute.xlu0 %193
    %196 = vset.pattern.permute.xlu0 10
    %197 = vperm.xlu0 %196, %v28
    %v198 = vpop.permute.xlu0 %197
    %200 = vset.pattern.permute.xlu0 10
    %201 = vperm.xlu0 %200, %v29
    %v202 = vpop.permute.xlu0 %201
    %v204 = vadd.f32 %v184, %v190
    %v205 = vadd.f32 %v185, %v194
    %v206 = vadd.f32 %v186, %v198
    %v207 = vadd.f32 %v187, %v202
    %209 = vset.pattern.permute.xlu0 0
    %210 = vperm.xlu0 %209, %v34
    %v211 = vpop.permute.xlu0 %210
    %214 = vset.pattern.permute.xlu0 0
    %215 = vperm.xlu0 %214, %v35
    %v216 = vpop.permute.xlu0 %215
    %v218 = vlaneseq
    %v219 = vshrl.u32 %v218, 7
    %v220 = vsub.s32 0, %v219
    %v221 = vrot.slane %v21, %v220
    %v222 = vmul.f32 %v211, %v221
    %v223 = vmul.f32 %v216, %v221
    %224 = vset.pattern.permute.xlu0 41
    %225 = vperm.xlu0 %224, %v34
    %v226 = vpop.permute.xlu0 %225
    %228 = vset.pattern.permute.xlu0 41
    %229 = vperm.xlu0 %228, %v35
    %v230 = vpop.permute.xlu0 %229
    %v232 = vadd.f32 %v222, %v226
    %v233 = vadd.f32 %v223, %v230
    %vm235 = vcmask 1046528
    %v236 = vrot.slane %v21, 1
    %v237 = vrot.slane %v22, 1
    %v238 = vsel %vm235, %v236, %v237
    %v239 = vsel %vm56, %v238, 0
    %241 = vmatprep.subr.mxu0 0.0
    %242 = vmatpush1.msra.mxu0 %v48
    %243 = vmatprep.subr.mxu0 0.0
    %244 = vmatpush1.msra.mxu0 0.0
    %245 = vmatprep.subr.mxu0 0.0
    %246 = vmatpush1.msra.mxu0 0.0
    %247 = vmatprep.subr.mxu0 0.0
    %248 = vmatpush1.msra.mxu0 0.0
    %249 = vmatprep.subr.mxu0 0.0
    %250 = vmatpush1.msra.mxu0 0.0
    %251 = vmatprep.subr.mxu0 0.0
    %252 = vmatpush1.msra.mxu0 0.0
    %253 = vmatprep.subr.mxu0 0.0
    %254 = vmatpush1.msra.mxu0 0.0
    %255 = vmatprep.subr.mxu0 0.0
    %256 = vmatpush1.msra.mxu0 0.0
    %257 = vmatprep.subr.mxu0 0.0
    %258 = vmatpush1.msra.mxu0 0.0
    %259 = vmatprep.subr.mxu0 0.0
    %260 = vmatpush1.msra.mxu0 0.0
    %261 = vmatprep.subr.mxu0 0.0
    %262 = vmatpush1.msra.mxu0 0.0
    %263 = vmatprep.subr.mxu0 0.0
    %264 = vmatpush1.msra.mxu0 0.0
    %265 = vmatprep.subr.mxu0 0.0
    %266 = vmatpush1.msra.mxu0 0.0
    %267 = vmatprep.subr.mxu0 0.0
    %268 = vmatpush1.msra.mxu0 0.0
    %269 = vmatprep.subr.mxu0 0.0
    %270 = vmatpush1.msra.mxu0 0.0
    %271 = vmatprep.subr.mxu0 0.0
    %272 = vmatpush1.msra.mxu0 0.0
    %273 = vmatprep.subr.mxu0 0.0
    %274 = vmatpush1.msra.mxu0 0.0
    %275 = vmatprep.subr.mxu0 0.0
    %276 = vmatpush1.msra.mxu0 0.0
    %277 = vmatprep.subr.mxu0 0.0
    %278 = vmatpush1.msra.mxu0 0.0
    %279 = vmatprep.subr.mxu0 0.0
    %280 = vmatpush1.msra.mxu0 0.0
    %281 = vmatprep.subr.mxu0 0.0
    %282 = vmatpush1.msra.mxu0 0.0
    %283 = vmatprep.subr.mxu0 0.0
    %284 = vmatpush1.msra.mxu0 0.0
    %285 = vmatprep.subr.mxu0 0.0
    %286 = vmatpush1.msra.mxu0 0.0
    %287 = vmatprep.subr.mxu0 0.0
    %288 = vmatpush1.msra.mxu0 0.0
    %289 = vmatprep.subr.mxu0 0.0
    %290 = vmatpush1.msra.mxu0 0.0
    %291 = vmatprep.subr.mxu0 0.0
    %292 = vmatpush1.msra.mxu0 0.0
    %293 = vmatprep.subr.mxu0 0.0
    %294 = vmatpush1.msra.mxu0 0.0
    %295 = vmatprep.subr.mxu0 0.0
    %296 = vmatpush1.msra.mxu0 0.0
    %297 = vmatprep.subr.mxu0 0.0
    %298 = vmatpush1.msra.mxu0 0.0
    %299 = vmatprep.subr.mxu0 0.0
    %300 = vmatpush1.msra.mxu0 0.0
    %301 = vmatprep.subr.mxu0 0.0
    %302 = vmatpush1.msra.mxu0 0.0
    %303 = vmatprep.subr.mxu0 0.0
    %304 = vmatpush1.msra.mxu0 0.0
    %305 = vmatprep.mubr.f32.mxu0 0.0
    %306 = vmatmul.mubr.f32.gmra.mrb[0].mxu0 %v239
    %v307 = vpop.f32.mrb[0].mxu0
    %v308 = vadd.f32 0.0, %v307
    %v309 = vpop.f32.mrb[0].mxu0
    %310 = vdwg.mxu0
    %311 = vrot.lane.b32.xlu0 %v26, 127
    %v312 = vpop.permute.xlu0 %311
    %313 = vrot.lane.b32.xlu0 %v27, 127
    %v314 = vpop.permute.xlu0 %313
    %315 = vrot.lane.b32.xlu0 %v28, 127
    %v316 = vpop.permute.xlu0 %315
    %317 = vrot.lane.b32.xlu0 %v29, 127
    %v318 = vpop.permute.xlu0 %317
    %v319 = vsel %vm56, %v312, 0
    %v321 = vsel %vm56, %v314, 0
    %v323 = vsel %vm56, %v316, 0
    %v325 = vsel %vm56, %v318, 0
    %327 = vmatprep.subr.mxu0 0.0
    %328 = vmatpush1.msra.mxu0 %v308
    %329 = vmatprep.subr.mxu0 0.0
    %330 = vmatpush1.msra.mxu0 0.0
    %331 = vmatprep.subr.mxu0 0.0
    %332 = vmatpush1.msra.mxu0 0.0
    %333 = vmatprep.subr.mxu0 0.0
    %334 = vmatpush1.msra.mxu0 0.0
    %335 = vmatprep.subr.mxu0 0.0
    %336 = vmatpush1.msra.mxu0 0.0
    %337 = vmatprep.subr.mxu0 0.0
    %338 = vmatpush1.msra.mxu0 0.0
    %339 = vmatprep.subr.mxu0 0.0
    %340 = vmatpush1.msra.mxu0 0.0
    %341 = vmatprep.subr.mxu0 0.0
    %342 = vmatpush1.msra.mxu0 0.0
    %343 = vmatprep.subr.mxu0 0.0
    %344 = vmatpush1.msra.mxu0 0.0
    %345 = vmatprep.subr.mxu0 0.0
    %346 = vmatpush1.msra.mxu0 0.0
    %347 = vmatprep.subr.mxu0 0.0
    %348 = vmatpush1.msra.mxu0 0.0
    %349 = vmatprep.subr.mxu0 0.0
    %350 = vmatpush1.msra.mxu0 0.0
    %351 = vmatprep.subr.mxu0 0.0
    %352 = vmatpush1.msra.mxu0 0.0
    %353 = vmatprep.subr.mxu0 0.0
    %354 = vmatpush1.msra.mxu0 0.0
    %355 = vmatprep.subr.mxu0 0.0
    %356 = vmatpush1.msra.mxu0 0.0
    %357 = vmatprep.subr.mxu0 0.0
    %358 = vmatpush1.msra.mxu0 0.0
    %359 = vmatprep.subr.mxu0 0.0
    %360 = vmatpush1.msra.mxu0 0.0
    %361 = vmatprep.subr.mxu0 0.0
    %362 = vmatpush1.msra.mxu0 0.0
    %363 = vmatprep.subr.mxu0 0.0
    %364 = vmatpush1.msra.mxu0 0.0
    %365 = vmatprep.subr.mxu0 0.0
    %366 = vmatpush1.msra.mxu0 0.0
    %367 = vmatprep.subr.mxu0 0.0
    %368 = vmatpush1.msra.mxu0 0.0
    %369 = vmatprep.subr.mxu0 0.0
    %370 = vmatpush1.msra.mxu0 0.0
    %371 = vmatprep.subr.mxu0 0.0
    %372 = vmatpush1.msra.mxu0 0.0
    %373 = vmatprep.subr.mxu0 0.0
    %374 = vmatpush1.msra.mxu0 0.0
    %375 = vmatprep.subr.mxu0 0.0
    %376 = vmatpush1.msra.mxu0 0.0
    %377 = vmatprep.subr.mxu0 0.0
    %378 = vmatpush1.msra.mxu0 0.0
    %379 = vmatprep.subr.mxu0 0.0
    %380 = vmatpush1.msra.mxu0 0.0
    %381 = vmatprep.subr.mxu0 0.0
    %382 = vmatpush1.msra.mxu0 0.0
    %383 = vmatprep.subr.mxu0 0.0
    %384 = vmatpush1.msra.mxu0 0.0
    %385 = vmatprep.subr.mxu0 0.0
    %386 = vmatpush1.msra.mxu0 0.0
    %387 = vmatprep.subr.mxu0 0.0
    %388 = vmatpush1.msra.mxu0 0.0
    %389 = vmatprep.subr.mxu0 0.0
    %390 = vmatpush1.msra.mxu0 0.0
    %391 = vmatprep.mubr.f32.mxu0 0.0
    %392 = vmatmul.mubr.f32.gmra.mrb[0].mxu0 %v319
    %v393 = vpop.f32.mrb[0].mxu0
    %v394 = vadd.f32 %v204, %v393
    %v395 = vpop.f32.mrb[0].mxu0
    %396 = vmatprep.mubr.f32.mxu0 0.0
    %397 = vmatmul.mubr.f32.gmra.mrb[0].mxu0 %v321
    %v398 = vpop.f32.mrb[0].mxu0
    %v399 = vadd.f32 %v205, %v398
    %v400 = vpop.f32.mrb[0].mxu0
    %401 = vmatprep.mubr.f32.mxu0 0.0
    %402 = vmatmul.mubr.f32.gmra.mrb[0].mxu0 %v323
    %v403 = vpop.f32.mrb[0].mxu0
    %v404 = vadd.f32 %v206, %v403
    %v405 = vpop.f32.mrb[0].mxu0
    %406 = vmatprep.mubr.f32.mxu0 0.0
    %407 = vmatmul.mubr.f32.gmra.mrb[0].mxu0 %v325
    %v408 = vpop.f32.mrb[0].mxu0
    %v409 = vadd.f32 %v207, %v408
    %v410 = vpop.f32.mrb[0].mxu0
    %411 = vdwg.mxu0
    %v412 = vmax.f32 %v394, 0.0
    %v413 = vmax.f32 %v399, 0.0
    %v414 = vmax.f32 %v404, 0.0
    %v415 = vmax.f32 %v409, 0.0
    %417 = vset.pattern.permute.xlu0 32
    %418 = vperm.xlu0 %417, %v30
    %v419 = vpop.permute.xlu0 %418
    %422 = vset.pattern.permute.xlu0 32
    %423 = vperm.xlu0 %422, %v31
    %v424 = vpop.permute.xlu0 %423
    %427 = vset.pattern.permute.xlu0 32
    %428 = vperm.xlu0 %427, %v32
    %v429 = vpop.permute.xlu0 %428
    %432 = vset.pattern.permute.xlu0 32
    %433 = vperm.xlu0 %432, %v33
    %v434 = vpop.permute.xlu0 %433
    %vm436 = vcmask 261120
    %v437 = vsel %vm436, %v30, 0
    %v439 = vsel %vm436, %v31, 0
    %v441 = vsel %vm436, %v32, 0
    %v443 = vsel %vm436, %v33, 0
    %445 = vmatprep.subr.mxu0 0.0
    %446 = vmatpush1.msra.mxu0 %v412
    %447 = vmatprep.subr.mxu0 0.0
    %448 = vmatpush1.msra.mxu0 %v413
    %449 = vmatprep.subr.mxu0 0.0
    %450 = vmatpush1.msra.mxu0 %v414
    %451 = vmatprep.subr.mxu0 0.0
    %452 = vmatpush1.msra.mxu0 %v415
    %453 = vmatprep.subr.mxu0 0.0
    %454 = vmatpush1.msra.mxu0 0.0
    %455 = vmatprep.subr.mxu0 0.0
    %456 = vmatpush1.msra.mxu0 0.0
    %457 = vmatprep.subr.mxu0 0.0
    %458 = vmatpush1.msra.mxu0 0.0
    %459 = vmatprep.subr.mxu0 0.0
    %460 = vmatpush1.msra.mxu0 0.0
    %461 = vmatprep.subr.mxu0 0.0
    %462 = vmatpush1.msra.mxu0 0.0
    %463 = vmatprep.subr.mxu0 0.0
    %464 = vmatpush1.msra.mxu0 0.0
    %465 = vmatprep.subr.mxu0 0.0
    %466 = vmatpush1.msra.mxu0 0.0
    %467 = vmatprep.subr.mxu0 0.0
    %468 = vmatpush1.msra.mxu0 0.0
    %469 = vmatprep.subr.mxu0 0.0
    %470 = vmatpush1.msra.mxu0 0.0
    %471 = vmatprep.subr.mxu0 0.0
    %472 = vmatpush1.msra.mxu0 0.0
    %473 = vmatprep.subr.mxu0 0.0
    %474 = vmatpush1.msra.mxu0 0.0
    %475 = vmatprep.subr.mxu0 0.0
    %476 = vmatpush1.msra.mxu0 0.0
    %477 = vmatprep.subr.mxu0 0.0
    %478 = vmatpush1.msra.mxu0 0.0
    %479 = vmatprep.subr.mxu0 0.0
    %480 = vmatpush1.msra.mxu0 0.0
    %481 = vmatprep.subr.mxu0 0.0
    %482 = vmatpush1.msra.mxu0 0.0
    %483 = vmatprep.subr.mxu0 0.0
    %484 = vmatpush1.msra.mxu0 0.0
    %485 = vmatprep.subr.mxu0 0.0
    %486 = vmatpush1.msra.mxu0 0.0
    %487 = vmatprep.subr.mxu0 0.0
    %488 = vmatpush1.msra.mxu0 0.0
    %489 = vmatprep.subr.mxu0 0.0
    %490 = vmatpush1.msra.mxu0 0.0
    %491 = vmatprep.subr.mxu0 0.0
    %492 = vmatpush1.msra.mxu0 0.0
    %493 = vmatprep.subr.mxu0 0.0
    %494 = vmatpush1.msra.mxu0 0.0
    %495 = vmatprep.subr.mxu0 0.0
    %496 = vmatpush1.msra.mxu0 0.0
    %497 = vmatprep.subr.mxu0 0.0
    %498 = vmatpush1.msra.mxu0 0.0
    %499 = vmatprep.subr.mxu0 0.0
    %500 = vmatpush1.msra.mxu0 0.0
    %501 = vmatprep.subr.mxu0 0.0
    %502 = vmatpush1.msra.mxu0 0.0
    %503 = vmatprep.subr.mxu0 0.0
    %504 = vmatpush1.msra.mxu0 0.0
    %505 = vmatprep.subr.mxu0 0.0
    %506 = vmatpush1.msra.mxu0 0.0
    %507 = vmatprep.subr.mxu0 0.0
    %508 = vmatpush1.msra.mxu0 0.0
    %509 = vmatprep.mubr.f32.mxu0 0.0
    %510 = vmatmul.mubr.f32.gmra.mrb[0].mxu0 %v437
    %v511 = vpop.f32.mrb[0].mxu0
    %v512 = vadd.f32 %v419, %v511
    %v513 = vpop.f32.mrb[0].mxu0
    %514 = vmatprep.mubr.f32.mxu0 0.0
    %515 = vmatmul.mubr.f32.gmra.mrb[0].mxu0 %v439
    %v516 = vpop.f32.mrb[0].mxu0
    %v517 = vadd.f32 %v424, %v516
    %v518 = vpop.f32.mrb[0].mxu0
    %519 = vmatprep.mubr.f32.mxu0 0.0
    %520 = vmatmul.mubr.f32.gmra.mrb[0].mxu0 %v441
    %v521 = vpop.f32.mrb[0].mxu0
    %v522 = vadd.f32 %v429, %v521
    %v523 = vpop.f32.mrb[0].mxu0
    %524 = vmatprep.mubr.f32.mxu0 0.0
    %525 = vmatmul.mubr.f32.gmra.mrb[0].mxu0 %v443
    %v526 = vpop.f32.mrb[0].mxu0
    %v527 = vadd.f32 %v434, %v526
    %v528 = vpop.f32.mrb[0].mxu0
    %529 = vdwg.mxu0
    %v530 = vmax.f32 %v512, 0.0
    %v531 = vmax.f32 %v517, 0.0
    %v532 = vmax.f32 %v522, 0.0
    %v533 = vmax.f32 %v527, 0.0
    %v538 = vcombine.high %v530, %v530
    %v540 = vunpack.c.l.s4 1966171168
    %v541 = vunpack.c.0.s8 %v540
    %v542 = vlaneseq
    %v543 = vshrl.u32 %v542, 7
    %v544 = vsub.s32 %v541, %v543
    %v545 = vrot.slane %v530, %v544
    %v547 = vunpack.c.l.s4 1966171168
    %v548 = vunpack.c.0.s8 %v547
    %v549 = vlaneseq
    %v550 = vshrl.u32 %v549, 7
    %v551 = vsub.s32 %v548, %v550
    %v552 = vrot.slane %v538, %v551
    %v553 = vcombine.high %v545, %v545
    %v554 = vcombine.high %v552, %v552
    %v556 = vunpack.c.l.s4 1966171168
    %v557 = vunpack.c.0.s8 %v556
    %v558 = vlaneseq
    %v559 = vshrl.u32 %v558, 7
    %v560 = vsub.s32 %v557, %v559
    %v561 = vrot.slane %v545, %v560
    %v563 = vunpack.c.l.s4 1966171168
    %v564 = vunpack.c.0.s8 %v563
    %v565 = vlaneseq
    %v566 = vshrl.u32 %v565, 7
    %v567 = vsub.s32 %v564, %v566
    %v568 = vrot.slane %v552, %v567
    %v570 = vunpack.c.l.s4 1966171168
    %v571 = vunpack.c.0.s8 %v570
    %v572 = vlaneseq
    %v573 = vshrl.u32 %v572, 7
    %v574 = vsub.s32 %v571, %v573
    %v575 = vrot.slane %v553, %v574
    %v577 = vunpack.c.l.s4 1966171168
    %v578 = vunpack.c.0.s8 %v577
    %v579 = vlaneseq
    %v580 = vshrl.u32 %v579, 7
    %v581 = vsub.s32 %v578, %v580
    %v582 = vrot.slane %v554, %v581
    %v583 = vcombine.high %v561, %v561
    %v584 = vcombine.high %v568, %v568
    %v585 = vcombine.high %v575, %v575
    %v586 = vcombine.high %v582, %v582
    %v587 = vcombine.high %v531, %v531
    %v589 = vunpack.c.l.s4 1966171168
    %v590 = vunpack.c.0.s8 %v589
    %v591 = vlaneseq
    %v592 = vshrl.u32 %v591, 7
    %v593 = vsub.s32 %v590, %v592
    %v594 = vrot.slane %v531, %v593
    %v596 = vunpack.c.l.s4 1966171168
    %v597 = vunpack.c.0.s8 %v596
    %v598 = vlaneseq
    %v599 = vshrl.u32 %v598, 7
    %v600 = vsub.s32 %v597, %v599
    %v601 = vrot.slane %v587, %v600
    %v602 = vcombine.high %v594, %v594
    %v603 = vcombine.high %v601, %v601
    %v605 = vunpack.c.l.s4 1966171168
    %v606 = vunpack.c.0.s8 %v605
    %v607 = vlaneseq
    %v608 = vshrl.u32 %v607, 7
    %v609 = vsub.s32 %v606, %v608
    %v610 = vrot.slane %v594, %v609
    %v612 = vunpack.c.l.s4 1966171168
    %v613 = vunpack.c.0.s8 %v612
    %v614 = vlaneseq
    %v615 = vshrl.u32 %v614, 7
    %v616 = vsub.s32 %v613, %v615
    %v617 = vrot.slane %v601, %v616
    %v619 = vunpack.c.l.s4 1966171168
    %v620 = vunpack.c.0.s8 %v619
    %v621 = vlaneseq
    %v622 = vshrl.u32 %v621, 7
    %v623 = vsub.s32 %v620, %v622
    %v624 = vrot.slane %v602, %v623
    %v626 = vunpack.c.l.s4 1966171168
    %v627 = vunpack.c.0.s8 %v626
    %v628 = vlaneseq
    %v629 = vshrl.u32 %v628, 7
    %v630 = vsub.s32 %v627, %v629
    %v631 = vrot.slane %v603, %v630
    %v632 = vcombine.high %v610, %v610
    %v633 = vcombine.high %v617, %v617
    %v634 = vcombine.high %v624, %v624
    %v635 = vcombine.high %v631, %v631
    %v636 = vcombine.high %v532, %v532
    %v638 = vunpack.c.l.s4 1966171168
    %v639 = vunpack.c.0.s8 %v638
    %v640 = vlaneseq
    %v641 = vshrl.u32 %v640, 7
    %v642 = vsub.s32 %v639, %v641
    %v643 = vrot.slane %v532, %v642
    %v645 = vunpack.c.l.s4 1966171168
    %v646 = vunpack.c.0.s8 %v645
    %v647 = vlaneseq
    %v648 = vshrl.u32 %v647, 7
    %v649 = vsub.s32 %v646, %v648
    %v650 = vrot.slane %v636, %v649
    %v651 = vcombine.high %v643, %v643
    %v652 = vcombine.high %v650, %v650
    %v654 = vunpack.c.l.s4 1966171168
    %v655 = vunpack.c.0.s8 %v654
    %v656 = vlaneseq
    %v657 = vshrl.u32 %v656, 7
    %v658 = vsub.s32 %v655, %v657
    %v659 = vrot.slane %v643, %v658
    %v661 = vunpack.c.l.s4 1966171168
    %v662 = vunpack.c.0.s8 %v661
    %v663 = vlaneseq
    %v664 = vshrl.u32 %v663, 7
    %v665 = vsub.s32 %v662, %v664
    %v666 = vrot.slane %v650, %v665
    %v668 = vunpack.c.l.s4 1966171168
    %v669 = vunpack.c.0.s8 %v668
    %v670 = vlaneseq
    %v671 = vshrl.u32 %v670, 7
    %v672 = vsub.s32 %v669, %v671
    %v673 = vrot.slane %v651, %v672
    %v675 = vunpack.c.l.s4 1966171168
    %v676 = vunpack.c.0.s8 %v675
    %v677 = vlaneseq
    %v678 = vshrl.u32 %v677, 7
    %v679 = vsub.s32 %v676, %v678
    %v680 = vrot.slane %v652, %v679
    %v681 = vcombine.high %v659, %v659
    %v682 = vcombine.high %v666, %v666
    %v683 = vcombine.high %v673, %v673
    %v684 = vcombine.high %v680, %v680
    %v685 = vcombine.high %v533, %v533
    %v687 = vunpack.c.l.s4 1966171168
    %v688 = vunpack.c.0.s8 %v687
    %v689 = vlaneseq
    %v690 = vshrl.u32 %v689, 7
    %v691 = vsub.s32 %v688, %v690
    %v692 = vrot.slane %v533, %v691
    %v694 = vunpack.c.l.s4 1966171168
    %v695 = vunpack.c.0.s8 %v694
    %v696 = vlaneseq
    %v697 = vshrl.u32 %v696, 7
    %v698 = vsub.s32 %v695, %v697
    %v699 = vrot.slane %v685, %v698
    %v700 = vcombine.high %v692, %v692
    %v701 = vcombine.high %v699, %v699
    %v703 = vunpack.c.l.s4 1966171168
    %v704 = vunpack.c.0.s8 %v703
    %v705 = vlaneseq
    %v706 = vshrl.u32 %v705, 7
    %v707 = vsub.s32 %v704, %v706
    %v708 = vrot.slane %v692, %v707
    %v710 = vunpack.c.l.s4 1966171168
    %v711 = vunpack.c.0.s8 %v710
    %v712 = vlaneseq
    %v713 = vshrl.u32 %v712, 7
    %v714 = vsub.s32 %v711, %v713
    %v715 = vrot.slane %v699, %v714
    %v717 = vunpack.c.l.s4 1966171168
    %v718 = vunpack.c.0.s8 %v717
    %v719 = vlaneseq
    %v720 = vshrl.u32 %v719, 7
    %v721 = vsub.s32 %v718, %v720
    %v722 = vrot.slane %v700, %v721
    %v724 = vunpack.c.l.s4 1966171168
    %v725 = vunpack.c.0.s8 %v724
    %v726 = vlaneseq
    %v727 = vshrl.u32 %v726, 7
    %v728 = vsub.s32 %v725, %v727
    %v729 = vrot.slane %v701, %v728
    %v730 = vcombine.high %v708, %v708
    %v731 = vcombine.high %v715, %v715
    %v732 = vcombine.high %v722, %v722
    %v733 = vcombine.high %v729, %v729
    %v734 = vlaneseq
    %v735 = vshrl.u32 %v734, 7
    %v736 = vsub.s32 0, %v735
    %v737 = vrot.slane %v561, %v736
    %v738 = vlaneseq
    %v739 = vshrl.u32 %v738, 7
    %v740 = vsub.s32 0, %v739
    %v741 = vrot.slane %v575, %v740
    %v742 = vlaneseq
    %v743 = vshrl.u32 %v742, 7
    %v744 = vsub.s32 0, %v743
    %v745 = vrot.slane %v583, %v744
    %v746 = vlaneseq
    %v747 = vshrl.u32 %v746, 7
    %v748 = vsub.s32 0, %v747
    %v749 = vrot.slane %v585, %v748
    %v750 = vlaneseq
    %v751 = vshrl.u32 %v750, 7
    %v752 = vsub.s32 0, %v751
    %v753 = vrot.slane %v568, %v752
    %v754 = vlaneseq
    %v755 = vshrl.u32 %v754, 7
    %v756 = vsub.s32 0, %v755
    %v757 = vrot.slane %v582, %v756
    %v758 = vlaneseq
    %v759 = vshrl.u32 %v758, 7
    %v760 = vsub.s32 0, %v759
    %v761 = vrot.slane %v584, %v760
    %v762 = vlaneseq
    %v763 = vshrl.u32 %v762, 7
    %v764 = vsub.s32 0, %v763
    %v765 = vrot.slane %v586, %v764
    %v766 = vlaneseq
    %v767 = vshrl.u32 %v766, 7
    %v768 = vsub.s32 0, %v767
    %v769 = vrot.slane %v610, %v768
    %v770 = vlaneseq
    %v771 = vshrl.u32 %v770, 7
    %v772 = vsub.s32 0, %v771
    %v773 = vrot.slane %v624, %v772
    %v774 = vlaneseq
    %v775 = vshrl.u32 %v774, 7
    %v776 = vsub.s32 0, %v775
    %v777 = vrot.slane %v632, %v776
    %v778 = vlaneseq
    %v779 = vshrl.u32 %v778, 7
    %v780 = vsub.s32 0, %v779
    %v781 = vrot.slane %v634, %v780
    %v782 = vlaneseq
    %v783 = vshrl.u32 %v782, 7
    %v784 = vsub.s32 0, %v783
    %v785 = vrot.slane %v617, %v784
    %v786 = vlaneseq
    %v787 = vshrl.u32 %v786, 7
    %v788 = vsub.s32 0, %v787
    %v789 = vrot.slane %v631, %v788
    %v790 = vlaneseq
    %v791 = vshrl.u32 %v790, 7
    %v792 = vsub.s32 0, %v791
    %v793 = vrot.slane %v633, %v792
    %v794 = vlaneseq
    %v795 = vshrl.u32 %v794, 7
    %v796 = vsub.s32 0, %v795
    %v797 = vrot.slane %v635, %v796
    %v798 = vlaneseq
    %v799 = vshrl.u32 %v798, 7
    %v800 = vsub.s32 0, %v799
    %v801 = vrot.slane %v659, %v800
    %v802 = vlaneseq
    %v803 = vshrl.u32 %v802, 7
    %v804 = vsub.s32 0, %v803
    %v805 = vrot.slane %v673, %v804
    %v806 = vlaneseq
    %v807 = vshrl.u32 %v806, 7
    %v808 = vsub.s32 0, %v807
    %v809 = vrot.slane %v681, %v808
    %v810 = vlaneseq
    %v811 = vshrl.u32 %v810, 7
    %v812 = vsub.s32 0, %v811
    %v813 = vrot.slane %v683, %v812
    %v814 = vlaneseq
    %v815 = vshrl.u32 %v814, 7
    %v816 = vsub.s32 0, %v815
    %v817 = vrot.slane %v666, %v816
    %v818 = vlaneseq
    %v819 = vshrl.u32 %v818, 7
    %v820 = vsub.s32 0, %v819
    %v821 = vrot.slane %v680, %v820
    %v822 = vlaneseq
    %v823 = vshrl.u32 %v822, 7
    %v824 = vsub.s32 0, %v823
    %v825 = vrot.slane %v682, %v824
    %v826 = vlaneseq
    %v827 = vshrl.u32 %v826, 7
    %v828 = vsub.s32 0, %v827
    %v829 = vrot.slane %v684, %v828
    %v830 = vlaneseq
    %v831 = vshrl.u32 %v830, 7
    %v832 = vsub.s32 0, %v831
    %v833 = vrot.slane %v708, %v832
    %v834 = vlaneseq
    %v835 = vshrl.u32 %v834, 7
    %v836 = vsub.s32 0, %v835
    %v837 = vrot.slane %v722, %v836
    %v838 = vlaneseq
    %v839 = vshrl.u32 %v838, 7
    %v840 = vsub.s32 0, %v839
    %v841 = vrot.slane %v730, %v840
    %v842 = vlaneseq
    %v843 = vshrl.u32 %v842, 7
    %v844 = vsub.s32 0, %v843
    %v845 = vrot.slane %v732, %v844
    %v846 = vlaneseq
    %v847 = vshrl.u32 %v846, 7
    %v848 = vsub.s32 0, %v847
    %v849 = vrot.slane %v715, %v848
    %v850 = vlaneseq
    %v851 = vshrl.u32 %v850, 7
    %v852 = vsub.s32 0, %v851
    %v853 = vrot.slane %v729, %v852
    %v854 = vlaneseq
    %v855 = vshrl.u32 %v854, 7
    %v856 = vsub.s32 0, %v855
    %v857 = vrot.slane %v731, %v856
    %v858 = vlaneseq
    %v859 = vshrl.u32 %v858, 7
    %v860 = vsub.s32 0, %v859
    %v861 = vrot.slane %v733, %v860
    %v894 = vmul.f32 %v737, %v55
    %v895 = vmul.f32 %v741, %v55
    %v896 = vmul.f32 %v745, %v55
    %v897 = vmul.f32 %v749, %v55
    %v898 = vmul.f32 %v753, %v55
    %v899 = vmul.f32 %v757, %v55
    %v900 = vmul.f32 %v761, %v55
    %v901 = vmul.f32 %v765, %v55
    %v902 = vmul.f32 %v769, %v55
    %v903 = vmul.f32 %v773, %v55
    %v904 = vmul.f32 %v777, %v55
    %v905 = vmul.f32 %v781, %v55
    %v906 = vmul.f32 %v785, %v55
    %v907 = vmul.f32 %v789, %v55
    %v908 = vmul.f32 %v793, %v55
    %v909 = vmul.f32 %v797, %v55
    %v910 = vmul.f32 %v801, %v55
    %v911 = vmul.f32 %v805, %v55
    %v912 = vmul.f32 %v809, %v55
    %v913 = vmul.f32 %v813, %v55
    %v914 = vmul.f32 %v817, %v55
    %v915 = vmul.f32 %v821, %v55
    %v916 = vmul.f32 %v825, %v55
    %v917 = vmul.f32 %v829, %v55
    %v918 = vmul.f32 %v833, %v55
    %v919 = vmul.f32 %v837, %v55
    %v920 = vmul.f32 %v841, %v55
    %v921 = vmul.f32 %v845, %v55
    %v922 = vmul.f32 %v849, %v55
    %v923 = vmul.f32 %v853, %v55
    %v924 = vmul.f32 %v857, %v55
    %v925 = vmul.f32 %v861, %v55
    %926 = vmax.xlane.f32.xlu0 %v894
    %v927 = vpop.xlane.xlu0 %926
    %928 = vmax.xlane.f32.xlu0 %v895
    %v929 = vpop.xlane.xlu0 %928
    %930 = vmax.xlane.f32.xlu0 %v896
    %v931 = vpop.xlane.xlu0 %930
    %932 = vmax.xlane.f32.xlu0 %v897
    %v933 = vpop.xlane.xlu0 %932
    %934 = vmax.xlane.f32.xlu0 %v898
    %v935 = vpop.xlane.xlu0 %934
    %936 = vmax.xlane.f32.xlu0 %v899
    %v937 = vpop.xlane.xlu0 %936
    %938 = vmax.xlane.f32.xlu0 %v900
    %v939 = vpop.xlane.xlu0 %938
    %940 = vmax.xlane.f32.xlu0 %v901
    %v941 = vpop.xlane.xlu0 %940
    %942 = vmax.xlane.f32.xlu0 %v902
    %v943 = vpop.xlane.xlu0 %942
    %944 = vmax.xlane.f32.xlu0 %v903
    %v945 = vpop.xlane.xlu0 %944
    %946 = vmax.xlane.f32.xlu0 %v904
    %v947 = vpop.xlane.xlu0 %946
    %948 = vmax.xlane.f32.xlu0 %v905
    %v949 = vpop.xlane.xlu0 %948
    %950 = vmax.xlane.f32.xlu0 %v906
    %v951 = vpop.xlane.xlu0 %950
    %952 = vmax.xlane.f32.xlu0 %v907
    %v953 = vpop.xlane.xlu0 %952
    %954 = vmax.xlane.f32.xlu0 %v908
    %v955 = vpop.xlane.xlu0 %954
    %956 = vmax.xlane.f32.xlu0 %v909
    %v957 = vpop.xlane.xlu0 %956
    %958 = vmax.xlane.f32.xlu0 %v910
    %v959 = vpop.xlane.xlu0 %958
    %960 = vmax.xlane.f32.xlu0 %v911
    %v961 = vpop.xlane.xlu0 %960
    %962 = vmax.xlane.f32.xlu0 %v912
    %v963 = vpop.xlane.xlu0 %962
    %964 = vmax.xlane.f32.xlu0 %v913
    %v965 = vpop.xlane.xlu0 %964
    %966 = vmax.xlane.f32.xlu0 %v914
    %v967 = vpop.xlane.xlu0 %966
    %968 = vmax.xlane.f32.xlu0 %v915
    %v969 = vpop.xlane.xlu0 %968
    %970 = vmax.xlane.f32.xlu0 %v916
    %v971 = vpop.xlane.xlu0 %970
    %972 = vmax.xlane.f32.xlu0 %v917
    %v973 = vpop.xlane.xlu0 %972
    %974 = vmax.xlane.f32.xlu0 %v918
    %v975 = vpop.xlane.xlu0 %974
    %976 = vmax.xlane.f32.xlu0 %v919
    %v977 = vpop.xlane.xlu0 %976
    %978 = vmax.xlane.f32.xlu0 %v920
    %v979 = vpop.xlane.xlu0 %978
    %980 = vmax.xlane.f32.xlu0 %v921
    %v981 = vpop.xlane.xlu0 %980
    %982 = vmax.xlane.f32.xlu0 %v922
    %v983 = vpop.xlane.xlu0 %982
    %984 = vmax.xlane.f32.xlu0 %v923
    %v985 = vpop.xlane.xlu0 %984
    %986 = vmax.xlane.f32.xlu0 %v924
    %v987 = vpop.xlane.xlu0 %986
    %988 = vmax.xlane.f32.xlu0 %v925
    %v989 = vpop.xlane.xlu0 %988
    %v990 = vmax.f32 %v927, 0.0
    %v991 = vmax.f32 %v929, 0.0
    %v992 = vmax.f32 %v931, 0.0
    %v993 = vmax.f32 %v933, 0.0
    %v994 = vmax.f32 %v935, 0.0
    %v995 = vmax.f32 %v937, 0.0
    %v996 = vmax.f32 %v939, 0.0
    %v997 = vmax.f32 %v941, 0.0
    %v998 = vmax.f32 %v943, 0.0
    %v999 = vmax.f32 %v945, 0.0
    %v1000 = vmax.f32 %v947, 0.0
    %v1001 = vmax.f32 %v949, 0.0
    %v1002 = vmax.f32 %v951, 0.0
    %v1003 = vmax.f32 %v953, 0.0
    %v1004 = vmax.f32 %v955, 0.0
    %v1005 = vmax.f32 %v957, 0.0
    %v1006 = vmax.f32 %v959, 0.0
    %v1007 = vmax.f32 %v961, 0.0
    %v1008 = vmax.f32 %v963, 0.0
    %v1009 = vmax.f32 %v965, 0.0
    %v1010 = vmax.f32 %v967, 0.0
    %v1011 = vmax.f32 %v969, 0.0
    %v1012 = vmax.f32 %v971, 0.0
    %v1013 = vmax.f32 %v973, 0.0
    %v1014 = vmax.f32 %v975, 0.0
    %v1015 = vmax.f32 %v977, 0.0
    %v1016 = vmax.f32 %v979, 0.0
    %v1017 = vmax.f32 %v981, 0.0
    %v1018 = vmax.f32 %v983, 0.0
    %v1019 = vmax.f32 %v985, 0.0
    %v1020 = vmax.f32 %v987, 0.0
    %v1021 = vmax.f32 %v989, 0.0
    %v1055 = vlaneseq
    %v1056 = vand.u32 %v1055, 127
    %v1057 = vlaneseq
    %v1058 = vshrl.u32 %v1057, 7
    %v1059 = vsub.s32 %v1056, %v1058
    %v1060 = vrot.slane %v990, %v1059
    %v1061 = vlaneseq
    %v1062 = vshrl.u32 %v1061, 7
    %v1063 = vsub.s32 %v1056, %v1062
    %v1064 = vrot.slane %v991, %v1063
    %v1065 = vlaneseq
    %v1066 = vshrl.u32 %v1065, 7
    %v1067 = vsub.s32 %v1056, %v1066
    %v1068 = vrot.slane %v992, %v1067
    %v1069 = vlaneseq
    %v1070 = vshrl.u32 %v1069, 7
    %v1071 = vsub.s32 %v1056, %v1070
    %v1072 = vrot.slane %v993, %v1071
    %v1073 = vlaneseq
    %v1074 = vshrl.u32 %v1073, 7
    %v1075 = vsub.s32 %v1056, %v1074
    %v1076 = vrot.slane %v994, %v1075
    %v1077 = vlaneseq
    %v1078 = vshrl.u32 %v1077, 7
    %v1079 = vsub.s32 %v1056, %v1078
    %v1080 = vrot.slane %v995, %v1079
    %v1081 = vlaneseq
    %v1082 = vshrl.u32 %v1081, 7
    %v1083 = vsub.s32 %v1056, %v1082
    %v1084 = vrot.slane %v996, %v1083
    %v1085 = vlaneseq
    %v1086 = vshrl.u32 %v1085, 7
    %v1087 = vsub.s32 %v1056, %v1086
    %v1088 = vrot.slane %v997, %v1087
    %v1089 = vlaneseq
    %v1090 = vshrl.u32 %v1089, 7
    %v1091 = vsub.s32 %v1056, %v1090
    %v1092 = vrot.slane %v998, %v1091
    %v1093 = vlaneseq
    %v1094 = vshrl.u32 %v1093, 7
    %v1095 = vsub.s32 %v1056, %v1094
    %v1096 = vrot.slane %v999, %v1095
    %v1097 = vlaneseq
    %v1098 = vshrl.u32 %v1097, 7
    %v1099 = vsub.s32 %v1056, %v1098
    %v1100 = vrot.slane %v1000, %v1099
    %v1101 = vlaneseq
    %v1102 = vshrl.u32 %v1101, 7
    %v1103 = vsub.s32 %v1056, %v1102
    %v1104 = vrot.slane %v1001, %v1103
    %v1105 = vlaneseq
    %v1106 = vshrl.u32 %v1105, 7
    %v1107 = vsub.s32 %v1056, %v1106
    %v1108 = vrot.slane %v1002, %v1107
    %v1109 = vlaneseq
    %v1110 = vshrl.u32 %v1109, 7
    %v1111 = vsub.s32 %v1056, %v1110
    %v1112 = vrot.slane %v1003, %v1111
    %v1113 = vlaneseq
    %v1114 = vshrl.u32 %v1113, 7
    %v1115 = vsub.s32 %v1056, %v1114
    %v1116 = vrot.slane %v1004, %v1115
    %v1117 = vlaneseq
    %v1118 = vshrl.u32 %v1117, 7
    %v1119 = vsub.s32 %v1056, %v1118
    %v1120 = vrot.slane %v1005, %v1119
    %v1121 = vlaneseq
    %v1122 = vshrl.u32 %v1121, 7
    %v1123 = vsub.s32 %v1056, %v1122
    %v1124 = vrot.slane %v1006, %v1123
    %v1125 = vlaneseq
    %v1126 = vshrl.u32 %v1125, 7
    %v1127 = vsub.s32 %v1056, %v1126
    %v1128 = vrot.slane %v1007, %v1127
    %v1129 = vlaneseq
    %v1130 = vshrl.u32 %v1129, 7
    %v1131 = vsub.s32 %v1056, %v1130
    %v1132 = vrot.slane %v1008, %v1131
    %v1133 = vlaneseq
    %v1134 = vshrl.u32 %v1133, 7
    %v1135 = vsub.s32 %v1056, %v1134
    %v1136 = vrot.slane %v1009, %v1135
    %v1137 = vlaneseq
    %v1138 = vshrl.u32 %v1137, 7
    %v1139 = vsub.s32 %v1056, %v1138
    %v1140 = vrot.slane %v1010, %v1139
    %v1141 = vlaneseq
    %v1142 = vshrl.u32 %v1141, 7
    %v1143 = vsub.s32 %v1056, %v1142
    %v1144 = vrot.slane %v1011, %v1143
    %v1145 = vlaneseq
    %v1146 = vshrl.u32 %v1145, 7
    %v1147 = vsub.s32 %v1056, %v1146
    %v1148 = vrot.slane %v1012, %v1147
    %v1149 = vlaneseq
    %v1150 = vshrl.u32 %v1149, 7
    %v1151 = vsub.s32 %v1056, %v1150
    %v1152 = vrot.slane %v1013, %v1151
    %v1153 = vlaneseq
    %v1154 = vshrl.u32 %v1153, 7
    %v1155 = vsub.s32 %v1056, %v1154
    %v1156 = vrot.slane %v1014, %v1155
    %v1157 = vlaneseq
    %v1158 = vshrl.u32 %v1157, 7
    %v1159 = vsub.s32 %v1056, %v1158
    %v1160 = vrot.slane %v1015, %v1159
    %v1161 = vlaneseq
    %v1162 = vshrl.u32 %v1161, 7
    %v1163 = vsub.s32 %v1056, %v1162
    %v1164 = vrot.slane %v1016, %v1163
    %v1165 = vlaneseq
    %v1166 = vshrl.u32 %v1165, 7
    %v1167 = vsub.s32 %v1056, %v1166
    %v1168 = vrot.slane %v1017, %v1167
    %v1169 = vlaneseq
    %v1170 = vshrl.u32 %v1169, 7
    %v1171 = vsub.s32 %v1056, %v1170
    %v1172 = vrot.slane %v1018, %v1171
    %v1173 = vlaneseq
    %v1174 = vshrl.u32 %v1173, 7
    %v1175 = vsub.s32 %v1056, %v1174
    %v1176 = vrot.slane %v1019, %v1175
    %v1177 = vlaneseq
    %v1178 = vshrl.u32 %v1177, 7
    %v1179 = vsub.s32 %v1056, %v1178
    %v1180 = vrot.slane %v1020, %v1179
    %v1181 = vlaneseq
    %v1182 = vshrl.u32 %v1181, 7
    %v1183 = vsub.s32 %v1056, %v1182
    %v1184 = vrot.slane %v1021, %v1183
    %vm1185 = vcmask 1041409
    %v1186 = vsel %vm1185, %v1064, %v1060
    %vm1187 = vcmask 1042434
    %v1188 = vsel %vm1187, %v1068, %v1186
    %vm1189 = vcmask 1043459
    %v1190 = vsel %vm1189, %v1072, %v1188
    %vm1191 = vcmask 1044484
    %v1192 = vsel %vm1191, %v1076, %v1190
    %vm1193 = vcmask 1045509
    %v1194 = vsel %vm1193, %v1080, %v1192
    %vm1195 = vcmask 1046534
    %v1196 = vsel %vm1195, %v1084, %v1194
    %vm1197 = vcmask 1047559
    %v1198 = vsel %vm1197, %v1088, %v1196
    %v1199 = vsel %vm1185, %v1096, %v1092
    %v1200 = vsel %vm1187, %v1100, %v1199
    %v1201 = vsel %vm1189, %v1104, %v1200
    %v1202 = vsel %vm1191, %v1108, %v1201
    %v1203 = vsel %vm1193, %v1112, %v1202
    %v1204 = vsel %vm1195, %v1116, %v1203
    %v1205 = vsel %vm1197, %v1120, %v1204
    %v1206 = vsel %vm1185, %v1128, %v1124
    %v1207 = vsel %vm1187, %v1132, %v1206
    %v1208 = vsel %vm1189, %v1136, %v1207
    %v1209 = vsel %vm1191, %v1140, %v1208
    %v1210 = vsel %vm1193, %v1144, %v1209
    %v1211 = vsel %vm1195, %v1148, %v1210
    %v1212 = vsel %vm1197, %v1152, %v1211
    %v1213 = vsel %vm1185, %v1160, %v1156
    %v1214 = vsel %vm1187, %v1164, %v1213
    %v1215 = vsel %vm1189, %v1168, %v1214
    %v1216 = vsel %vm1191, %v1172, %v1215
    %v1217 = vsel %vm1193, %v1176, %v1216
    %v1218 = vsel %vm1195, %v1180, %v1217
    %v1219 = vsel %vm1197, %v1184, %v1218
    %1224 = vrot.lane.b32.xlu0 %v34, 127
    %v1225 = vpop.permute.xlu0 %1224
    %1226 = vrot.lane.b32.xlu0 %v35, 127
    %v1227 = vpop.permute.xlu0 %1226
    %vm1228 = vcmask 326656
    %v1229 = vsel %vm1228, %v1225, 0
    %v1231 = vsel %vm1228, %v1227, 0
    %1233 = vmatprep.subr.mxu0 0.0
    %1234 = vmatpush1.msra.mxu0 %v238
    %1235 = vmatprep.subr.mxu0 0.0
    %1236 = vmatpush1.msra.mxu0 %v1198
    %1237 = vmatprep.subr.mxu0 0.0
    %1238 = vmatpush1.msra.mxu0 %v1205
    %1239 = vmatprep.subr.mxu0 0.0
    %1240 = vmatpush1.msra.mxu0 %v1212
    %1241 = vmatprep.subr.mxu0 0.0
    %1242 = vmatpush1.msra.mxu0 %v1219
    %1243 = vmatprep.subr.mxu0 0.0
    %1244 = vmatpush1.msra.mxu0 0.0
    %1245 = vmatprep.subr.mxu0 0.0
    %1246 = vmatpush1.msra.mxu0 0.0
    %1247 = vmatprep.subr.mxu0 0.0
    %1248 = vmatpush1.msra.mxu0 0.0
    %1249 = vmatprep.subr.mxu0 0.0
    %1250 = vmatpush1.msra.mxu0 0.0
    %1251 = vmatprep.subr.mxu0 0.0
    %1252 = vmatpush1.msra.mxu0 0.0
    %1253 = vmatprep.subr.mxu0 0.0
    %1254 = vmatpush1.msra.mxu0 0.0
    %1255 = vmatprep.subr.mxu0 0.0
    %1256 = vmatpush1.msra.mxu0 0.0
    %1257 = vmatprep.subr.mxu0 0.0
    %1258 = vmatpush1.msra.mxu0 0.0
    %1259 = vmatprep.subr.mxu0 0.0
    %1260 = vmatpush1.msra.mxu0 0.0
    %1261 = vmatprep.subr.mxu0 0.0
    %1262 = vmatpush1.msra.mxu0 0.0
    %1263 = vmatprep.subr.mxu0 0.0
    %1264 = vmatpush1.msra.mxu0 0.0
    %1265 = vmatprep.subr.mxu0 0.0
    %1266 = vmatpush1.msra.mxu0 0.0
    %1267 = vmatprep.subr.mxu0 0.0
    %1268 = vmatpush1.msra.mxu0 0.0
    %1269 = vmatprep.subr.mxu0 0.0
    %1270 = vmatpush1.msra.mxu0 0.0
    %1271 = vmatprep.subr.mxu0 0.0
    %1272 = vmatpush1.msra.mxu0 0.0
    %1273 = vmatprep.subr.mxu0 0.0
    %1274 = vmatpush1.msra.mxu0 0.0
    %1275 = vmatprep.subr.mxu0 0.0
    %1276 = vmatpush1.msra.mxu0 0.0
    %1277 = vmatprep.subr.mxu0 0.0
    %1278 = vmatpush1.msra.mxu0 0.0
    %1279 = vmatprep.subr.mxu0 0.0
    %1280 = vmatpush1.msra.mxu0 0.0
    %1281 = vmatprep.subr.mxu0 0.0
    %1282 = vmatpush1.msra.mxu0 0.0
    %1283 = vmatprep.subr.mxu0 0.0
    %1284 = vmatpush1.msra.mxu0 0.0
    %1285 = vmatprep.subr.mxu0 0.0
    %1286 = vmatpush1.msra.mxu0 0.0
    %1287 = vmatprep.subr.mxu0 0.0
    %1288 = vmatpush1.msra.mxu0 0.0
    %1289 = vmatprep.subr.mxu0 0.0
    %1290 = vmatpush1.msra.mxu0 0.0
    %1291 = vmatprep.subr.mxu0 0.0
    %1292 = vmatpush1.msra.mxu0 0.0
    %1293 = vmatprep.subr.mxu0 0.0
    %1294 = vmatpush1.msra.mxu0 0.0
    %1295 = vmatprep.subr.mxu0 0.0
    %1296 = vmatpush1.msra.mxu0 0.0
    %1297 = vmatprep.mubr.f32.mxu0 0.0
    %1298 = vmatmul.mubr.f32.gmra.mrb[0].mxu0 %v1229
    %v1299 = vpop.f32.mrb[0].mxu0
    %v1300 = vadd.f32 %v232, %v1299
    %v1301 = vpop.f32.mrb[0].mxu0
    %1302 = vmatprep.mubr.f32.mxu0 0.0
    %1303 = vmatmul.mubr.f32.gmra.mrb[0].mxu0 %v1231
    %v1304 = vpop.f32.mrb[0].mxu0
    %v1305 = vadd.f32 %v233, %v1304
    %v1306 = vpop.f32.mrb[0].mxu0
    %1307 = vdwg.mxu0
    %v1308 = vmax.f32 %v1300, 0.0
    %v1309 = vmax.f32 %v1305, 0.0
    %1311 = vset.pattern.permute.xlu0 16
    %1312 = vperm.xlu0 %1311, %v36
    %v1313 = vpop.permute.xlu0 %1312
    %vm1315 = vcmask 130048
    %v1316 = vsel %vm1315, %v36, 0
    %1318 = vmatprep.subr.mxu0 0.0
    %1319 = vmatpush1.msra.mxu0 %v1308
    %1320 = vmatprep.subr.mxu0 0.0
    %1321 = vmatpush1.msra.mxu0 %v1309
    %1322 = vmatprep.subr.mxu0 0.0
    %1323 = vmatpush1.msra.mxu0 0.0
    %1324 = vmatprep.subr.mxu0 0.0
    %1325 = vmatpush1.msra.mxu0 0.0
    %1326 = vmatprep.subr.mxu0 0.0
    %1327 = vmatpush1.msra.mxu0 0.0
    %1328 = vmatprep.subr.mxu0 0.0
    %1329 = vmatpush1.msra.mxu0 0.0
    %1330 = vmatprep.subr.mxu0 0.0
    %1331 = vmatpush1.msra.mxu0 0.0
    %1332 = vmatprep.subr.mxu0 0.0
    %1333 = vmatpush1.msra.mxu0 0.0
    %1334 = vmatprep.subr.mxu0 0.0
    %1335 = vmatpush1.msra.mxu0 0.0
    %1336 = vmatprep.subr.mxu0 0.0
    %1337 = vmatpush1.msra.mxu0 0.0
    %1338 = vmatprep.subr.mxu0 0.0
    %1339 = vmatpush1.msra.mxu0 0.0
    %1340 = vmatprep.subr.mxu0 0.0
    %1341 = vmatpush1.msra.mxu0 0.0
    %1342 = vmatprep.subr.mxu0 0.0
    %1343 = vmatpush1.msra.mxu0 0.0
    %1344 = vmatprep.subr.mxu0 0.0
    %1345 = vmatpush1.msra.mxu0 0.0
    %1346 = vmatprep.subr.mxu0 0.0
    %1347 = vmatpush1.msra.mxu0 0.0
    %1348 = vmatprep.subr.mxu0 0.0
    %1349 = vmatpush1.msra.mxu0 0.0
    %1350 = vmatprep.subr.mxu0 0.0
    %1351 = vmatpush1.msra.mxu0 0.0
    %1352 = vmatprep.subr.mxu0 0.0
    %1353 = vmatpush1.msra.mxu0 0.0
    %1354 = vmatprep.subr.mxu0 0.0
    %1355 = vmatpush1.msra.mxu0 0.0
    %1356 = vmatprep.subr.mxu0 0.0
    %1357 = vmatpush1.msra.mxu0 0.0
    %1358 = vmatprep.subr.mxu0 0.0
    %1359 = vmatpush1.msra.mxu0 0.0
    %1360 = vmatprep.subr.mxu0 0.0
    %1361 = vmatpush1.msra.mxu0 0.0
    %1362 = vmatprep.subr.mxu0 0.0
    %1363 = vmatpush1.msra.mxu0 0.0
    %1364 = vmatprep.subr.mxu0 0.0
    %1365 = vmatpush1.msra.mxu0 0.0
    %1366 = vmatprep.subr.mxu0 0.0
    %1367 = vmatpush1.msra.mxu0 0.0
    %1368 = vmatprep.subr.mxu0 0.0
    %1369 = vmatpush1.msra.mxu0 0.0
    %1370 = vmatprep.subr.mxu0 0.0
    %1371 = vmatpush1.msra.mxu0 0.0
    %1372 = vmatprep.subr.mxu0 0.0
    %1373 = vmatpush1.msra.mxu0 0.0
    %1374 = vmatprep.subr.mxu0 0.0
    %1375 = vmatpush1.msra.mxu0 0.0
    %1376 = vmatprep.subr.mxu0 0.0
    %1377 = vmatpush1.msra.mxu0 0.0
    %1378 = vmatprep.subr.mxu0 0.0
    %1379 = vmatpush1.msra.mxu0 0.0
    %1380 = vmatprep.subr.mxu0 0.0
    %1381 = vmatpush1.msra.mxu0 0.0
    %1382 = vmatprep.mubr.f32.mxu0 0.0
    %1383 = vmatmul.mubr.f32.gmra.mrb[0].mxu0 %v1316
    %v1384 = vpop.f32.mrb[0].mxu0
    %v1385 = vadd.f32 %v1313, %v1384
    %v1386 = vpop.f32.mrb[0].mxu0
    %1387 = vdwg.mxu0
    %v1388 = vmax.f32 %v1385, 0.0
    %v1390 = vsel %vm56, %v1388, 0
    %1392 = vmatprep.subr.mxu0 0.0
    %1393 = vmatpush1.msra.mxu0 %v48
    %1394 = vmatprep.subr.mxu0 0.0
    %1395 = vmatpush1.msra.mxu0 0.0
    %1396 = vmatprep.subr.mxu0 0.0
    %1397 = vmatpush1.msra.mxu0 0.0
    %1398 = vmatprep.subr.mxu0 0.0
    %1399 = vmatpush1.msra.mxu0 0.0
    %1400 = vmatprep.subr.mxu0 0.0
    %1401 = vmatpush1.msra.mxu0 0.0
    %1402 = vmatprep.subr.mxu0 0.0
    %1403 = vmatpush1.msra.mxu0 0.0
    %1404 = vmatprep.subr.mxu0 0.0
    %1405 = vmatpush1.msra.mxu0 0.0
    %1406 = vmatprep.subr.mxu0 0.0
    %1407 = vmatpush1.msra.mxu0 0.0
    %1408 = vmatprep.subr.mxu0 0.0
    %1409 = vmatpush1.msra.mxu0 0.0
    %1410 = vmatprep.subr.mxu0 0.0
    %1411 = vmatpush1.msra.mxu0 0.0
    %1412 = vmatprep.subr.mxu0 0.0
    %1413 = vmatpush1.msra.mxu0 0.0
    %1414 = vmatprep.subr.mxu0 0.0
    %1415 = vmatpush1.msra.mxu0 0.0
    %1416 = vmatprep.subr.mxu0 0.0
    %1417 = vmatpush1.msra.mxu0 0.0
    %1418 = vmatprep.subr.mxu0 0.0
    %1419 = vmatpush1.msra.mxu0 0.0
    %1420 = vmatprep.subr.mxu0 0.0
    %1421 = vmatpush1.msra.mxu0 0.0
    %1422 = vmatprep.subr.mxu0 0.0
    %1423 = vmatpush1.msra.mxu0 0.0
    %1424 = vmatprep.subr.mxu0 0.0
    %1425 = vmatpush1.msra.mxu0 0.0
    %1426 = vmatprep.subr.mxu0 0.0
    %1427 = vmatpush1.msra.mxu0 0.0
    %1428 = vmatprep.subr.mxu0 0.0
    %1429 = vmatpush1.msra.mxu0 0.0
    %1430 = vmatprep.subr.mxu0 0.0
    %1431 = vmatpush1.msra.mxu0 0.0
    %1432 = vmatprep.subr.mxu0 0.0
    %1433 = vmatpush1.msra.mxu0 0.0
    %1434 = vmatprep.subr.mxu0 0.0
    %1435 = vmatpush1.msra.mxu0 0.0
    %1436 = vmatprep.subr.mxu0 0.0
    %1437 = vmatpush1.msra.mxu0 0.0
    %1438 = vmatprep.subr.mxu0 0.0
    %1439 = vmatpush1.msra.mxu0 0.0
    %1440 = vmatprep.subr.mxu0 0.0
    %1441 = vmatpush1.msra.mxu0 0.0
    %1442 = vmatprep.subr.mxu0 0.0
    %1443 = vmatpush1.msra.mxu0 0.0
    %1444 = vmatprep.subr.mxu0 0.0
    %1445 = vmatpush1.msra.mxu0 0.0
    %1446 = vmatprep.subr.mxu0 0.0
    %1447 = vmatpush1.msra.mxu0 0.0
    %1448 = vmatprep.subr.mxu0 0.0
    %1449 = vmatpush1.msra.mxu0 0.0
    %1450 = vmatprep.subr.mxu0 0.0
    %1451 = vmatpush1.msra.mxu0 0.0
    %1452 = vmatprep.subr.mxu0 0.0
    %1453 = vmatpush1.msra.mxu0 0.0
    %1454 = vmatprep.subr.mxu0 0.0
    %1455 = vmatpush1.msra.mxu0 0.0
    %1456 = vmatprep.mubr.f32.mxu0 0.0
    %1457 = vmatmul.mubr.f32.gmra.mrb[0].mxu0 %v1390
    %v1458 = vpop.f32.mrb[0].mxu0
    %v1459 = vadd.f32 0.0, %v1458
    %v1460 = vpop.f32.mrb[0].mxu0
    %1461 = vdwg.mxu0
    %1462 = vmatprep.subr.mxu0 0.0
    %1463 = vmatpush1.msra.mxu0 %v1459
    %1464 = vmatprep.subr.mxu0 0.0
    %1465 = vmatpush1.msra.mxu0 0.0
    %1466 = vmatprep.subr.mxu0 0.0
    %1467 = vmatpush1.msra.mxu0 0.0
    %1468 = vmatprep.subr.mxu0 0.0
    %1469 = vmatpush1.msra.mxu0 0.0
    %1470 = vmatprep.subr.mxu0 0.0
    %1471 = vmatpush1.msra.mxu0 0.0
    %1472 = vmatprep.subr.mxu0 0.0
    %1473 = vmatpush1.msra.mxu0 0.0
    %1474 = vmatprep.subr.mxu0 0.0
    %1475 = vmatpush1.msra.mxu0 0.0
    %1476 = vmatprep.subr.mxu0 0.0
    %1477 = vmatpush1.msra.mxu0 0.0
    %1478 = vmatprep.subr.mxu0 0.0
    %1479 = vmatpush1.msra.mxu0 0.0
    %1480 = vmatprep.subr.mxu0 0.0
    %1481 = vmatpush1.msra.mxu0 0.0
    %1482 = vmatprep.subr.mxu0 0.0
    %1483 = vmatpush1.msra.mxu0 0.0
    %1484 = vmatprep.subr.mxu0 0.0
    %1485 = vmatpush1.msra.mxu0 0.0
    %1486 = vmatprep.subr.mxu0 0.0
    %1487 = vmatpush1.msra.mxu0 0.0
    %1488 = vmatprep.subr.mxu0 0.0
    %1489 = vmatpush1.msra.mxu0 0.0
    %1490 = vmatprep.subr.mxu0 0.0
    %1491 = vmatpush1.msra.mxu0 0.0
    %1492 = vmatprep.subr.mxu0 0.0
    %1493 = vmatpush1.msra.mxu0 0.0
    %1494 = vmatprep.subr.mxu0 0.0
    %1495 = vmatpush1.msra.mxu0 0.0
    %1496 = vmatprep.subr.mxu0 0.0
    %1497 = vmatpush1.msra.mxu0 0.0
    %1498 = vmatprep.subr.mxu0 0.0
    %1499 = vmatpush1.msra.mxu0 0.0
    %1500 = vmatprep.subr.mxu0 0.0
    %1501 = vmatpush1.msra.mxu0 0.0
    %1502 = vmatprep.subr.mxu0 0.0
    %1503 = vmatpush1.msra.mxu0 0.0
    %1504 = vmatprep.subr.mxu0 0.0
    %1505 = vmatpush1.msra.mxu0 0.0
    %1506 = vmatprep.subr.mxu0 0.0
    %1507 = vmatpush1.msra.mxu0 0.0
    %1508 = vmatprep.subr.mxu0 0.0
    %1509 = vmatpush1.msra.mxu0 0.0
    %1510 = vmatprep.subr.mxu0 0.0
    %1511 = vmatpush1.msra.mxu0 0.0
    %1512 = vmatprep.subr.mxu0 0.0
    %1513 = vmatpush1.msra.mxu0 0.0
    %1514 = vmatprep.subr.mxu0 0.0
    %1515 = vmatpush1.msra.mxu0 0.0
    %1516 = vmatprep.subr.mxu0 0.0
    %1517 = vmatpush1.msra.mxu0 0.0
    %1518 = vmatprep.subr.mxu0 0.0
    %1519 = vmatpush1.msra.mxu0 0.0
    %1520 = vmatprep.subr.mxu0 0.0
    %1521 = vmatpush1.msra.mxu0 0.0
    %1522 = vmatprep.subr.mxu0 0.0
    %1523 = vmatpush1.msra.mxu0 0.0
    %1524 = vmatprep.subr.mxu0 0.0
    %1525 = vmatpush1.msra.mxu0 0.0
    %1526 = vmatprep.mubr.f32.mxu0 0.0
    %1527 = vmatmul.mubr.f32.gmra.mrb[0].mxu0 %v319
    %v1528 = vpop.f32.mrb[0].mxu0
    %v1529 = vadd.f32 %v204, %v1528
    %v1530 = vpop.f32.mrb[0].mxu0
    %1531 = vmatprep.mubr.f32.mxu0 0.0
    %1532 = vmatmul.mubr.f32.gmra.mrb[0].mxu0 %v321
    %v1533 = vpop.f32.mrb[0].mxu0
    %v1534 = vadd.f32 %v205, %v1533
    %v1535 = vpop.f32.mrb[0].mxu0
    %1536 = vmatprep.mubr.f32.mxu0 0.0
    %1537 = vmatmul.mubr.f32.gmra.mrb[0].mxu0 %v323
    %v1538 = vpop.f32.mrb[0].mxu0
    %v1539 = vadd.f32 %v206, %v1538
    %v1540 = vpop.f32.mrb[0].mxu0
    %1541 = vmatprep.mubr.f32.mxu0 0.0
    %1542 = vmatmul.mubr.f32.gmra.mrb[0].mxu0 %v325
    %v1543 = vpop.f32.mrb[0].mxu0
    %v1544 = vadd.f32 %v207, %v1543
    %v1545 = vpop.f32.mrb[0].mxu0
    %1546 = vdwg.mxu0
    %v1547 = vmax.f32 %v1529, 0.0
    %v1548 = vmax.f32 %v1534, 0.0
    %v1549 = vmax.f32 %v1539, 0.0
    %v1550 = vmax.f32 %v1544, 0.0
    %1551 = vmatprep.subr.mxu0 0.0
    %1552 = vmatpush1.msra.mxu0 %v1547
    %1553 = vmatprep.subr.mxu0 0.0
    %1554 = vmatpush1.msra.mxu0 %v1548
    %1555 = vmatprep.subr.mxu0 0.0
    %1556 = vmatpush1.msra.mxu0 %v1549
    %1557 = vmatprep.subr.mxu0 0.0
    %1558 = vmatpush1.msra.mxu0 %v1550
    %1559 = vmatprep.subr.mxu0 0.0
    %1560 = vmatpush1.msra.mxu0 0.0
    %1561 = vmatprep.subr.mxu0 0.0
    %1562 = vmatpush1.msra.mxu0 0.0
    %1563 = vmatprep.subr.mxu0 0.0
    %1564 = vmatpush1.msra.mxu0 0.0
    %1565 = vmatprep.subr.mxu0 0.0
    %1566 = vmatpush1.msra.mxu0 0.0
    %1567 = vmatprep.subr.mxu0 0.0
    %1568 = vmatpush1.msra.mxu0 0.0
    %1569 = vmatprep.subr.mxu0 0.0
    %1570 = vmatpush1.msra.mxu0 0.0
    %1571 = vmatprep.subr.mxu0 0.0
    %1572 = vmatpush1.msra.mxu0 0.0
    %1573 = vmatprep.subr.mxu0 0.0
    %1574 = vmatpush1.msra.mxu0 0.0
    %1575 = vmatprep.subr.mxu0 0.0
    %1576 = vmatpush1.msra.mxu0 0.0
    %1577 = vmatprep.subr.mxu0 0.0
    %1578 = vmatpush1.msra.mxu0 0.0
    %1579 = vmatprep.subr.mxu0 0.0
    %1580 = vmatpush1.msra.mxu0 0.0
    %1581 = vmatprep.subr.mxu0 0.0
    %1582 = vmatpush1.msra.mxu0 0.0
    %1583 = vmatprep.subr.mxu0 0.0
    %1584 = vmatpush1.msra.mxu0 0.0
    %1585 = vmatprep.subr.mxu0 0.0
    %1586 = vmatpush1.msra.mxu0 0.0
    %1587 = vmatprep.subr.mxu0 0.0
    %1588 = vmatpush1.msra.mxu0 0.0
    %1589 = vmatprep.subr.mxu0 0.0
    %1590 = vmatpush1.msra.mxu0 0.0
    %1591 = vmatprep.subr.mxu0 0.0
    %1592 = vmatpush1.msra.mxu0 0.0
    %1593 = vmatprep.subr.mxu0 0.0
    %1594 = vmatpush1.msra.mxu0 0.0
    %1595 = vmatprep.subr.mxu0 0.0
    %1596 = vmatpush1.msra.mxu0 0.0
    %1597 = vmatprep.subr.mxu0 0.0
    %1598 = vmatpush1.msra.mxu0 0.0
    %1599 = vmatprep.subr.mxu0 0.0
    %1600 = vmatpush1.msra.mxu0 0.0
    %1601 = vmatprep.subr.mxu0 0.0
    %1602 = vmatpush1.msra.mxu0 0.0
    %1603 = vmatprep.subr.mxu0 0.0
    %1604 = vmatpush1.msra.mxu0 0.0
    %1605 = vmatprep.subr.mxu0 0.0
    %1606 = vmatpush1.msra.mxu0 0.0
    %1607 = vmatprep.subr.mxu0 0.0
    %1608 = vmatpush1.msra.mxu0 0.0
    %1609 = vmatprep.subr.mxu0 0.0
    %1610 = vmatpush1.msra.mxu0 0.0
    %1611 = vmatprep.subr.mxu0 0.0
    %1612 = vmatpush1.msra.mxu0 0.0
    %1613 = vmatprep.subr.mxu0 0.0
    %1614 = vmatpush1.msra.mxu0 0.0
    %1615 = vmatprep.mubr.f32.mxu0 0.0
    %1616 = vmatmul.mubr.f32.gmra.mrb[0].mxu0 %v437
    %v1617 = vpop.f32.mrb[0].mxu0
    %v1618 = vadd.f32 %v419, %v1617
    %v1619 = vpop.f32.mrb[0].mxu0
    %1620 = vmatprep.mubr.f32.mxu0 0.0
    %1621 = vmatmul.mubr.f32.gmra.mrb[0].mxu0 %v439
    %v1622 = vpop.f32.mrb[0].mxu0
    %v1623 = vadd.f32 %v424, %v1622
    %v1624 = vpop.f32.mrb[0].mxu0
    %1625 = vmatprep.mubr.f32.mxu0 0.0
    %1626 = vmatmul.mubr.f32.gmra.mrb[0].mxu0 %v441
    %v1627 = vpop.f32.mrb[0].mxu0
    %v1628 = vadd.f32 %v429, %v1627
    %v1629 = vpop.f32.mrb[0].mxu0
    %1630 = vmatprep.mubr.f32.mxu0 0.0
    %1631 = vmatmul.mubr.f32.gmra.mrb[0].mxu0 %v443
    %v1632 = vpop.f32.mrb[0].mxu0
    %v1633 = vadd.f32 %v434, %v1632
    %v1634 = vpop.f32.mrb[0].mxu0
    %1635 = vdwg.mxu0
    %v1636 = vmax.f32 %v1618, 0.0
    %v1637 = vmax.f32 %v1623, 0.0
    %v1638 = vmax.f32 %v1628, 0.0
    %v1639 = vmax.f32 %v1633, 0.0
    %v1644 = vcombine.high %v1636, %v1636
    %v1646 = vunpack.c.l.s4 1966171168
    %v1647 = vunpack.c.0.s8 %v1646
    %v1648 = vlaneseq
    %v1649 = vshrl.u32 %v1648, 7
    %v1650 = vsub.s32 %v1647, %v1649
    %v1651 = vrot.slane %v1636, %v1650
    %v1653 = vunpack.c.l.s4 1966171168
    %v1654 = vunpack.c.0.s8 %v1653
    %v1655 = vlaneseq
    %v1656 = vshrl.u32 %v1655, 7
    %v1657 = vsub.s32 %v1654, %v1656
    %v1658 = vrot.slane %v1644, %v1657
    %v1659 = vcombine.high %v1651, %v1651
    %v1660 = vcombine.high %v1658, %v1658
    %v1662 = vunpack.c.l.s4 1966171168
    %v1663 = vunpack.c.0.s8 %v1662
    %v1664 = vlaneseq
    %v1665 = vshrl.u32 %v1664, 7
    %v1666 = vsub.s32 %v1663, %v1665
    %v1667 = vrot.slane %v1651, %v1666
    %v1669 = vunpack.c.l.s4 1966171168
    %v1670 = vunpack.c.0.s8 %v1669
    %v1671 = vlaneseq
    %v1672 = vshrl.u32 %v1671, 7
    %v1673 = vsub.s32 %v1670, %v1672
    %v1674 = vrot.slane %v1658, %v1673
    %v1676 = vunpack.c.l.s4 1966171168
    %v1677 = vunpack.c.0.s8 %v1676
    %v1678 = vlaneseq
    %v1679 = vshrl.u32 %v1678, 7
    %v1680 = vsub.s32 %v1677, %v1679
    %v1681 = vrot.slane %v1659, %v1680
    %v1683 = vunpack.c.l.s4 1966171168
    %v1684 = vunpack.c.0.s8 %v1683
    %v1685 = vlaneseq
    %v1686 = vshrl.u32 %v1685, 7
    %v1687 = vsub.s32 %v1684, %v1686
    %v1688 = vrot.slane %v1660, %v1687
    %v1689 = vcombine.high %v1667, %v1667
    %v1690 = vcombine.high %v1674, %v1674
    %v1691 = vcombine.high %v1681, %v1681
    %v1692 = vcombine.high %v1688, %v1688
    %v1693 = vcombine.high %v1637, %v1637
    %v1695 = vunpack.c.l.s4 1966171168
    %v1696 = vunpack.c.0.s8 %v1695
    %v1697 = vlaneseq
    %v1698 = vshrl.u32 %v1697, 7
    %v1699 = vsub.s32 %v1696, %v1698
    %v1700 = vrot.slane %v1637, %v1699
    %v1702 = vunpack.c.l.s4 1966171168
    %v1703 = vunpack.c.0.s8 %v1702
    %v1704 = vlaneseq
    %v1705 = vshrl.u32 %v1704, 7
    %v1706 = vsub.s32 %v1703, %v1705
    %v1707 = vrot.slane %v1693, %v1706
    %v1708 = vcombine.high %v1700, %v1700
    %v1709 = vcombine.high %v1707, %v1707
    %v1711 = vunpack.c.l.s4 1966171168
    %v1712 = vunpack.c.0.s8 %v1711
    %v1713 = vlaneseq
    %v1714 = vshrl.u32 %v1713, 7
    %v1715 = vsub.s32 %v1712, %v1714
    %v1716 = vrot.slane %v1700, %v1715
    %v1718 = vunpack.c.l.s4 1966171168
    %v1719 = vunpack.c.0.s8 %v1718
    %v1720 = vlaneseq
    %v1721 = vshrl.u32 %v1720, 7
    %v1722 = vsub.s32 %v1719, %v1721
    %v1723 = vrot.slane %v1707, %v1722
    %v1725 = vunpack.c.l.s4 1966171168
    %v1726 = vunpack.c.0.s8 %v1725
    %v1727 = vlaneseq
    %v1728 = vshrl.u32 %v1727, 7
    %v1729 = vsub.s32 %v1726, %v1728
    %v1730 = vrot.slane %v1708, %v1729
    %v1732 = vunpack.c.l.s4 1966171168
    %v1733 = vunpack.c.0.s8 %v1732
    %v1734 = vlaneseq
    %v1735 = vshrl.u32 %v1734, 7
    %v1736 = vsub.s32 %v1733, %v1735
    %v1737 = vrot.slane %v1709, %v1736
    %v1738 = vcombine.high %v1716, %v1716
    %v1739 = vcombine.high %v1723, %v1723
    %v1740 = vcombine.high %v1730, %v1730
    %v1741 = vcombine.high %v1737, %v1737
    %v1742 = vcombine.high %v1638, %v1638
    %v1744 = vunpack.c.l.s4 1966171168
    %v1745 = vunpack.c.0.s8 %v1744
    %v1746 = vlaneseq
    %v1747 = vshrl.u32 %v1746, 7
    %v1748 = vsub.s32 %v1745, %v1747
    %v1749 = vrot.slane %v1638, %v1748
    %v1751 = vunpack.c.l.s4 1966171168
    %v1752 = vunpack.c.0.s8 %v1751
    %v1753 = vlaneseq
    %v1754 = vshrl.u32 %v1753, 7
    %v1755 = vsub.s32 %v1752, %v1754
    %v1756 = vrot.slane %v1742, %v1755
    %v1757 = vcombine.high %v1749, %v1749
    %v1758 = vcombine.high %v1756, %v1756
    %v1760 = vunpack.c.l.s4 1966171168
    %v1761 = vunpack.c.0.s8 %v1760
    %v1762 = vlaneseq
    %v1763 = vshrl.u32 %v1762, 7
    %v1764 = vsub.s32 %v1761, %v1763
    %v1765 = vrot.slane %v1749, %v1764
    %v1767 = vunpack.c.l.s4 1966171168
    %v1768 = vunpack.c.0.s8 %v1767
    %v1769 = vlaneseq
    %v1770 = vshrl.u32 %v1769, 7
    %v1771 = vsub.s32 %v1768, %v1770
    %v1772 = vrot.slane %v1756, %v1771
    %v1774 = vunpack.c.l.s4 1966171168
    %v1775 = vunpack.c.0.s8 %v1774
    %v1776 = vlaneseq
    %v1777 = vshrl.u32 %v1776, 7
    %v1778 = vsub.s32 %v1775, %v1777
    %v1779 = vrot.slane %v1757, %v1778
    %v1781 = vunpack.c.l.s4 1966171168
    %v1782 = vunpack.c.0.s8 %v1781
    %v1783 = vlaneseq
    %v1784 = vshrl.u32 %v1783, 7
    %v1785 = vsub.s32 %v1782, %v1784
    %v1786 = vrot.slane %v1758, %v1785
    %v1787 = vcombine.high %v1765, %v1765
    %v1788 = vcombine.high %v1772, %v1772
    %v1789 = vcombine.high %v1779, %v1779
    %v1790 = vcombine.high %v1786, %v1786
    %v1791 = vcombine.high %v1639, %v1639
    %v1793 = vunpack.c.l.s4 1966171168
    %v1794 = vunpack.c.0.s8 %v1793
    %v1795 = vlaneseq
    %v1796 = vshrl.u32 %v1795, 7
    %v1797 = vsub.s32 %v1794, %v1796
    %v1798 = vrot.slane %v1639, %v1797
    %v1800 = vunpack.c.l.s4 1966171168
    %v1801 = vunpack.c.0.s8 %v1800
    %v1802 = vlaneseq
    %v1803 = vshrl.u32 %v1802, 7
    %v1804 = vsub.s32 %v1801, %v1803
    %v1805 = vrot.slane %v1791, %v1804
    %v1806 = vcombine.high %v1798, %v1798
    %v1807 = vcombine.high %v1805, %v1805
    %v1809 = vunpack.c.l.s4 1966171168
    %v1810 = vunpack.c.0.s8 %v1809
    %v1811 = vlaneseq
    %v1812 = vshrl.u32 %v1811, 7
    %v1813 = vsub.s32 %v1810, %v1812
    %v1814 = vrot.slane %v1798, %v1813
    %v1816 = vunpack.c.l.s4 1966171168
    %v1817 = vunpack.c.0.s8 %v1816
    %v1818 = vlaneseq
    %v1819 = vshrl.u32 %v1818, 7
    %v1820 = vsub.s32 %v1817, %v1819
    %v1821 = vrot.slane %v1805, %v1820
    %v1823 = vunpack.c.l.s4 1966171168
    %v1824 = vunpack.c.0.s8 %v1823
    %v1825 = vlaneseq
    %v1826 = vshrl.u32 %v1825, 7
    %v1827 = vsub.s32 %v1824, %v1826
    %v1828 = vrot.slane %v1806, %v1827
    %v1830 = vunpack.c.l.s4 1966171168
    %v1831 = vunpack.c.0.s8 %v1830
    %v1832 = vlaneseq
    %v1833 = vshrl.u32 %v1832, 7
    %v1834 = vsub.s32 %v1831, %v1833
    %v1835 = vrot.slane %v1807, %v1834
    %v1836 = vcombine.high %v1814, %v1814
    %v1837 = vcombine.high %v1821, %v1821
    %v1838 = vcombine.high %v1828, %v1828
    %v1839 = vcombine.high %v1835, %v1835
    %v1840 = vlaneseq
    %v1841 = vshrl.u32 %v1840, 7
    %v1842 = vsub.s32 0, %v1841
    %v1843 = vrot.slane %v1667, %v1842
    %v1844 = vlaneseq
    %v1845 = vshrl.u32 %v1844, 7
    %v1846 = vsub.s32 0, %v1845
    %v1847 = vrot.slane %v1681, %v1846
    %v1848 = vlaneseq
    %v1849 = vshrl.u32 %v1848, 7
    %v1850 = vsub.s32 0, %v1849
    %v1851 = vrot.slane %v1689, %v1850
    %v1852 = vlaneseq
    %v1853 = vshrl.u32 %v1852, 7
    %v1854 = vsub.s32 0, %v1853
    %v1855 = vrot.slane %v1691, %v1854
    %v1856 = vlaneseq
    %v1857 = vshrl.u32 %v1856, 7
    %v1858 = vsub.s32 0, %v1857
    %v1859 = vrot.slane %v1674, %v1858
    %v1860 = vlaneseq
    %v1861 = vshrl.u32 %v1860, 7
    %v1862 = vsub.s32 0, %v1861
    %v1863 = vrot.slane %v1688, %v1862
    %v1864 = vlaneseq
    %v1865 = vshrl.u32 %v1864, 7
    %v1866 = vsub.s32 0, %v1865
    %v1867 = vrot.slane %v1690, %v1866
    %v1868 = vlaneseq
    %v1869 = vshrl.u32 %v1868, 7
    %v1870 = vsub.s32 0, %v1869
    %v1871 = vrot.slane %v1692, %v1870
    %v1872 = vlaneseq
    %v1873 = vshrl.u32 %v1872, 7
    %v1874 = vsub.s32 0, %v1873
    %v1875 = vrot.slane %v1716, %v1874
    %v1876 = vlaneseq
    %v1877 = vshrl.u32 %v1876, 7
    %v1878 = vsub.s32 0, %v1877
    %v1879 = vrot.slane %v1730, %v1878
    %v1880 = vlaneseq
    %v1881 = vshrl.u32 %v1880, 7
    %v1882 = vsub.s32 0, %v1881
    %v1883 = vrot.slane %v1738, %v1882
    %v1884 = vlaneseq
    %v1885 = vshrl.u32 %v1884, 7
    %v1886 = vsub.s32 0, %v1885
    %v1887 = vrot.slane %v1740, %v1886
    %v1888 = vlaneseq
    %v1889 = vshrl.u32 %v1888, 7
    %v1890 = vsub.s32 0, %v1889
    %v1891 = vrot.slane %v1723, %v1890
    %v1892 = vlaneseq
    %v1893 = vshrl.u32 %v1892, 7
    %v1894 = vsub.s32 0, %v1893
    %v1895 = vrot.slane %v1737, %v1894
    %v1896 = vlaneseq
    %v1897 = vshrl.u32 %v1896, 7
    %v1898 = vsub.s32 0, %v1897
    %v1899 = vrot.slane %v1739, %v1898
    %v1900 = vlaneseq
    %v1901 = vshrl.u32 %v1900, 7
    %v1902 = vsub.s32 0, %v1901
    %v1903 = vrot.slane %v1741, %v1902
    %v1904 = vlaneseq
    %v1905 = vshrl.u32 %v1904, 7
    %v1906 = vsub.s32 0, %v1905
    %v1907 = vrot.slane %v1765, %v1906
    %v1908 = vlaneseq
    %v1909 = vshrl.u32 %v1908, 7
    %v1910 = vsub.s32 0, %v1909
    %v1911 = vrot.slane %v1779, %v1910
    %v1912 = vlaneseq
    %v1913 = vshrl.u32 %v1912, 7
    %v1914 = vsub.s32 0, %v1913
    %v1915 = vrot.slane %v1787, %v1914
    %v1916 = vlaneseq
    %v1917 = vshrl.u32 %v1916, 7
    %v1918 = vsub.s32 0, %v1917
    %v1919 = vrot.slane %v1789, %v1918
    %v1920 = vlaneseq
    %v1921 = vshrl.u32 %v1920, 7
    %v1922 = vsub.s32 0, %v1921
    %v1923 = vrot.slane %v1772, %v1922
    %v1924 = vlaneseq
    %v1925 = vshrl.u32 %v1924, 7
    %v1926 = vsub.s32 0, %v1925
    %v1927 = vrot.slane %v1786, %v1926
    %v1928 = vlaneseq
    %v1929 = vshrl.u32 %v1928, 7
    %v1930 = vsub.s32 0, %v1929
    %v1931 = vrot.slane %v1788, %v1930
    %v1932 = vlaneseq
    %v1933 = vshrl.u32 %v1932, 7
    %v1934 = vsub.s32 0, %v1933
    %v1935 = vrot.slane %v1790, %v1934
    %v1936 = vlaneseq
    %v1937 = vshrl.u32 %v1936, 7
    %v1938 = vsub.s32 0, %v1937
    %v1939 = vrot.slane %v1814, %v1938
    %v1940 = vlaneseq
    %v1941 = vshrl.u32 %v1940, 7
    %v1942 = vsub.s32 0, %v1941
    %v1943 = vrot.slane %v1828, %v1942
    %v1944 = vlaneseq
    %v1945 = vshrl.u32 %v1944, 7
    %v1946 = vsub.s32 0, %v1945
    %v1947 = vrot.slane %v1836, %v1946
    %v1948 = vlaneseq
    %v1949 = vshrl.u32 %v1948, 7
    %v1950 = vsub.s32 0, %v1949
    %v1951 = vrot.slane %v1838, %v1950
    %v1952 = vlaneseq
    %v1953 = vshrl.u32 %v1952, 7
    %v1954 = vsub.s32 0, %v1953
    %v1955 = vrot.slane %v1821, %v1954
    %v1956 = vlaneseq
    %v1957 = vshrl.u32 %v1956, 7
    %v1958 = vsub.s32 0, %v1957
    %v1959 = vrot.slane %v1835, %v1958
    %v1960 = vlaneseq
    %v1961 = vshrl.u32 %v1960, 7
    %v1962 = vsub.s32 0, %v1961
    %v1963 = vrot.slane %v1837, %v1962
    %v1964 = vlaneseq
    %v1965 = vshrl.u32 %v1964, 7
    %v1966 = vsub.s32 0, %v1965
    %v1967 = vrot.slane %v1839, %v1966
    %v2000 = vmul.f32 %v1843, %v55
    %v2001 = vmul.f32 %v1847, %v55
    %v2002 = vmul.f32 %v1851, %v55
    %v2003 = vmul.f32 %v1855, %v55
    %v2004 = vmul.f32 %v1859, %v55
    %v2005 = vmul.f32 %v1863, %v55
    %v2006 = vmul.f32 %v1867, %v55
    %v2007 = vmul.f32 %v1871, %v55
    %v2008 = vmul.f32 %v1875, %v55
    %v2009 = vmul.f32 %v1879, %v55
    %v2010 = vmul.f32 %v1883, %v55
    %v2011 = vmul.f32 %v1887, %v55
    %v2012 = vmul.f32 %v1891, %v55
    %v2013 = vmul.f32 %v1895, %v55
    %v2014 = vmul.f32 %v1899, %v55
    %v2015 = vmul.f32 %v1903, %v55
    %v2016 = vmul.f32 %v1907, %v55
    %v2017 = vmul.f32 %v1911, %v55
    %v2018 = vmul.f32 %v1915, %v55
    %v2019 = vmul.f32 %v1919, %v55
    %v2020 = vmul.f32 %v1923, %v55
    %v2021 = vmul.f32 %v1927, %v55
    %v2022 = vmul.f32 %v1931, %v55
    %v2023 = vmul.f32 %v1935, %v55
    %v2024 = vmul.f32 %v1939, %v55
    %v2025 = vmul.f32 %v1943, %v55
    %v2026 = vmul.f32 %v1947, %v55
    %v2027 = vmul.f32 %v1951, %v55
    %v2028 = vmul.f32 %v1955, %v55
    %v2029 = vmul.f32 %v1959, %v55
    %v2030 = vmul.f32 %v1963, %v55
    %v2031 = vmul.f32 %v1967, %v55
    %2032 = vmax.xlane.f32.xlu0 %v2000
    %v2033 = vpop.xlane.xlu0 %2032
    %2034 = vmax.xlane.f32.xlu0 %v2001
    %v2035 = vpop.xlane.xlu0 %2034
    %2036 = vmax.xlane.f32.xlu0 %v2002
    %v2037 = vpop.xlane.xlu0 %2036
    %2038 = vmax.xlane.f32.xlu0 %v2003
    %v2039 = vpop.xlane.xlu0 %2038
    %2040 = vmax.xlane.f32.xlu0 %v2004
    %v2041 = vpop.xlane.xlu0 %2040
    %2042 = vmax.xlane.f32.xlu0 %v2005
    %v2043 = vpop.xlane.xlu0 %2042
    %2044 = vmax.xlane.f32.xlu0 %v2006
    %v2045 = vpop.xlane.xlu0 %2044
    %2046 = vmax.xlane.f32.xlu0 %v2007
    %v2047 = vpop.xlane.xlu0 %2046
    %2048 = vmax.xlane.f32.xlu0 %v2008
    %v2049 = vpop.xlane.xlu0 %2048
    %2050 = vmax.xlane.f32.xlu0 %v2009
    %v2051 = vpop.xlane.xlu0 %2050
    %2052 = vmax.xlane.f32.xlu0 %v2010
    %v2053 = vpop.xlane.xlu0 %2052
    %2054 = vmax.xlane.f32.xlu0 %v2011
    %v2055 = vpop.xlane.xlu0 %2054
    %2056 = vmax.xlane.f32.xlu0 %v2012
    %v2057 = vpop.xlane.xlu0 %2056
    %2058 = vmax.xlane.f32.xlu0 %v2013
    %v2059 = vpop.xlane.xlu0 %2058
    %2060 = vmax.xlane.f32.xlu0 %v2014
    %v2061 = vpop.xlane.xlu0 %2060
    %2062 = vmax.xlane.f32.xlu0 %v2015
    %v2063 = vpop.xlane.xlu0 %2062
    %2064 = vmax.xlane.f32.xlu0 %v2016
    %v2065 = vpop.xlane.xlu0 %2064
    %2066 = vmax.xlane.f32.xlu0 %v2017
    %v2067 = vpop.xlane.xlu0 %2066
    %2068 = vmax.xlane.f32.xlu0 %v2018
    %v2069 = vpop.xlane.xlu0 %2068
    %2070 = vmax.xlane.f32.xlu0 %v2019
    %v2071 = vpop.xlane.xlu0 %2070
    %2072 = vmax.xlane.f32.xlu0 %v2020
    %v2073 = vpop.xlane.xlu0 %2072
    %2074 = vmax.xlane.f32.xlu0 %v2021
    %v2075 = vpop.xlane.xlu0 %2074
    %2076 = vmax.xlane.f32.xlu0 %v2022
    %v2077 = vpop.xlane.xlu0 %2076
    %2078 = vmax.xlane.f32.xlu0 %v2023
    %v2079 = vpop.xlane.xlu0 %2078
    %2080 = vmax.xlane.f32.xlu0 %v2024
    %v2081 = vpop.xlane.xlu0 %2080
    %2082 = vmax.xlane.f32.xlu0 %v2025
    %v2083 = vpop.xlane.xlu0 %2082
    %2084 = vmax.xlane.f32.xlu0 %v2026
    %v2085 = vpop.xlane.xlu0 %2084
    %2086 = vmax.xlane.f32.xlu0 %v2027
    %v2087 = vpop.xlane.xlu0 %2086
    %2088 = vmax.xlane.f32.xlu0 %v2028
    %v2089 = vpop.xlane.xlu0 %2088
    %2090 = vmax.xlane.f32.xlu0 %v2029
    %v2091 = vpop.xlane.xlu0 %2090
    %2092 = vmax.xlane.f32.xlu0 %v2030
    %v2093 = vpop.xlane.xlu0 %2092
    %2094 = vmax.xlane.f32.xlu0 %v2031
    %v2095 = vpop.xlane.xlu0 %2094
    %v2096 = vmax.f32 %v2033, 0.0
    %v2097 = vmax.f32 %v2035, 0.0
    %v2098 = vmax.f32 %v2037, 0.0
    %v2099 = vmax.f32 %v2039, 0.0
    %v2100 = vmax.f32 %v2041, 0.0
    %v2101 = vmax.f32 %v2043, 0.0
    %v2102 = vmax.f32 %v2045, 0.0
    %v2103 = vmax.f32 %v2047, 0.0
    %v2104 = vmax.f32 %v2049, 0.0
    %v2105 = vmax.f32 %v2051, 0.0
    %v2106 = vmax.f32 %v2053, 0.0
    %v2107 = vmax.f32 %v2055, 0.0
    %v2108 = vmax.f32 %v2057, 0.0
    %v2109 = vmax.f32 %v2059, 0.0
    %v2110 = vmax.f32 %v2061, 0.0
    %v2111 = vmax.f32 %v2063, 0.0
    %v2112 = vmax.f32 %v2065, 0.0
    %v2113 = vmax.f32 %v2067, 0.0
    %v2114 = vmax.f32 %v2069, 0.0
    %v2115 = vmax.f32 %v2071, 0.0
    %v2116 = vmax.f32 %v2073, 0.0
    %v2117 = vmax.f32 %v2075, 0.0
    %v2118 = vmax.f32 %v2077, 0.0
    %v2119 = vmax.f32 %v2079, 0.0
    %v2120 = vmax.f32 %v2081, 0.0
    %v2121 = vmax.f32 %v2083, 0.0
    %v2122 = vmax.f32 %v2085, 0.0
    %v2123 = vmax.f32 %v2087, 0.0
    %v2124 = vmax.f32 %v2089, 0.0
    %v2125 = vmax.f32 %v2091, 0.0
    %v2126 = vmax.f32 %v2093, 0.0
    %v2127 = vmax.f32 %v2095, 0.0
    %v2160 = vlaneseq
    %v2161 = vshrl.u32 %v2160, 7
    %v2162 = vsub.s32 %v1056, %v2161
    %v2163 = vrot.slane %v2096, %v2162
    %v2164 = vlaneseq
    %v2165 = vshrl.u32 %v2164, 7
    %v2166 = vsub.s32 %v1056, %v2165
    %v2167 = vrot.slane %v2097, %v2166
    %v2168 = vlaneseq
    %v2169 = vshrl.u32 %v2168, 7
    %v2170 = vsub.s32 %v1056, %v2169
    %v2171 = vrot.slane %v2098, %v2170
    %v2172 = vlaneseq
    %v2173 = vshrl.u32 %v2172, 7
    %v2174 = vsub.s32 %v1056, %v2173
    %v2175 = vrot.slane %v2099, %v2174
    %v2176 = vlaneseq
    %v2177 = vshrl.u32 %v2176, 7
    %v2178 = vsub.s32 %v1056, %v2177
    %v2179 = vrot.slane %v2100, %v2178
    %v2180 = vlaneseq
    %v2181 = vshrl.u32 %v2180, 7
    %v2182 = vsub.s32 %v1056, %v2181
    %v2183 = vrot.slane %v2101, %v2182
    %v2184 = vlaneseq
    %v2185 = vshrl.u32 %v2184, 7
    %v2186 = vsub.s32 %v1056, %v2185
    %v2187 = vrot.slane %v2102, %v2186
    %v2188 = vlaneseq
    %v2189 = vshrl.u32 %v2188, 7
    %v2190 = vsub.s32 %v1056, %v2189
    %v2191 = vrot.slane %v2103, %v2190
    %v2192 = vlaneseq
    %v2193 = vshrl.u32 %v2192, 7
    %v2194 = vsub.s32 %v1056, %v2193
    %v2195 = vrot.slane %v2104, %v2194
    %v2196 = vlaneseq
    %v2197 = vshrl.u32 %v2196, 7
    %v2198 = vsub.s32 %v1056, %v2197
    %v2199 = vrot.slane %v2105, %v2198
    %v2200 = vlaneseq
    %v2201 = vshrl.u32 %v2200, 7
    %v2202 = vsub.s32 %v1056, %v2201
    %v2203 = vrot.slane %v2106, %v2202
    %v2204 = vlaneseq
    %v2205 = vshrl.u32 %v2204, 7
    %v2206 = vsub.s32 %v1056, %v2205
    %v2207 = vrot.slane %v2107, %v2206
    %v2208 = vlaneseq
    %v2209 = vshrl.u32 %v2208, 7
    %v2210 = vsub.s32 %v1056, %v2209
    %v2211 = vrot.slane %v2108, %v2210
    %v2212 = vlaneseq
    %v2213 = vshrl.u32 %v2212, 7
    %v2214 = vsub.s32 %v1056, %v2213
    %v2215 = vrot.slane %v2109, %v2214
    %v2216 = vlaneseq
    %v2217 = vshrl.u32 %v2216, 7
    %v2218 = vsub.s32 %v1056, %v2217
    %v2219 = vrot.slane %v2110, %v2218
    %v2220 = vlaneseq
    %v2221 = vshrl.u32 %v2220, 7
    %v2222 = vsub.s32 %v1056, %v2221
    %v2223 = vrot.slane %v2111, %v2222
    %v2224 = vlaneseq
    %v2225 = vshrl.u32 %v2224, 7
    %v2226 = vsub.s32 %v1056, %v2225
    %v2227 = vrot.slane %v2112, %v2226
    %v2228 = vlaneseq
    %v2229 = vshrl.u32 %v2228, 7
    %v2230 = vsub.s32 %v1056, %v2229
    %v2231 = vrot.slane %v2113, %v2230
    %v2232 = vlaneseq
    %v2233 = vshrl.u32 %v2232, 7
    %v2234 = vsub.s32 %v1056, %v2233
    %v2235 = vrot.slane %v2114, %v2234
    %v2236 = vlaneseq
    %v2237 = vshrl.u32 %v2236, 7
    %v2238 = vsub.s32 %v1056, %v2237
    %v2239 = vrot.slane %v2115, %v2238
    %v2240 = vlaneseq
    %v2241 = vshrl.u32 %v2240, 7
    %v2242 = vsub.s32 %v1056, %v2241
    %v2243 = vrot.slane %v2116, %v2242
    %v2244 = vlaneseq
    %v2245 = vshrl.u32 %v2244, 7
    %v2246 = vsub.s32 %v1056, %v2245
    %v2247 = vrot.slane %v2117, %v2246
    %v2248 = vlaneseq
    %v2249 = vshrl.u32 %v2248, 7
    %v2250 = vsub.s32 %v1056, %v2249
    %v2251 = vrot.slane %v2118, %v2250
    %v2252 = vlaneseq
    %v2253 = vshrl.u32 %v2252, 7
    %v2254 = vsub.s32 %v1056, %v2253
    %v2255 = vrot.slane %v2119, %v2254
    %v2256 = vlaneseq
    %v2257 = vshrl.u32 %v2256, 7
    %v2258 = vsub.s32 %v1056, %v2257
    %v2259 = vrot.slane %v2120, %v2258
    %v2260 = vlaneseq
    %v2261 = vshrl.u32 %v2260, 7
    %v2262 = vsub.s32 %v1056, %v2261
    %v2263 = vrot.slane %v2121, %v2262
    %v2264 = vlaneseq
    %v2265 = vshrl.u32 %v2264, 7
    %v2266 = vsub.s32 %v1056, %v2265
    %v2267 = vrot.slane %v2122, %v2266
    %v2268 = vlaneseq
    %v2269 = vshrl.u32 %v2268, 7
    %v2270 = vsub.s32 %v1056, %v2269
    %v2271 = vrot.slane %v2123, %v2270
    %v2272 = vlaneseq
    %v2273 = vshrl.u32 %v2272, 7
    %v2274 = vsub.s32 %v1056, %v2273
    %v2275 = vrot.slane %v2124, %v2274
    %v2276 = vlaneseq
    %v2277 = vshrl.u32 %v2276, 7
    %v2278 = vsub.s32 %v1056, %v2277
    %v2279 = vrot.slane %v2125, %v2278
    %v2280 = vlaneseq
    %v2281 = vshrl.u32 %v2280, 7
    %v2282 = vsub.s32 %v1056, %v2281
    %v2283 = vrot.slane %v2126, %v2282
    %v2284 = vlaneseq
    %v2285 = vshrl.u32 %v2284, 7
    %v2286 = vsub.s32 %v1056, %v2285
    %v2287 = vrot.slane %v2127, %v2286
    %v2288 = vsel %vm1185, %v2167, %v2163
    %v2289 = vsel %vm1187, %v2171, %v2288
    %v2290 = vsel %vm1189, %v2175, %v2289
    %v2291 = vsel %vm1191, %v2179, %v2290
    %v2292 = vsel %vm1193, %v2183, %v2291
    %v2293 = vsel %vm1195, %v2187, %v2292
    %v2294 = vsel %vm1197, %v2191, %v2293
    %v2295 = vsel %vm1185, %v2199, %v2195
    %v2296 = vsel %vm1187, %v2203, %v2295
    %v2297 = vsel %vm1189, %v2207, %v2296
    %v2298 = vsel %vm1191, %v2211, %v2297
    %v2299 = vsel %vm1193, %v2215, %v2298
    %v2300 = vsel %vm1195, %v2219, %v2299
    %v2301 = vsel %vm1197, %v2223, %v2300
    %v2302 = vsel %vm1185, %v2231, %v2227
    %v2303 = vsel %vm1187, %v2235, %v2302
    %v2304 = vsel %vm1189, %v2239, %v2303
    %v2305 = vsel %vm1191, %v2243, %v2304
    %v2306 = vsel %vm1193, %v2247, %v2305
    %v2307 = vsel %vm1195, %v2251, %v2306
    %v2308 = vsel %vm1197, %v2255, %v2307
    %v2309 = vsel %vm1185, %v2263, %v2259
    %v2310 = vsel %vm1187, %v2267, %v2309
    %v2311 = vsel %vm1189, %v2271, %v2310
    %v2312 = vsel %vm1191, %v2275, %v2311
    %v2313 = vsel %vm1193, %v2279, %v2312
    %v2314 = vsel %vm1195, %v2283, %v2313
    %v2315 = vsel %vm1197, %v2287, %v2314
    %2320 = vmatprep.subr.mxu0 0.0
    %2321 = vmatpush1.msra.mxu0 %v1388
    %2322 = vmatprep.subr.mxu0 0.0
    %2323 = vmatpush1.msra.mxu0 %v2294
    %2324 = vmatprep.subr.mxu0 0.0
    %2325 = vmatpush1.msra.mxu0 %v2301
    %2326 = vmatprep.subr.mxu0 0.0
    %2327 = vmatpush1.msra.mxu0 %v2308
    %2328 = vmatprep.subr.mxu0 0.0
    %2329 = vmatpush1.msra.mxu0 %v2315
    %2330 = vmatprep.subr.mxu0 0.0
    %2331 = vmatpush1.msra.mxu0 0.0
    %2332 = vmatprep.subr.mxu0 0.0
    %2333 = vmatpush1.msra.mxu0 0.0
    %2334 = vmatprep.subr.mxu0 0.0
    %2335 = vmatpush1.msra.mxu0 0.0
    %2336 = vmatprep.subr.mxu0 0.0
    %2337 = vmatpush1.msra.mxu0 0.0
    %2338 = vmatprep.subr.mxu0 0.0
    %2339 = vmatpush1.msra.mxu0 0.0
    %2340 = vmatprep.subr.mxu0 0.0
    %2341 = vmatpush1.msra.mxu0 0.0
    %2342 = vmatprep.subr.mxu0 0.0
    %2343 = vmatpush1.msra.mxu0 0.0
    %2344 = vmatprep.subr.mxu0 0.0
    %2345 = vmatpush1.msra.mxu0 0.0
    %2346 = vmatprep.subr.mxu0 0.0
    %2347 = vmatpush1.msra.mxu0 0.0
    %2348 = vmatprep.subr.mxu0 0.0
    %2349 = vmatpush1.msra.mxu0 0.0
    %2350 = vmatprep.subr.mxu0 0.0
    %2351 = vmatpush1.msra.mxu0 0.0
    %2352 = vmatprep.subr.mxu0 0.0
    %2353 = vmatpush1.msra.mxu0 0.0
    %2354 = vmatprep.subr.mxu0 0.0
    %2355 = vmatpush1.msra.mxu0 0.0
    %2356 = vmatprep.subr.mxu0 0.0
    %2357 = vmatpush1.msra.mxu0 0.0
    %2358 = vmatprep.subr.mxu0 0.0
    %2359 = vmatpush1.msra.mxu0 0.0
    %2360 = vmatprep.subr.mxu0 0.0
    %2361 = vmatpush1.msra.mxu0 0.0
    %2362 = vmatprep.subr.mxu0 0.0
    %2363 = vmatpush1.msra.mxu0 0.0
    %2364 = vmatprep.subr.mxu0 0.0
    %2365 = vmatpush1.msra.mxu0 0.0
    %2366 = vmatprep.subr.mxu0 0.0
    %2367 = vmatpush1.msra.mxu0 0.0
    %2368 = vmatprep.subr.mxu0 0.0
    %2369 = vmatpush1.msra.mxu0 0.0
    %2370 = vmatprep.subr.mxu0 0.0
    %2371 = vmatpush1.msra.mxu0 0.0
    %2372 = vmatprep.subr.mxu0 0.0
    %2373 = vmatpush1.msra.mxu0 0.0
    %2374 = vmatprep.subr.mxu0 0.0
    %2375 = vmatpush1.msra.mxu0 0.0
    %2376 = vmatprep.subr.mxu0 0.0
    %2377 = vmatpush1.msra.mxu0 0.0
    %2378 = vmatprep.subr.mxu0 0.0
    %2379 = vmatpush1.msra.mxu0 0.0
    %2380 = vmatprep.subr.mxu0 0.0
    %2381 = vmatpush1.msra.mxu0 0.0
    %2382 = vmatprep.subr.mxu0 0.0
    %2383 = vmatpush1.msra.mxu0 0.0
    %2384 = vmatprep.mubr.f32.mxu0 0.0
    %2385 = vmatmul.mubr.f32.gmra.mrb[0].mxu0 %v1229
    %v2386 = vpop.f32.mrb[0].mxu0
    %v2387 = vadd.f32 %v232, %v2386
    %v2388 = vpop.f32.mrb[0].mxu0
    %2389 = vmatprep.mubr.f32.mxu0 0.0
    %2390 = vmatmul.mubr.f32.gmra.mrb[0].mxu0 %v1231
    %v2391 = vpop.f32.mrb[0].mxu0
    %v2392 = vadd.f32 %v233, %v2391
    %v2393 = vpop.f32.mrb[0].mxu0
    %2394 = vdwg.mxu0
    %v2395 = vmax.f32 %v2387, 0.0
    %v2396 = vmax.f32 %v2392, 0.0
    %2397 = vmatprep.subr.mxu0 0.0
    %2398 = vmatpush1.msra.mxu0 %v2395
    %2399 = vmatprep.subr.mxu0 0.0
    %2400 = vmatpush1.msra.mxu0 %v2396
    %2401 = vmatprep.subr.mxu0 0.0
    %2402 = vmatpush1.msra.mxu0 0.0
    %2403 = vmatprep.subr.mxu0 0.0
    %2404 = vmatpush1.msra.mxu0 0.0
    %2405 = vmatprep.subr.mxu0 0.0
    %2406 = vmatpush1.msra.mxu0 0.0
    %2407 = vmatprep.subr.mxu0 0.0
    %2408 = vmatpush1.msra.mxu0 0.0
    %2409 = vmatprep.subr.mxu0 0.0
    %2410 = vmatpush1.msra.mxu0 0.0
    %2411 = vmatprep.subr.mxu0 0.0
    %2412 = vmatpush1.msra.mxu0 0.0
    %2413 = vmatprep.subr.mxu0 0.0
    %2414 = vmatpush1.msra.mxu0 0.0
    %2415 = vmatprep.subr.mxu0 0.0
    %2416 = vmatpush1.msra.mxu0 0.0
    %2417 = vmatprep.subr.mxu0 0.0
    %2418 = vmatpush1.msra.mxu0 0.0
    %2419 = vmatprep.subr.mxu0 0.0
    %2420 = vmatpush1.msra.mxu0 0.0
    %2421 = vmatprep.subr.mxu0 0.0
    %2422 = vmatpush1.msra.mxu0 0.0
    %2423 = vmatprep.subr.mxu0 0.0
    %2424 = vmatpush1.msra.mxu0 0.0
    %2425 = vmatprep.subr.mxu0 0.0
    %2426 = vmatpush1.msra.mxu0 0.0
    %2427 = vmatprep.subr.mxu0 0.0
    %2428 = vmatpush1.msra.mxu0 0.0
    %2429 = vmatprep.subr.mxu0 0.0
    %2430 = vmatpush1.msra.mxu0 0.0
    %2431 = vmatprep.subr.mxu0 0.0
    %2432 = vmatpush1.msra.mxu0 0.0
    %2433 = vmatprep.subr.mxu0 0.0
    %2434 = vmatpush1.msra.mxu0 0.0
    %2435 = vmatprep.subr.mxu0 0.0
    %2436 = vmatpush1.msra.mxu0 0.0
    %2437 = vmatprep.subr.mxu0 0.0
    %2438 = vmatpush1.msra.mxu0 0.0
    %2439 = vmatprep.subr.mxu0 0.0
    %2440 = vmatpush1.msra.mxu0 0.0
    %2441 = vmatprep.subr.mxu0 0.0
    %2442 = vmatpush1.msra.mxu0 0.0
    %2443 = vmatprep.subr.mxu0 0.0
    %2444 = vmatpush1.msra.mxu0 0.0
    %2445 = vmatprep.subr.mxu0 0.0
    %2446 = vmatpush1.msra.mxu0 0.0
    %2447 = vmatprep.subr.mxu0 0.0
    %2448 = vmatpush1.msra.mxu0 0.0
    %2449 = vmatprep.subr.mxu0 0.0
    %2450 = vmatpush1.msra.mxu0 0.0
    %2451 = vmatprep.subr.mxu0 0.0
    %2452 = vmatpush1.msra.mxu0 0.0
    %2453 = vmatprep.subr.mxu0 0.0
    %2454 = vmatpush1.msra.mxu0 0.0
    %2455 = vmatprep.subr.mxu0 0.0
    %2456 = vmatpush1.msra.mxu0 0.0
    %2457 = vmatprep.subr.mxu0 0.0
    %2458 = vmatpush1.msra.mxu0 0.0
    %2459 = vmatprep.subr.mxu0 0.0
    %2460 = vmatpush1.msra.mxu0 0.0
    %2461 = vmatprep.mubr.f32.mxu0 0.0
    %2462 = vmatmul.mubr.f32.gmra.mrb[0].mxu0 %v1316
    %v2463 = vpop.f32.mrb[0].mxu0
    %v2464 = vadd.f32 %v1313, %v2463
    %v2465 = vpop.f32.mrb[0].mxu0
    %2466 = vdwg.mxu0
    %v2467 = vmax.f32 %v2464, 0.0
    %v2469 = vsel %vm56, %v2467, 0
    %2471 = vmatprep.subr.mxu0 0.0
    %2472 = vmatpush1.msra.mxu0 %v48
    %2473 = vmatprep.subr.mxu0 0.0
    %2474 = vmatpush1.msra.mxu0 0.0
    %2475 = vmatprep.subr.mxu0 0.0
    %2476 = vmatpush1.msra.mxu0 0.0
    %2477 = vmatprep.subr.mxu0 0.0
    %2478 = vmatpush1.msra.mxu0 0.0
    %2479 = vmatprep.subr.mxu0 0.0
    %2480 = vmatpush1.msra.mxu0 0.0
    %2481 = vmatprep.subr.mxu0 0.0
    %2482 = vmatpush1.msra.mxu0 0.0
    %2483 = vmatprep.subr.mxu0 0.0
    %2484 = vmatpush1.msra.mxu0 0.0
    %2485 = vmatprep.subr.mxu0 0.0
    %2486 = vmatpush1.msra.mxu0 0.0
    %2487 = vmatprep.subr.mxu0 0.0
    %2488 = vmatpush1.msra.mxu0 0.0
    %2489 = vmatprep.subr.mxu0 0.0
    %2490 = vmatpush1.msra.mxu0 0.0
    %2491 = vmatprep.subr.mxu0 0.0
    %2492 = vmatpush1.msra.mxu0 0.0
    %2493 = vmatprep.subr.mxu0 0.0
    %2494 = vmatpush1.msra.mxu0 0.0
    %2495 = vmatprep.subr.mxu0 0.0
    %2496 = vmatpush1.msra.mxu0 0.0
    %2497 = vmatprep.subr.mxu0 0.0
    %2498 = vmatpush1.msra.mxu0 0.0
    %2499 = vmatprep.subr.mxu0 0.0
    %2500 = vmatpush1.msra.mxu0 0.0
    %2501 = vmatprep.subr.mxu0 0.0
    %2502 = vmatpush1.msra.mxu0 0.0
    %2503 = vmatprep.subr.mxu0 0.0
    %2504 = vmatpush1.msra.mxu0 0.0
    %2505 = vmatprep.subr.mxu0 0.0
    %2506 = vmatpush1.msra.mxu0 0.0
    %2507 = vmatprep.subr.mxu0 0.0
    %2508 = vmatpush1.msra.mxu0 0.0
    %2509 = vmatprep.subr.mxu0 0.0
    %2510 = vmatpush1.msra.mxu0 0.0
    %2511 = vmatprep.subr.mxu0 0.0
    %2512 = vmatpush1.msra.mxu0 0.0
    %2513 = vmatprep.subr.mxu0 0.0
    %2514 = vmatpush1.msra.mxu0 0.0
    %2515 = vmatprep.subr.mxu0 0.0
    %2516 = vmatpush1.msra.mxu0 0.0
    %2517 = vmatprep.subr.mxu0 0.0
    %2518 = vmatpush1.msra.mxu0 0.0
    %2519 = vmatprep.subr.mxu0 0.0
    %2520 = vmatpush1.msra.mxu0 0.0
    %2521 = vmatprep.subr.mxu0 0.0
    %2522 = vmatpush1.msra.mxu0 0.0
    %2523 = vmatprep.subr.mxu0 0.0
    %2524 = vmatpush1.msra.mxu0 0.0
    %2525 = vmatprep.subr.mxu0 0.0
    %2526 = vmatpush1.msra.mxu0 0.0
    %2527 = vmatprep.subr.mxu0 0.0
    %2528 = vmatpush1.msra.mxu0 0.0
    %2529 = vmatprep.subr.mxu0 0.0
    %2530 = vmatpush1.msra.mxu0 0.0
    %2531 = vmatprep.subr.mxu0 0.0
    %2532 = vmatpush1.msra.mxu0 0.0
    %2533 = vmatprep.subr.mxu0 0.0
    %2534 = vmatpush1.msra.mxu0 0.0
    %2535 = vmatprep.mubr.f32.mxu0 0.0
    %2536 = vmatmul.mubr.f32.gmra.mrb[0].mxu0 %v2469
    %v2537 = vpop.f32.mrb[0].mxu0
    %v2538 = vadd.f32 0.0, %v2537
    %v2539 = vpop.f32.mrb[0].mxu0
    %2540 = vdwg.mxu0
    %2541 = vmatprep.subr.mxu0 0.0
    %2542 = vmatpush1.msra.mxu0 %v2538
    %2543 = vmatprep.subr.mxu0 0.0
    %2544 = vmatpush1.msra.mxu0 0.0
    %2545 = vmatprep.subr.mxu0 0.0
    %2546 = vmatpush1.msra.mxu0 0.0
    %2547 = vmatprep.subr.mxu0 0.0
    %2548 = vmatpush1.msra.mxu0 0.0
    %2549 = vmatprep.subr.mxu0 0.0
    %2550 = vmatpush1.msra.mxu0 0.0
    %2551 = vmatprep.subr.mxu0 0.0
    %2552 = vmatpush1.msra.mxu0 0.0
    %2553 = vmatprep.subr.mxu0 0.0
    %2554 = vmatpush1.msra.mxu0 0.0
    %2555 = vmatprep.subr.mxu0 0.0
    %2556 = vmatpush1.msra.mxu0 0.0
    %2557 = vmatprep.subr.mxu0 0.0
    %2558 = vmatpush1.msra.mxu0 0.0
    %2559 = vmatprep.subr.mxu0 0.0
    %2560 = vmatpush1.msra.mxu0 0.0
    %2561 = vmatprep.subr.mxu0 0.0
    %2562 = vmatpush1.msra.mxu0 0.0
    %2563 = vmatprep.subr.mxu0 0.0
    %2564 = vmatpush1.msra.mxu0 0.0
    %2565 = vmatprep.subr.mxu0 0.0
    %2566 = vmatpush1.msra.mxu0 0.0
    %2567 = vmatprep.subr.mxu0 0.0
    %2568 = vmatpush1.msra.mxu0 0.0
    %2569 = vmatprep.subr.mxu0 0.0
    %2570 = vmatpush1.msra.mxu0 0.0
    %2571 = vmatprep.subr.mxu0 0.0
    %2572 = vmatpush1.msra.mxu0 0.0
    %2573 = vmatprep.subr.mxu0 0.0
    %2574 = vmatpush1.msra.mxu0 0.0
    %2575 = vmatprep.subr.mxu0 0.0
    %2576 = vmatpush1.msra.mxu0 0.0
    %2577 = vmatprep.subr.mxu0 0.0
    %2578 = vmatpush1.msra.mxu0 0.0
    %2579 = vmatprep.subr.mxu0 0.0
    %2580 = vmatpush1.msra.mxu0 0.0
    %2581 = vmatprep.subr.mxu0 0.0
    %2582 = vmatpush1.msra.mxu0 0.0
    %2583 = vmatprep.subr.mxu0 0.0
    %2584 = vmatpush1.msra.mxu0 0.0
    %2585 = vmatprep.subr.mxu0 0.0
    %2586 = vmatpush1.msra.mxu0 0.0
    %2587 = vmatprep.subr.mxu0 0.0
    %2588 = vmatpush1.msra.mxu0 0.0
    %2589 = vmatprep.subr.mxu0 0.0
    %2590 = vmatpush1.msra.mxu0 0.0
    %2591 = vmatprep.subr.mxu0 0.0
    %2592 = vmatpush1.msra.mxu0 0.0
    %2593 = vmatprep.subr.mxu0 0.0
    %2594 = vmatpush1.msra.mxu0 0.0
    %2595 = vmatprep.subr.mxu0 0.0
    %2596 = vmatpush1.msra.mxu0 0.0
    %2597 = vmatprep.subr.mxu0 0.0
    %2598 = vmatpush1.msra.mxu0 0.0
    %2599 = vmatprep.subr.mxu0 0.0
    %2600 = vmatpush1.msra.mxu0 0.0
    %2601 = vmatprep.subr.mxu0 0.0
    %2602 = vmatpush1.msra.mxu0 0.0
    %2603 = vmatprep.subr.mxu0 0.0
    %2604 = vmatpush1.msra.mxu0 0.0
    %2605 = vmatprep.mubr.f32.mxu0 0.0
    %2606 = vmatmul.mubr.f32.gmra.mrb[0].mxu0 %v319
    %v2607 = vpop.f32.mrb[0].mxu0
    %v2608 = vadd.f32 %v204, %v2607
    %v2609 = vpop.f32.mrb[0].mxu0
    %2610 = vmatprep.mubr.f32.mxu0 0.0
    %2611 = vmatmul.mubr.f32.gmra.mrb[0].mxu0 %v321
    %v2612 = vpop.f32.mrb[0].mxu0
    %v2613 = vadd.f32 %v205, %v2612
    %v2614 = vpop.f32.mrb[0].mxu0
    %2615 = vmatprep.mubr.f32.mxu0 0.0
    %2616 = vmatmul.mubr.f32.gmra.mrb[0].mxu0 %v323
    %v2617 = vpop.f32.mrb[0].mxu0
    %v2618 = vadd.f32 %v206, %v2617
    %v2619 = vpop.f32.mrb[0].mxu0
    %2620 = vmatprep.mubr.f32.mxu0 0.0
    %2621 = vmatmul.mubr.f32.gmra.mrb[0].mxu0 %v325
    %v2622 = vpop.f32.mrb[0].mxu0
    %v2623 = vadd.f32 %v207, %v2622
    %v2624 = vpop.f32.mrb[0].mxu0
    %2625 = vdwg.mxu0
    %v2626 = vmax.f32 %v2608, 0.0
    %v2627 = vmax.f32 %v2613, 0.0
    %v2628 = vmax.f32 %v2618, 0.0
    %v2629 = vmax.f32 %v2623, 0.0
    %2630 = vmatprep.subr.mxu0 0.0
    %2631 = vmatpush1.msra.mxu0 %v2626
    %2632 = vmatprep.subr.mxu0 0.0
    %2633 = vmatpush1.msra.mxu0 %v2627
    %2634 = vmatprep.subr.mxu0 0.0
    %2635 = vmatpush1.msra.mxu0 %v2628
    %2636 = vmatprep.subr.mxu0 0.0
    %2637 = vmatpush1.msra.mxu0 %v2629
    %2638 = vmatprep.subr.mxu0 0.0
    %2639 = vmatpush1.msra.mxu0 0.0
    %2640 = vmatprep.subr.mxu0 0.0
    %2641 = vmatpush1.msra.mxu0 0.0
    %2642 = vmatprep.subr.mxu0 0.0
    %2643 = vmatpush1.msra.mxu0 0.0
    %2644 = vmatprep.subr.mxu0 0.0
    %2645 = vmatpush1.msra.mxu0 0.0
    %2646 = vmatprep.subr.mxu0 0.0
    %2647 = vmatpush1.msra.mxu0 0.0
    %2648 = vmatprep.subr.mxu0 0.0
    %2649 = vmatpush1.msra.mxu0 0.0
    %2650 = vmatprep.subr.mxu0 0.0
    %2651 = vmatpush1.msra.mxu0 0.0
    %2652 = vmatprep.subr.mxu0 0.0
    %2653 = vmatpush1.msra.mxu0 0.0
    %2654 = vmatprep.subr.mxu0 0.0
    %2655 = vmatpush1.msra.mxu0 0.0
    %2656 = vmatprep.subr.mxu0 0.0
    %2657 = vmatpush1.msra.mxu0 0.0
    %2658 = vmatprep.subr.mxu0 0.0
    %2659 = vmatpush1.msra.mxu0 0.0
    %2660 = vmatprep.subr.mxu0 0.0
    %2661 = vmatpush1.msra.mxu0 0.0
    %2662 = vmatprep.subr.mxu0 0.0
    %2663 = vmatpush1.msra.mxu0 0.0
    %2664 = vmatprep.subr.mxu0 0.0
    %2665 = vmatpush1.msra.mxu0 0.0
    %2666 = vmatprep.subr.mxu0 0.0
    %2667 = vmatpush1.msra.mxu0 0.0
    %2668 = vmatprep.subr.mxu0 0.0
    %2669 = vmatpush1.msra.mxu0 0.0
    %2670 = vmatprep.subr.mxu0 0.0
    %2671 = vmatpush1.msra.mxu0 0.0
    %2672 = vmatprep.subr.mxu0 0.0
    %2673 = vmatpush1.msra.mxu0 0.0
    %2674 = vmatprep.subr.mxu0 0.0
    %2675 = vmatpush1.msra.mxu0 0.0
    %2676 = vmatprep.subr.mxu0 0.0
    %2677 = vmatpush1.msra.mxu0 0.0
    %2678 = vmatprep.subr.mxu0 0.0
    %2679 = vmatpush1.msra.mxu0 0.0
    %2680 = vmatprep.subr.mxu0 0.0
    %2681 = vmatpush1.msra.mxu0 0.0
    %2682 = vmatprep.subr.mxu0 0.0
    %2683 = vmatpush1.msra.mxu0 0.0
    %2684 = vmatprep.subr.mxu0 0.0
    %2685 = vmatpush1.msra.mxu0 0.0
    %2686 = vmatprep.subr.mxu0 0.0
    %2687 = vmatpush1.msra.mxu0 0.0
    %2688 = vmatprep.subr.mxu0 0.0
    %2689 = vmatpush1.msra.mxu0 0.0
    %2690 = vmatprep.subr.mxu0 0.0
    %2691 = vmatpush1.msra.mxu0 0.0
    %2692 = vmatprep.subr.mxu0 0.0
    %2693 = vmatpush1.msra.mxu0 0.0
    %2694 = vmatprep.mubr.f32.mxu0 0.0
    %2695 = vmatmul.mubr.f32.gmra.mrb[0].mxu0 %v437
    %v2696 = vpop.f32.mrb[0].mxu0
    %v2697 = vadd.f32 %v419, %v2696
    %v2698 = vpop.f32.mrb[0].mxu0
    %2699 = vmatprep.mubr.f32.mxu0 0.0
    %2700 = vmatmul.mubr.f32.gmra.mrb[0].mxu0 %v439
    %v2701 = vpop.f32.mrb[0].mxu0
    %v2702 = vadd.f32 %v424, %v2701
    %v2703 = vpop.f32.mrb[0].mxu0
    %2704 = vmatprep.mubr.f32.mxu0 0.0
    %2705 = vmatmul.mubr.f32.gmra.mrb[0].mxu0 %v441
    %v2706 = vpop.f32.mrb[0].mxu0
    %v2707 = vadd.f32 %v429, %v2706
    %v2708 = vpop.f32.mrb[0].mxu0
    %2709 = vmatprep.mubr.f32.mxu0 0.0
    %2710 = vmatmul.mubr.f32.gmra.mrb[0].mxu0 %v443
    %v2711 = vpop.f32.mrb[0].mxu0
    %v2712 = vadd.f32 %v434, %v2711
    %v2713 = vpop.f32.mrb[0].mxu0
    %2714 = vdwg.mxu0
    %v2715 = vmax.f32 %v2697, 0.0
    %v2716 = vmax.f32 %v2702, 0.0
    %v2717 = vmax.f32 %v2707, 0.0
    %v2718 = vmax.f32 %v2712, 0.0
    %v2723 = vcombine.high %v2715, %v2715
    %v2725 = vunpack.c.l.s4 1966171168
    %v2726 = vunpack.c.0.s8 %v2725
    %v2727 = vlaneseq
    %v2728 = vshrl.u32 %v2727, 7
    %v2729 = vsub.s32 %v2726, %v2728
    %v2730 = vrot.slane %v2715, %v2729
    %v2732 = vunpack.c.l.s4 1966171168
    %v2733 = vunpack.c.0.s8 %v2732
    %v2734 = vlaneseq
    %v2735 = vshrl.u32 %v2734, 7
    %v2736 = vsub.s32 %v2733, %v2735
    %v2737 = vrot.slane %v2723, %v2736
    %v2738 = vcombine.high %v2730, %v2730
    %v2739 = vcombine.high %v2737, %v2737
    %v2741 = vunpack.c.l.s4 1966171168
    %v2742 = vunpack.c.0.s8 %v2741
    %v2743 = vlaneseq
    %v2744 = vshrl.u32 %v2743, 7
    %v2745 = vsub.s32 %v2742, %v2744
    %v2746 = vrot.slane %v2730, %v2745
    %v2748 = vunpack.c.l.s4 1966171168
    %v2749 = vunpack.c.0.s8 %v2748
    %v2750 = vlaneseq
    %v2751 = vshrl.u32 %v2750, 7
    %v2752 = vsub.s32 %v2749, %v2751
    %v2753 = vrot.slane %v2737, %v2752
    %v2755 = vunpack.c.l.s4 1966171168
    %v2756 = vunpack.c.0.s8 %v2755
    %v2757 = vlaneseq
    %v2758 = vshrl.u32 %v2757, 7
    %v2759 = vsub.s32 %v2756, %v2758
    %v2760 = vrot.slane %v2738, %v2759
    %v2762 = vunpack.c.l.s4 1966171168
    %v2763 = vunpack.c.0.s8 %v2762
    %v2764 = vlaneseq
    %v2765 = vshrl.u32 %v2764, 7
    %v2766 = vsub.s32 %v2763, %v2765
    %v2767 = vrot.slane %v2739, %v2766
    %v2768 = vcombine.high %v2746, %v2746
    %v2769 = vcombine.high %v2753, %v2753
    %v2770 = vcombine.high %v2760, %v2760
    %v2771 = vcombine.high %v2767, %v2767
    %v2772 = vcombine.high %v2716, %v2716
    %v2774 = vunpack.c.l.s4 1966171168
    %v2775 = vunpack.c.0.s8 %v2774
    %v2776 = vlaneseq
    %v2777 = vshrl.u32 %v2776, 7
    %v2778 = vsub.s32 %v2775, %v2777
    %v2779 = vrot.slane %v2716, %v2778
    %v2781 = vunpack.c.l.s4 1966171168
    %v2782 = vunpack.c.0.s8 %v2781
    %v2783 = vlaneseq
    %v2784 = vshrl.u32 %v2783, 7
    %v2785 = vsub.s32 %v2782, %v2784
    %v2786 = vrot.slane %v2772, %v2785
    %v2787 = vcombine.high %v2779, %v2779
    %v2788 = vcombine.high %v2786, %v2786
    %v2790 = vunpack.c.l.s4 1966171168
    %v2791 = vunpack.c.0.s8 %v2790
    %v2792 = vlaneseq
    %v2793 = vshrl.u32 %v2792, 7
    %v2794 = vsub.s32 %v2791, %v2793
    %v2795 = vrot.slane %v2779, %v2794
    %v2797 = vunpack.c.l.s4 1966171168
    %v2798 = vunpack.c.0.s8 %v2797
    %v2799 = vlaneseq
    %v2800 = vshrl.u32 %v2799, 7
    %v2801 = vsub.s32 %v2798, %v2800
    %v2802 = vrot.slane %v2786, %v2801
    %v2804 = vunpack.c.l.s4 1966171168
    %v2805 = vunpack.c.0.s8 %v2804
    %v2806 = vlaneseq
    %v2807 = vshrl.u32 %v2806, 7
    %v2808 = vsub.s32 %v2805, %v2807
    %v2809 = vrot.slane %v2787, %v2808
    %v2811 = vunpack.c.l.s4 1966171168
    %v2812 = vunpack.c.0.s8 %v2811
    %v2813 = vlaneseq
    %v2814 = vshrl.u32 %v2813, 7
    %v2815 = vsub.s32 %v2812, %v2814
    %v2816 = vrot.slane %v2788, %v2815
    %v2817 = vcombine.high %v2795, %v2795
    %v2818 = vcombine.high %v2802, %v2802
    %v2819 = vcombine.high %v2809, %v2809
    %v2820 = vcombine.high %v2816, %v2816
    %v2821 = vcombine.high %v2717, %v2717
    %v2823 = vunpack.c.l.s4 1966171168
    %v2824 = vunpack.c.0.s8 %v2823
    %v2825 = vlaneseq
    %v2826 = vshrl.u32 %v2825, 7
    %v2827 = vsub.s32 %v2824, %v2826
    %v2828 = vrot.slane %v2717, %v2827
    %v2830 = vunpack.c.l.s4 1966171168
    %v2831 = vunpack.c.0.s8 %v2830
    %v2832 = vlaneseq
    %v2833 = vshrl.u32 %v2832, 7
    %v2834 = vsub.s32 %v2831, %v2833
    %v2835 = vrot.slane %v2821, %v2834
    %v2836 = vcombine.high %v2828, %v2828
    %v2837 = vcombine.high %v2835, %v2835
    %v2839 = vunpack.c.l.s4 1966171168
    %v2840 = vunpack.c.0.s8 %v2839
    %v2841 = vlaneseq
    %v2842 = vshrl.u32 %v2841, 7
    %v2843 = vsub.s32 %v2840, %v2842
    %v2844 = vrot.slane %v2828, %v2843
    %v2846 = vunpack.c.l.s4 1966171168
    %v2847 = vunpack.c.0.s8 %v2846
    %v2848 = vlaneseq
    %v2849 = vshrl.u32 %v2848, 7
    %v2850 = vsub.s32 %v2847, %v2849
    %v2851 = vrot.slane %v2835, %v2850
    %v2853 = vunpack.c.l.s4 1966171168
    %v2854 = vunpack.c.0.s8 %v2853
    %v2855 = vlaneseq
    %v2856 = vshrl.u32 %v2855, 7
    %v2857 = vsub.s32 %v2854, %v2856
    %v2858 = vrot.slane %v2836, %v2857
    %v2860 = vunpack.c.l.s4 1966171168
    %v2861 = vunpack.c.0.s8 %v2860
    %v2862 = vlaneseq
    %v2863 = vshrl.u32 %v2862, 7
    %v2864 = vsub.s32 %v2861, %v2863
    %v2865 = vrot.slane %v2837, %v2864
    %v2866 = vcombine.high %v2844, %v2844
    %v2867 = vcombine.high %v2851, %v2851
    %v2868 = vcombine.high %v2858, %v2858
    %v2869 = vcombine.high %v2865, %v2865
    %v2870 = vcombine.high %v2718, %v2718
    %v2872 = vunpack.c.l.s4 1966171168
    %v2873 = vunpack.c.0.s8 %v2872
    %v2874 = vlaneseq
    %v2875 = vshrl.u32 %v2874, 7
    %v2876 = vsub.s32 %v2873, %v2875
    %v2877 = vrot.slane %v2718, %v2876
    %v2879 = vunpack.c.l.s4 1966171168
    %v2880 = vunpack.c.0.s8 %v2879
    %v2881 = vlaneseq
    %v2882 = vshrl.u32 %v2881, 7
    %v2883 = vsub.s32 %v2880, %v2882
    %v2884 = vrot.slane %v2870, %v2883
    %v2885 = vcombine.high %v2877, %v2877
    %v2886 = vcombine.high %v2884, %v2884
    %v2888 = vunpack.c.l.s4 1966171168
    %v2889 = vunpack.c.0.s8 %v2888
    %v2890 = vlaneseq
    %v2891 = vshrl.u32 %v2890, 7
    %v2892 = vsub.s32 %v2889, %v2891
    %v2893 = vrot.slane %v2877, %v2892
    %v2895 = vunpack.c.l.s4 1966171168
    %v2896 = vunpack.c.0.s8 %v2895
    %v2897 = vlaneseq
    %v2898 = vshrl.u32 %v2897, 7
    %v2899 = vsub.s32 %v2896, %v2898
    %v2900 = vrot.slane %v2884, %v2899
    %v2902 = vunpack.c.l.s4 1966171168
    %v2903 = vunpack.c.0.s8 %v2902
    %v2904 = vlaneseq
    %v2905 = vshrl.u32 %v2904, 7
    %v2906 = vsub.s32 %v2903, %v2905
    %v2907 = vrot.slane %v2885, %v2906
    %v2909 = vunpack.c.l.s4 1966171168
    %v2910 = vunpack.c.0.s8 %v2909
    %v2911 = vlaneseq
    %v2912 = vshrl.u32 %v2911, 7
    %v2913 = vsub.s32 %v2910, %v2912
    %v2914 = vrot.slane %v2886, %v2913
    %v2915 = vcombine.high %v2893, %v2893
    %v2916 = vcombine.high %v2900, %v2900
    %v2917 = vcombine.high %v2907, %v2907
    %v2918 = vcombine.high %v2914, %v2914
    %v2919 = vlaneseq
    %v2920 = vshrl.u32 %v2919, 7
    %v2921 = vsub.s32 0, %v2920
    %v2922 = vrot.slane %v2746, %v2921
    %v2923 = vlaneseq
    %v2924 = vshrl.u32 %v2923, 7
    %v2925 = vsub.s32 0, %v2924
    %v2926 = vrot.slane %v2760, %v2925
    %v2927 = vlaneseq
    %v2928 = vshrl.u32 %v2927, 7
    %v2929 = vsub.s32 0, %v2928
    %v2930 = vrot.slane %v2768, %v2929
    %v2931 = vlaneseq
    %v2932 = vshrl.u32 %v2931, 7
    %v2933 = vsub.s32 0, %v2932
    %v2934 = vrot.slane %v2770, %v2933
    %v2935 = vlaneseq
    %v2936 = vshrl.u32 %v2935, 7
    %v2937 = vsub.s32 0, %v2936
    %v2938 = vrot.slane %v2753, %v2937
    %v2939 = vlaneseq
    %v2940 = vshrl.u32 %v2939, 7
    %v2941 = vsub.s32 0, %v2940
    %v2942 = vrot.slane %v2767, %v2941
    %v2943 = vlaneseq
    %v2944 = vshrl.u32 %v2943, 7
    %v2945 = vsub.s32 0, %v2944
    %v2946 = vrot.slane %v2769, %v2945
    %v2947 = vlaneseq
    %v2948 = vshrl.u32 %v2947, 7
    %v2949 = vsub.s32 0, %v2948
    %v2950 = vrot.slane %v2771, %v2949
    %v2951 = vlaneseq
    %v2952 = vshrl.u32 %v2951, 7
    %v2953 = vsub.s32 0, %v2952
    %v2954 = vrot.slane %v2795, %v2953
    %v2955 = vlaneseq
    %v2956 = vshrl.u32 %v2955, 7
    %v2957 = vsub.s32 0, %v2956
    %v2958 = vrot.slane %v2809, %v2957
    %v2959 = vlaneseq
    %v2960 = vshrl.u32 %v2959, 7
    %v2961 = vsub.s32 0, %v2960
    %v2962 = vrot.slane %v2817, %v2961
    %v2963 = vlaneseq
    %v2964 = vshrl.u32 %v2963, 7
    %v2965 = vsub.s32 0, %v2964
    %v2966 = vrot.slane %v2819, %v2965
    %v2967 = vlaneseq
    %v2968 = vshrl.u32 %v2967, 7
    %v2969 = vsub.s32 0, %v2968
    %v2970 = vrot.slane %v2802, %v2969
    %v2971 = vlaneseq
    %v2972 = vshrl.u32 %v2971, 7
    %v2973 = vsub.s32 0, %v2972
    %v2974 = vrot.slane %v2816, %v2973
    %v2975 = vlaneseq
    %v2976 = vshrl.u32 %v2975, 7
    %v2977 = vsub.s32 0, %v2976
    %v2978 = vrot.slane %v2818, %v2977
    %v2979 = vlaneseq
    %v2980 = vshrl.u32 %v2979, 7
    %v2981 = vsub.s32 0, %v2980
    %v2982 = vrot.slane %v2820, %v2981
    %v2983 = vlaneseq
    %v2984 = vshrl.u32 %v2983, 7
    %v2985 = vsub.s32 0, %v2984
    %v2986 = vrot.slane %v2844, %v2985
    %v2987 = vlaneseq
    %v2988 = vshrl.u32 %v2987, 7
    %v2989 = vsub.s32 0, %v2988
    %v2990 = vrot.slane %v2858, %v2989
    %v2991 = vlaneseq
    %v2992 = vshrl.u32 %v2991, 7
    %v2993 = vsub.s32 0, %v2992
    %v2994 = vrot.slane %v2866, %v2993
    %v2995 = vlaneseq
    %v2996 = vshrl.u32 %v2995, 7
    %v2997 = vsub.s32 0, %v2996
    %v2998 = vrot.slane %v2868, %v2997
    %v2999 = vlaneseq
    %v3000 = vshrl.u32 %v2999, 7
    %v3001 = vsub.s32 0, %v3000
    %v3002 = vrot.slane %v2851, %v3001
    %v3003 = vlaneseq
    %v3004 = vshrl.u32 %v3003, 7
    %v3005 = vsub.s32 0, %v3004
    %v3006 = vrot.slane %v2865, %v3005
    %v3007 = vlaneseq
    %v3008 = vshrl.u32 %v3007, 7
    %v3009 = vsub.s32 0, %v3008
    %v3010 = vrot.slane %v2867, %v3009
    %v3011 = vlaneseq
    %v3012 = vshrl.u32 %v3011, 7
    %v3013 = vsub.s32 0, %v3012
    %v3014 = vrot.slane %v2869, %v3013
    %v3015 = vlaneseq
    %v3016 = vshrl.u32 %v3015, 7
    %v3017 = vsub.s32 0, %v3016
    %v3018 = vrot.slane %v2893, %v3017
    %v3019 = vlaneseq
    %v3020 = vshrl.u32 %v3019, 7
    %v3021 = vsub.s32 0, %v3020
    %v3022 = vrot.slane %v2907, %v3021
    %v3023 = vlaneseq
    %v3024 = vshrl.u32 %v3023, 7
    %v3025 = vsub.s32 0, %v3024
    %v3026 = vrot.slane %v2915, %v3025
    %v3027 = vlaneseq
    %v3028 = vshrl.u32 %v3027, 7
    %v3029 = vsub.s32 0, %v3028
    %v3030 = vrot.slane %v2917, %v3029
    %v3031 = vlaneseq
    %v3032 = vshrl.u32 %v3031, 7
    %v3033 = vsub.s32 0, %v3032
    %v3034 = vrot.slane %v2900, %v3033
    %v3035 = vlaneseq
    %v3036 = vshrl.u32 %v3035, 7
    %v3037 = vsub.s32 0, %v3036
    %v3038 = vrot.slane %v2914, %v3037
    %v3039 = vlaneseq
    %v3040 = vshrl.u32 %v3039, 7
    %v3041 = vsub.s32 0, %v3040
    %v3042 = vrot.slane %v2916, %v3041
    %v3043 = vlaneseq
    %v3044 = vshrl.u32 %v3043, 7
    %v3045 = vsub.s32 0, %v3044
    %v3046 = vrot.slane %v2918, %v3045
    %v3079 = vmul.f32 %v2922, %v55
    %v3080 = vmul.f32 %v2926, %v55
    %v3081 = vmul.f32 %v2930, %v55
    %v3082 = vmul.f32 %v2934, %v55
    %v3083 = vmul.f32 %v2938, %v55
    %v3084 = vmul.f32 %v2942, %v55
    %v3085 = vmul.f32 %v2946, %v55
    %v3086 = vmul.f32 %v2950, %v55
    %v3087 = vmul.f32 %v2954, %v55
    %v3088 = vmul.f32 %v2958, %v55
    %v3089 = vmul.f32 %v2962, %v55
    %v3090 = vmul.f32 %v2966, %v55
    %v3091 = vmul.f32 %v2970, %v55
    %v3092 = vmul.f32 %v2974, %v55
    %v3093 = vmul.f32 %v2978, %v55
    %v3094 = vmul.f32 %v2982, %v55
    %v3095 = vmul.f32 %v2986, %v55
    %v3096 = vmul.f32 %v2990, %v55
    %v3097 = vmul.f32 %v2994, %v55
    %v3098 = vmul.f32 %v2998, %v55
    %v3099 = vmul.f32 %v3002, %v55
    %v3100 = vmul.f32 %v3006, %v55
    %v3101 = vmul.f32 %v3010, %v55
    %v3102 = vmul.f32 %v3014, %v55
    %v3103 = vmul.f32 %v3018, %v55
    %v3104 = vmul.f32 %v3022, %v55
    %v3105 = vmul.f32 %v3026, %v55
    %v3106 = vmul.f32 %v3030, %v55
    %v3107 = vmul.f32 %v3034, %v55
    %v3108 = vmul.f32 %v3038, %v55
    %v3109 = vmul.f32 %v3042, %v55
    %v3110 = vmul.f32 %v3046, %v55
    %3111 = vmax.xlane.f32.xlu0 %v3079
    %v3112 = vpop.xlane.xlu0 %3111
    %3113 = vmax.xlane.f32.xlu0 %v3080
    %v3114 = vpop.xlane.xlu0 %3113
    %3115 = vmax.xlane.f32.xlu0 %v3081
    %v3116 = vpop.xlane.xlu0 %3115
    %3117 = vmax.xlane.f32.xlu0 %v3082
    %v3118 = vpop.xlane.xlu0 %3117
    %3119 = vmax.xlane.f32.xlu0 %v3083
    %v3120 = vpop.xlane.xlu0 %3119
    %3121 = vmax.xlane.f32.xlu0 %v3084
    %v3122 = vpop.xlane.xlu0 %3121
    %3123 = vmax.xlane.f32.xlu0 %v3085
    %v3124 = vpop.xlane.xlu0 %3123
    %3125 = vmax.xlane.f32.xlu0 %v3086
    %v3126 = vpop.xlane.xlu0 %3125
    %3127 = vmax.xlane.f32.xlu0 %v3087
    %v3128 = vpop.xlane.xlu0 %3127
    %3129 = vmax.xlane.f32.xlu0 %v3088
    %v3130 = vpop.xlane.xlu0 %3129
    %3131 = vmax.xlane.f32.xlu0 %v3089
    %v3132 = vpop.xlane.xlu0 %3131
    %3133 = vmax.xlane.f32.xlu0 %v3090
    %v3134 = vpop.xlane.xlu0 %3133
    %3135 = vmax.xlane.f32.xlu0 %v3091
    %v3136 = vpop.xlane.xlu0 %3135
    %3137 = vmax.xlane.f32.xlu0 %v3092
    %v3138 = vpop.xlane.xlu0 %3137
    %3139 = vmax.xlane.f32.xlu0 %v3093
    %v3140 = vpop.xlane.xlu0 %3139
    %3141 = vmax.xlane.f32.xlu0 %v3094
    %v3142 = vpop.xlane.xlu0 %3141
    %3143 = vmax.xlane.f32.xlu0 %v3095
    %v3144 = vpop.xlane.xlu0 %3143
    %3145 = vmax.xlane.f32.xlu0 %v3096
    %v3146 = vpop.xlane.xlu0 %3145
    %3147 = vmax.xlane.f32.xlu0 %v3097
    %v3148 = vpop.xlane.xlu0 %3147
    %3149 = vmax.xlane.f32.xlu0 %v3098
    %v3150 = vpop.xlane.xlu0 %3149
    %3151 = vmax.xlane.f32.xlu0 %v3099
    %v3152 = vpop.xlane.xlu0 %3151
    %3153 = vmax.xlane.f32.xlu0 %v3100
    %v3154 = vpop.xlane.xlu0 %3153
    %3155 = vmax.xlane.f32.xlu0 %v3101
    %v3156 = vpop.xlane.xlu0 %3155
    %3157 = vmax.xlane.f32.xlu0 %v3102
    %v3158 = vpop.xlane.xlu0 %3157
    %3159 = vmax.xlane.f32.xlu0 %v3103
    %v3160 = vpop.xlane.xlu0 %3159
    %3161 = vmax.xlane.f32.xlu0 %v3104
    %v3162 = vpop.xlane.xlu0 %3161
    %3163 = vmax.xlane.f32.xlu0 %v3105
    %v3164 = vpop.xlane.xlu0 %3163
    %3165 = vmax.xlane.f32.xlu0 %v3106
    %v3166 = vpop.xlane.xlu0 %3165
    %3167 = vmax.xlane.f32.xlu0 %v3107
    %v3168 = vpop.xlane.xlu0 %3167
    %3169 = vmax.xlane.f32.xlu0 %v3108
    %v3170 = vpop.xlane.xlu0 %3169
    %3171 = vmax.xlane.f32.xlu0 %v3109
    %v3172 = vpop.xlane.xlu0 %3171
    %3173 = vmax.xlane.f32.xlu0 %v3110
    %v3174 = vpop.xlane.xlu0 %3173
    %v3175 = vmax.f32 %v3112, 0.0
    %v3176 = vmax.f32 %v3114, 0.0
    %v3177 = vmax.f32 %v3116, 0.0
    %v3178 = vmax.f32 %v3118, 0.0
    %v3179 = vmax.f32 %v3120, 0.0
    %v3180 = vmax.f32 %v3122, 0.0
    %v3181 = vmax.f32 %v3124, 0.0
    %v3182 = vmax.f32 %v3126, 0.0
    %v3183 = vmax.f32 %v3128, 0.0
    %v3184 = vmax.f32 %v3130, 0.0
    %v3185 = vmax.f32 %v3132, 0.0
    %v3186 = vmax.f32 %v3134, 0.0
    %v3187 = vmax.f32 %v3136, 0.0
    %v3188 = vmax.f32 %v3138, 0.0
    %v3189 = vmax.f32 %v3140, 0.0
    %v3190 = vmax.f32 %v3142, 0.0
    %v3191 = vmax.f32 %v3144, 0.0
    %v3192 = vmax.f32 %v3146, 0.0
    %v3193 = vmax.f32 %v3148, 0.0
    %v3194 = vmax.f32 %v3150, 0.0
    %v3195 = vmax.f32 %v3152, 0.0
    %v3196 = vmax.f32 %v3154, 0.0
    %v3197 = vmax.f32 %v3156, 0.0
    %v3198 = vmax.f32 %v3158, 0.0
    %v3199 = vmax.f32 %v3160, 0.0
    %v3200 = vmax.f32 %v3162, 0.0
    %v3201 = vmax.f32 %v3164, 0.0
    %v3202 = vmax.f32 %v3166, 0.0
    %v3203 = vmax.f32 %v3168, 0.0
    %v3204 = vmax.f32 %v3170, 0.0
    %v3205 = vmax.f32 %v3172, 0.0
    %v3206 = vmax.f32 %v3174, 0.0
    %v3239 = vlaneseq
    %v3240 = vshrl.u32 %v3239, 7
    %v3241 = vsub.s32 %v1056, %v3240
    %v3242 = vrot.slane %v3175, %v3241
    %v3243 = vlaneseq
    %v3244 = vshrl.u32 %v3243, 7
    %v3245 = vsub.s32 %v1056, %v3244
    %v3246 = vrot.slane %v3176, %v3245
    %v3247 = vlaneseq
    %v3248 = vshrl.u32 %v3247, 7
    %v3249 = vsub.s32 %v1056, %v3248
    %v3250 = vrot.slane %v3177, %v3249
    %v3251 = vlaneseq
    %v3252 = vshrl.u32 %v3251, 7
    %v3253 = vsub.s32 %v1056, %v3252
    %v3254 = vrot.slane %v3178, %v3253
    %v3255 = vlaneseq
    %v3256 = vshrl.u32 %v3255, 7
    %v3257 = vsub.s32 %v1056, %v3256
    %v3258 = vrot.slane %v3179, %v3257
    %v3259 = vlaneseq
    %v3260 = vshrl.u32 %v3259, 7
    %v3261 = vsub.s32 %v1056, %v3260
    %v3262 = vrot.slane %v3180, %v3261
    %v3263 = vlaneseq
    %v3264 = vshrl.u32 %v3263, 7
    %v3265 = vsub.s32 %v1056, %v3264
    %v3266 = vrot.slane %v3181, %v3265
    %v3267 = vlaneseq
    %v3268 = vshrl.u32 %v3267, 7
    %v3269 = vsub.s32 %v1056, %v3268
    %v3270 = vrot.slane %v3182, %v3269
    %v3271 = vlaneseq
    %v3272 = vshrl.u32 %v3271, 7
    %v3273 = vsub.s32 %v1056, %v3272
    %v3274 = vrot.slane %v3183, %v3273
    %v3275 = vlaneseq
    %v3276 = vshrl.u32 %v3275, 7
    %v3277 = vsub.s32 %v1056, %v3276
    %v3278 = vrot.slane %v3184, %v3277
    %v3279 = vlaneseq
    %v3280 = vshrl.u32 %v3279, 7
    %v3281 = vsub.s32 %v1056, %v3280
    %v3282 = vrot.slane %v3185, %v3281
    %v3283 = vlaneseq
    %v3284 = vshrl.u32 %v3283, 7
    %v3285 = vsub.s32 %v1056, %v3284
    %v3286 = vrot.slane %v3186, %v3285
    %v3287 = vlaneseq
    %v3288 = vshrl.u32 %v3287, 7
    %v3289 = vsub.s32 %v1056, %v3288
    %v3290 = vrot.slane %v3187, %v3289
    %v3291 = vlaneseq
    %v3292 = vshrl.u32 %v3291, 7
    %v3293 = vsub.s32 %v1056, %v3292
    %v3294 = vrot.slane %v3188, %v3293
    %v3295 = vlaneseq
    %v3296 = vshrl.u32 %v3295, 7
    %v3297 = vsub.s32 %v1056, %v3296
    %v3298 = vrot.slane %v3189, %v3297
    %v3299 = vlaneseq
    %v3300 = vshrl.u32 %v3299, 7
    %v3301 = vsub.s32 %v1056, %v3300
    %v3302 = vrot.slane %v3190, %v3301
    %v3303 = vlaneseq
    %v3304 = vshrl.u32 %v3303, 7
    %v3305 = vsub.s32 %v1056, %v3304
    %v3306 = vrot.slane %v3191, %v3305
    %v3307 = vlaneseq
    %v3308 = vshrl.u32 %v3307, 7
    %v3309 = vsub.s32 %v1056, %v3308
    %v3310 = vrot.slane %v3192, %v3309
    %v3311 = vlaneseq
    %v3312 = vshrl.u32 %v3311, 7
    %v3313 = vsub.s32 %v1056, %v3312
    %v3314 = vrot.slane %v3193, %v3313
    %v3315 = vlaneseq
    %v3316 = vshrl.u32 %v3315, 7
    %v3317 = vsub.s32 %v1056, %v3316
    %v3318 = vrot.slane %v3194, %v3317
    %v3319 = vlaneseq
    %v3320 = vshrl.u32 %v3319, 7
    %v3321 = vsub.s32 %v1056, %v3320
    %v3322 = vrot.slane %v3195, %v3321
    %v3323 = vlaneseq
    %v3324 = vshrl.u32 %v3323, 7
    %v3325 = vsub.s32 %v1056, %v3324
    %v3326 = vrot.slane %v3196, %v3325
    %v3327 = vlaneseq
    %v3328 = vshrl.u32 %v3327, 7
    %v3329 = vsub.s32 %v1056, %v3328
    %v3330 = vrot.slane %v3197, %v3329
    %v3331 = vlaneseq
    %v3332 = vshrl.u32 %v3331, 7
    %v3333 = vsub.s32 %v1056, %v3332
    %v3334 = vrot.slane %v3198, %v3333
    %v3335 = vlaneseq
    %v3336 = vshrl.u32 %v3335, 7
    %v3337 = vsub.s32 %v1056, %v3336
    %v3338 = vrot.slane %v3199, %v3337
    %v3339 = vlaneseq
    %v3340 = vshrl.u32 %v3339, 7
    %v3341 = vsub.s32 %v1056, %v3340
    %v3342 = vrot.slane %v3200, %v3341
    %v3343 = vlaneseq
    %v3344 = vshrl.u32 %v3343, 7
    %v3345 = vsub.s32 %v1056, %v3344
    %v3346 = vrot.slane %v3201, %v3345
    %v3347 = vlaneseq
    %v3348 = vshrl.u32 %v3347, 7
    %v3349 = vsub.s32 %v1056, %v3348
    %v3350 = vrot.slane %v3202, %v3349
    %v3351 = vlaneseq
    %v3352 = vshrl.u32 %v3351, 7
    %v3353 = vsub.s32 %v1056, %v3352
    %v3354 = vrot.slane %v3203, %v3353
    %v3355 = vlaneseq
    %v3356 = vshrl.u32 %v3355, 7
    %v3357 = vsub.s32 %v1056, %v3356
    %v3358 = vrot.slane %v3204, %v3357
    %v3359 = vlaneseq
    %v3360 = vshrl.u32 %v3359, 7
    %v3361 = vsub.s32 %v1056, %v3360
    %v3362 = vrot.slane %v3205, %v3361
    %v3363 = vlaneseq
    %v3364 = vshrl.u32 %v3363, 7
    %v3365 = vsub.s32 %v1056, %v3364
    %v3366 = vrot.slane %v3206, %v3365
    %v3367 = vsel %vm1185, %v3246, %v3242
    %v3368 = vsel %vm1187, %v3250, %v3367
    %v3369 = vsel %vm1189, %v3254, %v3368
    %v3370 = vsel %vm1191, %v3258, %v3369
    %v3371 = vsel %vm1193, %v3262, %v3370
    %v3372 = vsel %vm1195, %v3266, %v3371
    %v3373 = vsel %vm1197, %v3270, %v3372
    %v3374 = vsel %vm1185, %v3278, %v3274
    %v3375 = vsel %vm1187, %v3282, %v3374
    %v3376 = vsel %vm1189, %v3286, %v3375
    %v3377 = vsel %vm1191, %v3290, %v3376
    %v3378 = vsel %vm1193, %v3294, %v3377
    %v3379 = vsel %vm1195, %v3298, %v3378
    %v3380 = vsel %vm1197, %v3302, %v3379
    %v3381 = vsel %vm1185, %v3310, %v3306
    %v3382 = vsel %vm1187, %v3314, %v3381
    %v3383 = vsel %vm1189, %v3318, %v3382
    %v3384 = vsel %vm1191, %v3322, %v3383
    %v3385 = vsel %vm1193, %v3326, %v3384
    %v3386 = vsel %vm1195, %v3330, %v3385
    %v3387 = vsel %vm1197, %v3334, %v3386
    %v3388 = vsel %vm1185, %v3342, %v3338
    %v3389 = vsel %vm1187, %v3346, %v3388
    %v3390 = vsel %vm1189, %v3350, %v3389
    %v3391 = vsel %vm1191, %v3354, %v3390
    %v3392 = vsel %vm1193, %v3358, %v3391
    %v3393 = vsel %vm1195, %v3362, %v3392
    %v3394 = vsel %vm1197, %v3366, %v3393
    %3399 = vmatprep.subr.mxu0 0.0
    %3400 = vmatpush1.msra.mxu0 %v2467
    %3401 = vmatprep.subr.mxu0 0.0
    %3402 = vmatpush1.msra.mxu0 %v3373
    %3403 = vmatprep.subr.mxu0 0.0
    %3404 = vmatpush1.msra.mxu0 %v3380
    %3405 = vmatprep.subr.mxu0 0.0
    %3406 = vmatpush1.msra.mxu0 %v3387
    %3407 = vmatprep.subr.mxu0 0.0
    %3408 = vmatpush1.msra.mxu0 %v3394
    %3409 = vmatprep.subr.mxu0 0.0
    %3410 = vmatpush1.msra.mxu0 0.0
    %3411 = vmatprep.subr.mxu0 0.0
    %3412 = vmatpush1.msra.mxu0 0.0
    %3413 = vmatprep.subr.mxu0 0.0
    %3414 = vmatpush1.msra.mxu0 0.0
    %3415 = vmatprep.subr.mxu0 0.0
    %3416 = vmatpush1.msra.mxu0 0.0
    %3417 = vmatprep.subr.mxu0 0.0
    %3418 = vmatpush1.msra.mxu0 0.0
    %3419 = vmatprep.subr.mxu0 0.0
    %3420 = vmatpush1.msra.mxu0 0.0
    %3421 = vmatprep.subr.mxu0 0.0
    %3422 = vmatpush1.msra.mxu0 0.0
    %3423 = vmatprep.subr.mxu0 0.0
    %3424 = vmatpush1.msra.mxu0 0.0
    %3425 = vmatprep.subr.mxu0 0.0
    %3426 = vmatpush1.msra.mxu0 0.0
    %3427 = vmatprep.subr.mxu0 0.0
    %3428 = vmatpush1.msra.mxu0 0.0
    %3429 = vmatprep.subr.mxu0 0.0
    %3430 = vmatpush1.msra.mxu0 0.0
    %3431 = vmatprep.subr.mxu0 0.0
    %3432 = vmatpush1.msra.mxu0 0.0
    %3433 = vmatprep.subr.mxu0 0.0
    %3434 = vmatpush1.msra.mxu0 0.0
    %3435 = vmatprep.subr.mxu0 0.0
    %3436 = vmatpush1.msra.mxu0 0.0
    %3437 = vmatprep.subr.mxu0 0.0
    %3438 = vmatpush1.msra.mxu0 0.0
    %3439 = vmatprep.subr.mxu0 0.0
    %3440 = vmatpush1.msra.mxu0 0.0
    %3441 = vmatprep.subr.mxu0 0.0
    %3442 = vmatpush1.msra.mxu0 0.0
    %3443 = vmatprep.subr.mxu0 0.0
    %3444 = vmatpush1.msra.mxu0 0.0
    %3445 = vmatprep.subr.mxu0 0.0
    %3446 = vmatpush1.msra.mxu0 0.0
    %3447 = vmatprep.subr.mxu0 0.0
    %3448 = vmatpush1.msra.mxu0 0.0
    %3449 = vmatprep.subr.mxu0 0.0
    %3450 = vmatpush1.msra.mxu0 0.0
    %3451 = vmatprep.subr.mxu0 0.0
    %3452 = vmatpush1.msra.mxu0 0.0
    %3453 = vmatprep.subr.mxu0 0.0
    %3454 = vmatpush1.msra.mxu0 0.0
    %3455 = vmatprep.subr.mxu0 0.0
    %3456 = vmatpush1.msra.mxu0 0.0
    %3457 = vmatprep.subr.mxu0 0.0
    %3458 = vmatpush1.msra.mxu0 0.0
    %3459 = vmatprep.subr.mxu0 0.0
    %3460 = vmatpush1.msra.mxu0 0.0
    %3461 = vmatprep.subr.mxu0 0.0
    %3462 = vmatpush1.msra.mxu0 0.0
    %3463 = vmatprep.mubr.f32.mxu0 0.0
    %3464 = vmatmul.mubr.f32.gmra.mrb[0].mxu0 %v1229
    %v3465 = vpop.f32.mrb[0].mxu0
    %v3466 = vadd.f32 %v232, %v3465
    %v3467 = vpop.f32.mrb[0].mxu0
    %3468 = vmatprep.mubr.f32.mxu0 0.0
    %3469 = vmatmul.mubr.f32.gmra.mrb[0].mxu0 %v1231
    %v3470 = vpop.f32.mrb[0].mxu0
    %v3471 = vadd.f32 %v233, %v3470
    %v3472 = vpop.f32.mrb[0].mxu0
    %3473 = vdwg.mxu0
    %v3474 = vmax.f32 %v3466, 0.0
    %v3475 = vmax.f32 %v3471, 0.0
    %3476 = vmatprep.subr.mxu0 0.0
    %3477 = vmatpush1.msra.mxu0 %v3474
    %3478 = vmatprep.subr.mxu0 0.0
    %3479 = vmatpush1.msra.mxu0 %v3475
    %3480 = vmatprep.subr.mxu0 0.0
    %3481 = vmatpush1.msra.mxu0 0.0
    %3482 = vmatprep.subr.mxu0 0.0
    %3483 = vmatpush1.msra.mxu0 0.0
    %3484 = vmatprep.subr.mxu0 0.0
    %3485 = vmatpush1.msra.mxu0 0.0
    %3486 = vmatprep.subr.mxu0 0.0
    %3487 = vmatpush1.msra.mxu0 0.0
    %3488 = vmatprep.subr.mxu0 0.0
    %3489 = vmatpush1.msra.mxu0 0.0
    %3490 = vmatprep.subr.mxu0 0.0
    %3491 = vmatpush1.msra.mxu0 0.0
    %3492 = vmatprep.subr.mxu0 0.0
    %3493 = vmatpush1.msra.mxu0 0.0
    %3494 = vmatprep.subr.mxu0 0.0
    %3495 = vmatpush1.msra.mxu0 0.0
    %3496 = vmatprep.subr.mxu0 0.0
    %3497 = vmatpush1.msra.mxu0 0.0
    %3498 = vmatprep.subr.mxu0 0.0
    %3499 = vmatpush1.msra.mxu0 0.0
    %3500 = vmatprep.subr.mxu0 0.0
    %3501 = vmatpush1.msra.mxu0 0.0
    %3502 = vmatprep.subr.mxu0 0.0
    %3503 = vmatpush1.msra.mxu0 0.0
    %3504 = vmatprep.subr.mxu0 0.0
    %3505 = vmatpush1.msra.mxu0 0.0
    %3506 = vmatprep.subr.mxu0 0.0
    %3507 = vmatpush1.msra.mxu0 0.0
    %3508 = vmatprep.subr.mxu0 0.0
    %3509 = vmatpush1.msra.mxu0 0.0
    %3510 = vmatprep.subr.mxu0 0.0
    %3511 = vmatpush1.msra.mxu0 0.0
    %3512 = vmatprep.subr.mxu0 0.0
    %3513 = vmatpush1.msra.mxu0 0.0
    %3514 = vmatprep.subr.mxu0 0.0
    %3515 = vmatpush1.msra.mxu0 0.0
    %3516 = vmatprep.subr.mxu0 0.0
    %3517 = vmatpush1.msra.mxu0 0.0
    %3518 = vmatprep.subr.mxu0 0.0
    %3519 = vmatpush1.msra.mxu0 0.0
    %3520 = vmatprep.subr.mxu0 0.0
    %3521 = vmatpush1.msra.mxu0 0.0
    %3522 = vmatprep.subr.mxu0 0.0
    %3523 = vmatpush1.msra.mxu0 0.0
    %3524 = vmatprep.subr.mxu0 0.0
    %3525 = vmatpush1.msra.mxu0 0.0
    %3526 = vmatprep.subr.mxu0 0.0
    %3527 = vmatpush1.msra.mxu0 0.0
    %3528 = vmatprep.subr.mxu0 0.0
    %3529 = vmatpush1.msra.mxu0 0.0
    %3530 = vmatprep.subr.mxu0 0.0
    %3531 = vmatpush1.msra.mxu0 0.0
    %3532 = vmatprep.subr.mxu0 0.0
    %3533 = vmatpush1.msra.mxu0 0.0
    %3534 = vmatprep.subr.mxu0 0.0
    %3535 = vmatpush1.msra.mxu0 0.0
    %3536 = vmatprep.subr.mxu0 0.0
    %3537 = vmatpush1.msra.mxu0 0.0
    %3538 = vmatprep.subr.mxu0 0.0
    %3539 = vmatpush1.msra.mxu0 0.0
    %3540 = vmatprep.mubr.f32.mxu0 0.0
    %3541 = vmatmul.mubr.f32.gmra.mrb[0].mxu0 %v1316
    %v3542 = vpop.f32.mrb[0].mxu0
    %v3543 = vadd.f32 %v1313, %v3542
    %v3544 = vpop.f32.mrb[0].mxu0
    %3545 = vdwg.mxu0
    %v3546 = vmax.f32 %v3543, 0.0
    %3548 = vset.pattern.permute.xlu0 8
    %3549 = vperm.xlu0 %3548, %v37
    %v3550 = vpop.permute.xlu0 %3549
    %3553 = vset.pattern.permute.xlu0 8
    %3554 = vperm.xlu0 %3553, %v38
    %v3555 = vpop.permute.xlu0 %3554
    %v3557 = vsel %vm56, %v37, 0
    %v3559 = vsel %vm56, %v38, 0
    %3561 = vmatprep.subr.mxu0 0.0
    %3562 = vmatpush1.msra.mxu0 %v3546
    %3563 = vmatprep.subr.mxu0 0.0
    %3564 = vmatpush1.msra.mxu0 0.0
    %3565 = vmatprep.subr.mxu0 0.0
    %3566 = vmatpush1.msra.mxu0 0.0
    %3567 = vmatprep.subr.mxu0 0.0
    %3568 = vmatpush1.msra.mxu0 0.0
    %3569 = vmatprep.subr.mxu0 0.0
    %3570 = vmatpush1.msra.mxu0 0.0
    %3571 = vmatprep.subr.mxu0 0.0
    %3572 = vmatpush1.msra.mxu0 0.0
    %3573 = vmatprep.subr.mxu0 0.0
    %3574 = vmatpush1.msra.mxu0 0.0
    %3575 = vmatprep.subr.mxu0 0.0
    %3576 = vmatpush1.msra.mxu0 0.0
    %3577 = vmatprep.subr.mxu0 0.0
    %3578 = vmatpush1.msra.mxu0 0.0
    %3579 = vmatprep.subr.mxu0 0.0
    %3580 = vmatpush1.msra.mxu0 0.0
    %3581 = vmatprep.subr.mxu0 0.0
    %3582 = vmatpush1.msra.mxu0 0.0
    %3583 = vmatprep.subr.mxu0 0.0
    %3584 = vmatpush1.msra.mxu0 0.0
    %3585 = vmatprep.subr.mxu0 0.0
    %3586 = vmatpush1.msra.mxu0 0.0
    %3587 = vmatprep.subr.mxu0 0.0
    %3588 = vmatpush1.msra.mxu0 0.0
    %3589 = vmatprep.subr.mxu0 0.0
    %3590 = vmatpush1.msra.mxu0 0.0
    %3591 = vmatprep.subr.mxu0 0.0
    %3592 = vmatpush1.msra.mxu0 0.0
    %3593 = vmatprep.subr.mxu0 0.0
    %3594 = vmatpush1.msra.mxu0 0.0
    %3595 = vmatprep.subr.mxu0 0.0
    %3596 = vmatpush1.msra.mxu0 0.0
    %3597 = vmatprep.subr.mxu0 0.0
    %3598 = vmatpush1.msra.mxu0 0.0
    %3599 = vmatprep.subr.mxu0 0.0
    %3600 = vmatpush1.msra.mxu0 0.0
    %3601 = vmatprep.subr.mxu0 0.0
    %3602 = vmatpush1.msra.mxu0 0.0
    %3603 = vmatprep.subr.mxu0 0.0
    %3604 = vmatpush1.msra.mxu0 0.0
    %3605 = vmatprep.subr.mxu0 0.0
    %3606 = vmatpush1.msra.mxu0 0.0
    %3607 = vmatprep.subr.mxu0 0.0
    %3608 = vmatpush1.msra.mxu0 0.0
    %3609 = vmatprep.subr.mxu0 0.0
    %3610 = vmatpush1.msra.mxu0 0.0
    %3611 = vmatprep.subr.mxu0 0.0
    %3612 = vmatpush1.msra.mxu0 0.0
    %3613 = vmatprep.subr.mxu0 0.0
    %3614 = vmatpush1.msra.mxu0 0.0
    %3615 = vmatprep.subr.mxu0 0.0
    %3616 = vmatpush1.msra.mxu0 0.0
    %3617 = vmatprep.subr.mxu0 0.0
    %3618 = vmatpush1.msra.mxu0 0.0
    %3619 = vmatprep.subr.mxu0 0.0
    %3620 = vmatpush1.msra.mxu0 0.0
    %3621 = vmatprep.subr.mxu0 0.0
    %3622 = vmatpush1.msra.mxu0 0.0
    %3623 = vmatprep.subr.mxu0 0.0
    %3624 = vmatpush1.msra.mxu0 0.0
    %3625 = vmatprep.mubr.f32.mxu0 0.0
    %3626 = vmatmul.mubr.f32.gmra.mrb[0].mxu0 %v3557
    %v3627 = vpop.f32.mrb[0].mxu0
    %v3628 = vadd.f32 %v3550, %v3627
    %v3629 = vpop.f32.mrb[0].mxu0
    %3630 = vmatprep.mubr.f32.mxu0 0.0
    %3631 = vmatmul.mubr.f32.gmra.mrb[0].mxu0 %v3559
    %v3632 = vpop.f32.mrb[0].mxu0
    %v3633 = vadd.f32 %v3555, %v3632
    %v3634 = vpop.f32.mrb[0].mxu0
    %3635 = vdwg.mxu0
    %v3636 = vmax.f32 %v3628, 0.0
    %v3637 = vmax.f32 %v3633, 0.0
    %3639 = vset.pattern.permute.xlu0 16
    %3640 = vperm.xlu0 %3639, %v39
    %v3641 = vpop.permute.xlu0 %3640
    %v3643 = vsel %vm1315, %v39, 0
    %3645 = vmatprep.subr.mxu0 0.0
    %3646 = vmatpush1.msra.mxu0 %v3636
    %3647 = vmatprep.subr.mxu0 0.0
    %3648 = vmatpush1.msra.mxu0 %v3637
    %3649 = vmatprep.subr.mxu0 0.0
    %3650 = vmatpush1.msra.mxu0 0.0
    %3651 = vmatprep.subr.mxu0 0.0
    %3652 = vmatpush1.msra.mxu0 0.0
    %3653 = vmatprep.subr.mxu0 0.0
    %3654 = vmatpush1.msra.mxu0 0.0
    %3655 = vmatprep.subr.mxu0 0.0
    %3656 = vmatpush1.msra.mxu0 0.0
    %3657 = vmatprep.subr.mxu0 0.0
    %3658 = vmatpush1.msra.mxu0 0.0
    %3659 = vmatprep.subr.mxu0 0.0
    %3660 = vmatpush1.msra.mxu0 0.0
    %3661 = vmatprep.subr.mxu0 0.0
    %3662 = vmatpush1.msra.mxu0 0.0
    %3663 = vmatprep.subr.mxu0 0.0
    %3664 = vmatpush1.msra.mxu0 0.0
    %3665 = vmatprep.subr.mxu0 0.0
    %3666 = vmatpush1.msra.mxu0 0.0
    %3667 = vmatprep.subr.mxu0 0.0
    %3668 = vmatpush1.msra.mxu0 0.0
    %3669 = vmatprep.subr.mxu0 0.0
    %3670 = vmatpush1.msra.mxu0 0.0
    %3671 = vmatprep.subr.mxu0 0.0
    %3672 = vmatpush1.msra.mxu0 0.0
    %3673 = vmatprep.subr.mxu0 0.0
    %3674 = vmatpush1.msra.mxu0 0.0
    %3675 = vmatprep.subr.mxu0 0.0
    %3676 = vmatpush1.msra.mxu0 0.0
    %3677 = vmatprep.subr.mxu0 0.0
    %3678 = vmatpush1.msra.mxu0 0.0
    %3679 = vmatprep.subr.mxu0 0.0
    %3680 = vmatpush1.msra.mxu0 0.0
    %3681 = vmatprep.subr.mxu0 0.0
    %3682 = vmatpush1.msra.mxu0 0.0
    %3683 = vmatprep.subr.mxu0 0.0
    %3684 = vmatpush1.msra.mxu0 0.0
    %3685 = vmatprep.subr.mxu0 0.0
    %3686 = vmatpush1.msra.mxu0 0.0
    %3687 = vmatprep.subr.mxu0 0.0
    %3688 = vmatpush1.msra.mxu0 0.0
    %3689 = vmatprep.subr.mxu0 0.0
    %3690 = vmatpush1.msra.mxu0 0.0
    %3691 = vmatprep.subr.mxu0 0.0
    %3692 = vmatpush1.msra.mxu0 0.0
    %3693 = vmatprep.subr.mxu0 0.0
    %3694 = vmatpush1.msra.mxu0 0.0
    %3695 = vmatprep.subr.mxu0 0.0
    %3696 = vmatpush1.msra.mxu0 0.0
    %3697 = vmatprep.subr.mxu0 0.0
    %3698 = vmatpush1.msra.mxu0 0.0
    %3699 = vmatprep.subr.mxu0 0.0
    %3700 = vmatpush1.msra.mxu0 0.0
    %3701 = vmatprep.subr.mxu0 0.0
    %3702 = vmatpush1.msra.mxu0 0.0
    %3703 = vmatprep.subr.mxu0 0.0
    %3704 = vmatpush1.msra.mxu0 0.0
    %3705 = vmatprep.subr.mxu0 0.0
    %3706 = vmatpush1.msra.mxu0 0.0
    %3707 = vmatprep.subr.mxu0 0.0
    %3708 = vmatpush1.msra.mxu0 0.0
    %3709 = vmatprep.mubr.f32.mxu0 0.0
    %3710 = vmatmul.mubr.f32.gmra.mrb[0].mxu0 %v3643
    %v3711 = vpop.f32.mrb[0].mxu0
    %v3712 = vadd.f32 %v3641, %v3711
    %v3713 = vpop.f32.mrb[0].mxu0
    %3714 = vdwg.mxu0
    %v3715 = vsub.f32 0.0, %v3712
    %v3716 = vmul.f32 %v3715, 1.442695
    %v3717 = vpow.pop %v3716
    %v3718 = vadd.f32 %v3717, 1.0
    %v3719 = vrcp.pop %v3718
    %vm3720 = vcmask 57344
    %3721 = vst.msk [vmem:[#allocation2] sm:$0x1] %vm3720, %v3719
    // Predicated region
    $region22: #{mpnn_forward.1} parent=1 // pred_check
      _
    $region23: #{mpnn_forward.1} parent=1 // pred_check_branch
      %3723 = sbr.rel (0) target = $region25
    $region24: #{mpnn_forward.1} parent=1 // pred_region
      %s3725 = ssub.s32 16, 16
      %3726 = vsyncadd [#allocation3], %s3725
      %s3728 = sshll.u32 [#allocation2], 4
      %s3729 = int_to_ptr.vmem [resolvable:$true] %s3728
      %3731 = dma.vmem_to_hbm [thread:$0]  %s3729, 16, %s5, [#allocation3]
    $region25: #{mpnn_forward.1} parent=1 // pred_fallthru
      _
    // Predicated region
    $region26: #{mpnn_forward.1} parent=1 // pred_check
      _
    $region27: #{mpnn_forward.1} parent=1 // pred_check_branch
      %3733 = sbr.rel (0) target = $region29
    $region28: #{mpnn_forward.1} parent=1 // pred_region
      %3734 = dma.done [#allocation3], 16
    $region29: #{mpnn_forward.1} parent=1 // pred_fallthru
      _
    %3735 = vsyncpa [#allocation3], 1

</llo_original>
